<compile_context>
chip_gen: v5e
topology: v5e:2x2
jax: 0.10.0
libtpu: 0.0.40
codegen_flags: <defaults>
</compile_context>

<pallas_src>
import numpy as np
import jax
import jax.numpy as jnp
from jax.experimental import pallas as pl
from jax.experimental.pallas import tpu as pltpu


# ----------------------------------------------------------------------------
# Fused kernel: 3 x [ReflectionPad(1) + Conv3x3 + ReLU + BN(eval)]  ->  fc1 -> ReLU
#               -> fc2 -> ReLU -> fc3
# ----------------------------------------------------------------------------
def _siamese_kernel(x_ref, m1_ref, m2_ref, m3_ref, epi_ref,
                    w1_ref, b1_ref, w2_ref, b2_ref, w3_ref, b3_ref, o_ref):
    blk_b, H, _ = x_ref.shape
    rows = blk_b * H
    LANES = 128

    def conv_layer(act, m_ref, layer):
        # act: (blk_b, H, k_lanes) f32. Reflection pad (size 1) in H is built in values:
        # tap[dy][:, y, :] == act[:, reflect(y + dy - 1), :].
        k_lanes = act.shape[-1]
        taps = (
            jnp.concatenate([act[:, 1:2, :], act[:, 0:H - 1, :]], axis=1),      # dy = 0
            act,                                                                 # dy = 1
            jnp.concatenate([act[:, 1:H, :], act[:, H - 2:H - 1, :]], axis=1),   # dy = 2
        )
        acc = jnp.zeros((rows, LANES), jnp.float32)
        for dy in range(3):
            lhs = taps[dy].reshape(rows, k_lanes).astype(jnp.bfloat16)
            # m_ref[dy] folds the 3 dx taps, W-reflection and channel mixing into a
            # single (k_lanes, 128) matrix -> one lane-dense MXU matmul per dy.
            acc = acc + jnp.dot(lhs, m_ref[dy], preferred_element_type=jnp.float32)
        e = epi_ref[layer]                       # (3,128): conv bias / BN scale / BN shift
        h = jnp.maximum(acc + e[0:1, :], 0.0) * e[1:2, :] + e[2:3, :]
        return h.reshape(blk_b, H, LANES)

    a1 = conv_layer(x_ref[...], m1_ref, 0)       # (blk_b, H, 128), 4 live channels
    a2 = conv_layer(a1, m2_ref, 1)               # 8 live channels
    a3 = conv_layer(a2, m3_ref, 2)               # feature order along lanes: (w*8 + c)

    # FC stack: fc1 accumulated over H chunks of K=128 (avoids any lane<->sublane
    # reshape of the feature slab), then fc2 / fc3. bf16 MXU inputs, f32 accumulation.
    acc1 = jnp.zeros((blk_b, 256), jnp.float32)
    for h_idx in range(H):
        acc1 = acc1 + jnp.dot(a3[:, h_idx, :].astype(jnp.bfloat16), w1_ref[h_idx],
                              preferred_element_type=jnp.float32)
    h1 = jnp.maximum(acc1 + b1_ref[...], 0.0).astype(jnp.bfloat16)
    h2 = jnp.dot(h1, w2_ref[...], preferred_element_type=jnp.float32)
    h2 = jnp.maximum(h2 + b2_ref[...], 0.0).astype(jnp.bfloat16)
    out = jnp.dot(h2, w3_ref[...], preferred_element_type=jnp.float32)
    o_ref[...] = (out + b3_ref[...]).astype(o_ref.dtype)       # lane-dense (blk_b, 128)


def fused_forward(x_bhw, params, *, block_b=None):
    B2, H, W = x_bhw.shape
    assert W * 8 == 128, "lane packing assumes imgsize[1] == 16"
    assert H >= 2
    if block_b is None:
        # Decouple the batch block from the full batch: >1 grid step when batch grows
        # (v7x megacore sharding + DMA/compute pipelining); toy batch -> one step.
        block_b = 8 if (B2 % 8 == 0) else B2
    assert B2 % block_b == 0
    grid = (B2 // block_b,)
    p = params

    def resident(arr):
        nd = arr.ndim
        return pl.BlockSpec(arr.shape, lambda i, _nd=nd: (0,) * _nd)

    return pl.pallas_call(
        _siamese_kernel,
        out_shape=jax.ShapeDtypeStruct((B2, 128), jnp.float32),
        grid=grid,
        in_specs=[
            pl.BlockSpec((block_b, H, W), lambda i: (i, 0, 0)),
            resident(p["m1"]), resident(p["m2"]), resident(p["m3"]), resident(p["epi"]),
            resident(p["w1"]), resident(p["b1"]),
            resident(p["w2"]), resident(p["b2"]),
            resident(p["w3"]), resident(p["b3"]),
        ],
        out_specs=pl.BlockSpec((block_b, 128), lambda i: (i, 0)),
        compiler_params=pltpu.CompilerParams(
            dimension_semantics=("parallel",),
            # ~1.5 MiB resident weights + a few hundred KiB of activations per step;
            # 32 MiB leaves headroom and stays well inside v7x's 64 MiB physical VMEM.
            vmem_limit_bytes=32 * 1024 * 1024),
    )(x_bhw.astype(jnp.float32),
      p["m1"], p["m2"], p["m3"], p["epi"],
      p["w1"], p["b1"], p["w2"], p["b2"], p["w3"], p["b3"])


# ----------------------------------------------------------------------------
# Parameter construction: PyTorch-equivalent layouts are folded/permuted ONCE at init
# into kernel-friendly, lane-dense layouts (synthetic deterministic values).
# ----------------------------------------------------------------------------
def _fold_conv_dy(w_hwio, W, interleaved_in):
    """Fold a reflect-pad 3x3 conv's dx taps + W-reflection + channel mixing into one
    (k_in, W*8) matrix per dy, where k_in = W*8 (interleaved (w,c) lanes) or W
    (single-channel, non-interleaved first layer)."""
    kh, kw, cin, cout = w_hwio.shape
    assert kh == 3 and kw == 3 and cout <= 8
    lanes = W * 8

    def rx(x):                     # reflection for pad=1: only -1 and W ever occur
        if x < 0:
            return -x
        if x >= W:
            return 2 * W - 2 - x
        return x

    k_in = lanes if interleaved_in else W
    mats = np.zeros((3, k_in, lanes), np.float32)
    for dy in range(3):
        for x_out in range(W):
            for dx in range(3):
                w_in = rx(x_out + dx - 1)
                for ci in range(cin):
                    row = w_in * 8 + ci if interleaved_in else w_in
                    mats[dy, row, x_out * 8:x_out * 8 + cout] += w_hwio[dy, dx, ci, :]
    return mats


def _expand_lanes(vec, cout, W):
    """Tile a per-channel vector over the (w, c)-collapsed 128-lane axis."""
    out = np.zeros((W * 8,), np.float32)
    for x in range(W):
        out[x * 8:x * 8 + cout] = vec[:cout]
    return out


def init_params(imgsize, key, eps=1e-5):
    H, W = imgsize
    assert W * 8 == 128
    ks = jax.random.split(key, 6)

    def conv_block(k, cin, cout):
        kw_, kb, km = jax.random.split(k, 3)
        w = np.asarray(jax.random.normal(kw_, (3, 3, cin, cout), jnp.float32)) * 0.1
        b = np.asarray(jax.random.normal(kb, (cout,), jnp.float32)) * 0.1
        gamma = np.ones((cout,), np.float32)
        beta = np.zeros((cout,), np.float32)
        mean = np.asarray(jax.random.normal(km, (cout,), jnp.float32)) * 0.01
        var = np.ones((cout,), np.float32)
        scale = gamma / np.sqrt(var + eps)       # eval-mode BN folded to a per-ch affine
        shift = beta - mean * scale
        return w, b, scale, shift

    convs = [conv_block(ks[0], 1, 4), conv_block(ks[1], 4, 8), conv_block(ks[2], 8, 8)]
    m1 = _fold_conv_dy(convs[0][0], W, interleaved_in=False)    # (3, W, 128)
    m2 = _fold_conv_dy(convs[1][0], W, interleaved_in=True)     # (3, 128, 128)
    m3 = _fold_conv_dy(convs[2][0], W, interleaved_in=True)     # (3, 128, 128)

    epi = np.zeros((3, 3, 128), np.float32)      # [layer, {bias, scale, shift}, lanes]
    for layer, (cw, b, s, t) in enumerate(convs):
        cout = cw.shape[-1]
        epi[layer, 0] = _expand_lanes(b, cout, W)
        epi[layer, 1] = _expand_lanes(s, cout, W)
        epi[layer, 2] = _expand_lanes(t, cout, W)

    def fc(k, fin, fout):
        kw_, kb = jax.random.split(k, 2)
        w = np.asarray(jax.random.normal(kw_, (fin, fout), jnp.float32)) / np.sqrt(fin)
        b = np.asarray(jax.random.normal(kb, (fout,), jnp.float32)) * 0.01
        return w, b

    # fc1 is defined against PyTorch's NCHW flatten order (c, h, w); pre-permute its
    # rows into the kernel's (h, w*8+c) order and split into H chunks of 128 rows so
    # the conv -> fc handoff needs no runtime transpose/reshape.
    w1, b1 = fc(ks[3], 8 * H * W, 256)
    w1 = w1.reshape(8, H, W, 256).transpose(1, 2, 0, 3).reshape(H, W * 8, 256)
    w2, b2 = fc(ks[4], 256, 256)
    w3, b3 = fc(ks[5], 256, 10)
    w3 = np.pad(w3, ((0, 0), (0, 128 - 10)))     # lane-dense (unmasked) fc3 output store
    b3 = np.pad(b3, (0, 128 - 10))

    return {
        "m1": jnp.asarray(m1, jnp.bfloat16),
        "m2": jnp.asarray(m2, jnp.bfloat16),
        "m3": jnp.asarray(m3, jnp.bfloat16),
        "epi": jnp.asarray(epi, jnp.float32),
        "w1": jnp.asarray(w1, jnp.bfloat16),
        "b1": jnp.asarray(b1.reshape(1, -1), jnp.float32),
        "w2": jnp.asarray(w2, jnp.bfloat16),
        "b2": jnp.asarray(b2.reshape(1, -1), jnp.float32),
        "w3": jnp.asarray(w3, jnp.bfloat16),
        "b3": jnp.asarray(b3.reshape(1, -1), jnp.float32),
    }


# ----------------------------------------------------------------------------
# Forward
# ----------------------------------------------------------------------------
def siamese_forward(input1, input2, params):
    """Shared weights: run both branches as one batched forward pass (one launch)."""
    B = input1.shape[0]
    x = jnp.concatenate([input1, input2], axis=0)          # (2B, 1, H, W)
    B2, C, H, W = x.shape
    assert C == 1
    logits = fused_forward(x.reshape(B2, H, W), params)    # (2B, 128) f32
    logits = logits[:, :10]                                # drop lane padding
    return logits[:B], logits[B:]


# ----------------------------------------------------------------------------
if __name__ == "__main__":
    imgsize = (16, 16)
    batch = 2

    key = jax.random.PRNGKey(0)
    kp, k1, k2 = jax.random.split(key, 3)
    params = init_params(imgsize, kp)

    input1 = jax.random.normal(k1, (batch, 1, imgsize[0], imgsize[1]), jnp.float32)
    input2 = jax.random.normal(k2, (batch, 1, imgsize[0], imgsize[1]), jnp.float32)

    fwd = jax.jit(lambda a, b: siamese_forward(a, b, params))
    out1, out2 = fwd(input1, input2)
    jax.block_until_ready((out1, out2))

    assert out1.shape == (batch, 10) and out2.shape == (batch, 10)
    assert bool(jnp.all(jnp.isfinite(out1))) and bool(jnp.all(jnp.isfinite(out2)))
    print("KERNEL_OK")
</pallas_src>

<mosaic_0001>
module attributes {stable_mosaic.version = 11 : i64} {
  func.func @_siamese_kernel(%arg0: i32, %arg1: memref<4x16x16xf32, #tpu.memory_space<vmem>>, %arg2: memref<3x16x128xbf16, #tpu.memory_space<vmem>>, %arg3: memref<3x128x128xbf16, #tpu.memory_space<vmem>>, %arg4: memref<3x128x128xbf16, #tpu.memory_space<vmem>>, %arg5: memref<3x3x128xf32, #tpu.memory_space<vmem>>, %arg6: memref<16x128x256xbf16, #tpu.memory_space<vmem>>, %arg7: memref<1x256xf32, #tpu.memory_space<vmem>>, %arg8: memref<256x256xbf16, #tpu.memory_space<vmem>>, %arg9: memref<1x256xf32, #tpu.memory_space<vmem>>, %arg10: memref<256x128xbf16, #tpu.memory_space<vmem>>, %arg11: memref<1x128xf32, #tpu.memory_space<vmem>>, %arg12: memref<4x128xf32, #tpu.memory_space<vmem>>) attributes {dimension_semantics = [#tpu.dimension_semantics<parallel>], iteration_bounds = array<i64: 1>, scalar_prefetch = 0 : i64, scratch_operands = 0 : i64, tpu.core_type = #tpu.core_type<tc>, window_params = [{transform_indices = @transform_0, window_bounds = array<i64: 4, 16, 16>}, {pipeline_mode = #tpu.pipeline_mode<synchronous>, transform_indices = @transform_1, window_bounds = array<i64: 3, 16, 128>}, {pipeline_mode = #tpu.pipeline_mode<synchronous>, transform_indices = @transform_2, window_bounds = array<i64: 3, 128, 128>}, {pipeline_mode = #tpu.pipeline_mode<synchronous>, transform_indices = @transform_3, window_bounds = array<i64: 3, 128, 128>}, {pipeline_mode = #tpu.pipeline_mode<synchronous>, transform_indices = @transform_4, window_bounds = array<i64: 3, 3, 128>}, {pipeline_mode = #tpu.pipeline_mode<synchronous>, transform_indices = @transform_5, window_bounds = array<i64: 16, 128, 256>}, {pipeline_mode = #tpu.pipeline_mode<synchronous>, transform_indices = @transform_6, window_bounds = array<i64: 1, 256>}, {pipeline_mode = #tpu.pipeline_mode<synchronous>, transform_indices = @transform_7, window_bounds = array<i64: 256, 256>}, {pipeline_mode = #tpu.pipeline_mode<synchronous>, transform_indices = @transform_8, window_bounds = array<i64: 1, 256>}, {pipeline_mode = #tpu.pipeline_mode<synchronous>, transform_indices = @transform_9, window_bounds = array<i64: 256, 128>}, {pipeline_mode = #tpu.pipeline_mode<synchronous>, transform_indices = @transform_10, window_bounds = array<i64: 1, 128>}, {transform_indices = @transform_11, window_bounds = array<i64: 4, 128>}]} {
    %c0 = arith.constant 0 : index
    %c0_0 = arith.constant 0 : index
    %c0_1 = arith.constant 0 : index
    %0 = vector.load %arg1[%c0, %c0_0, %c0_1] : memref<4x16x16xf32, #tpu.memory_space<vmem>>, vector<4x16x16xf32>
    %1 = vector.extract_strided_slice %0 {offsets = [0, 1, 0], sizes = [4, 1, 16], strides = [1, 1, 1]} : vector<4x16x16xf32> to vector<4x1x16xf32>
    %2 = vector.extract_strided_slice %0 {offsets = [0, 0, 0], sizes = [4, 15, 16], strides = [1, 1, 1]} : vector<4x16x16xf32> to vector<4x15x16xf32>
    %3 = tpu.concatenate %1, %2 in 1 : vector<4x1x16xf32>, vector<4x15x16xf32> -> vector<4x16x16xf32>
    %4 = vector.extract_strided_slice %0 {offsets = [0, 1, 0], sizes = [4, 15, 16], strides = [1, 1, 1]} : vector<4x16x16xf32> to vector<4x15x16xf32>
    %5 = vector.extract_strided_slice %0 {offsets = [0, 14, 0], sizes = [4, 1, 16], strides = [1, 1, 1]} : vector<4x16x16xf32> to vector<4x1x16xf32>
    %6 = tpu.concatenate %4, %5 in 1 : vector<4x15x16xf32>, vector<4x1x16xf32> -> vector<4x16x16xf32>
    %cst = arith.constant 0.000000e+00 : f32
    %7 = vector.broadcast %cst : f32 to vector<64x128xf32>
    %8 = vector.shape_cast %3 : vector<4x16x16xf32> to vector<64x16xf32>
    %9 = arith.truncf %8 : vector<64x16xf32> to vector<64x16xbf16>
    %c0_2 = arith.constant 0 : index
    %c0_3 = arith.constant 0 : index
    %c0_4 = arith.constant 0 : index
    %10 = vector.load %arg2[%c0_2, %c0_3, %c0_4] : memref<3x16x128xbf16, #tpu.memory_space<vmem>>, vector<1x16x128xbf16>
    %11 = vector.shape_cast %10 : vector<1x16x128xbf16> to vector<16x128xbf16>
    %cst_5 = arith.constant dense<0.000000e+00> : vector<64x128xf32>
    %12 = tpu.matmul %9, %11, %cst_5 {dimension_numbers = #tpu.dot_dimension_numbers<[1], [0], [0], [1], [0, 0, 1, 1], [], []>} : vector<64x16xbf16>, vector<16x128xbf16>, vector<64x128xf32> -> vector<64x128xf32>
    %13 = arith.addf %7, %12 : vector<64x128xf32>
    %14 = vector.shape_cast %0 : vector<4x16x16xf32> to vector<64x16xf32>
    %15 = arith.truncf %14 : vector<64x16xf32> to vector<64x16xbf16>
    %c1 = arith.constant 1 : index
    %c0_6 = arith.constant 0 : index
    %c0_7 = arith.constant 0 : index
    %16 = vector.load %arg2[%c1, %c0_6, %c0_7] : memref<3x16x128xbf16, #tpu.memory_space<vmem>>, vector<1x16x128xbf16>
    %17 = vector.shape_cast %16 : vector<1x16x128xbf16> to vector<16x128xbf16>
    %cst_8 = arith.constant dense<0.000000e+00> : vector<64x128xf32>
    %18 = tpu.matmul %15, %17, %cst_8 {dimension_numbers = #tpu.dot_dimension_numbers<[1], [0], [0], [1], [0, 0, 1, 1], [], []>} : vector<64x16xbf16>, vector<16x128xbf16>, vector<64x128xf32> -> vector<64x128xf32>
    %19 = arith.addf %13, %18 : vector<64x128xf32>
    %20 = vector.shape_cast %6 : vector<4x16x16xf32> to vector<64x16xf32>
    %21 = arith.truncf %20 : vector<64x16xf32> to vector<64x16xbf16>
    %c2 = arith.constant 2 : index
    %c0_9 = arith.constant 0 : index
    %c0_10 = arith.constant 0 : index
    %22 = vector.load %arg2[%c2, %c0_9, %c0_10] : memref<3x16x128xbf16, #tpu.memory_space<vmem>>, vector<1x16x128xbf16>
    %23 = vector.shape_cast %22 : vector<1x16x128xbf16> to vector<16x128xbf16>
    %cst_11 = arith.constant dense<0.000000e+00> : vector<64x128xf32>
    %24 = tpu.matmul %21, %23, %cst_11 {dimension_numbers = #tpu.dot_dimension_numbers<[1], [0], [0], [1], [0, 0, 1, 1], [], []>} : vector<64x16xbf16>, vector<16x128xbf16>, vector<64x128xf32> -> vector<64x128xf32>
    %25 = arith.addf %19, %24 : vector<64x128xf32>
    %c0_12 = arith.constant 0 : index
    %c0_13 = arith.constant 0 : index
    %c0_14 = arith.constant 0 : index
    %26 = vector.load %arg5[%c0_12, %c0_13, %c0_14] : memref<3x3x128xf32, #tpu.memory_space<vmem>>, vector<1x3x128xf32>
    %27 = vector.shape_cast %26 : vector<1x3x128xf32> to vector<3x128xf32>
    %28 = vector.extract_strided_slice %27 {offsets = [0, 0], sizes = [1, 128], strides = [1, 1]} : vector<3x128xf32> to vector<1x128xf32>
    %29 = vector.broadcast %28 : vector<1x128xf32> to vector<64x128xf32>
    %30 = arith.addf %25, %29 : vector<64x128xf32>
    %cst_15 = arith.constant 0.000000e+00 : f32
    %31 = vector.broadcast %cst_15 : f32 to vector<64x128xf32>
    %32 = arith.maximumf %30, %31 : vector<64x128xf32>
    %33 = vector.extract_strided_slice %27 {offsets = [1, 0], sizes = [1, 128], strides = [1, 1]} : vector<3x128xf32> to vector<1x128xf32>
    %34 = vector.broadcast %33 : vector<1x128xf32> to vector<64x128xf32>
    %35 = arith.mulf %32, %34 : vector<64x128xf32>
    %36 = vector.extract_strided_slice %27 {offsets = [2, 0], sizes = [1, 128], strides = [1, 1]} : vector<3x128xf32> to vector<1x128xf32>
    %37 = vector.broadcast %36 : vector<1x128xf32> to vector<64x128xf32>
    %38 = arith.addf %35, %37 : vector<64x128xf32>
    %39 = vector.shape_cast %38 : vector<64x128xf32> to vector<4x16x128xf32>
    %40 = vector.extract_strided_slice %39 {offsets = [0, 1, 0], sizes = [4, 1, 128], strides = [1, 1, 1]} : vector<4x16x128xf32> to vector<4x1x128xf32>
    %41 = vector.extract_strided_slice %39 {offsets = [0, 0, 0], sizes = [4, 15, 128], strides = [1, 1, 1]} : vector<4x16x128xf32> to vector<4x15x128xf32>
    %42 = tpu.concatenate %40, %41 in 1 : vector<4x1x128xf32>, vector<4x15x128xf32> -> vector<4x16x128xf32>
    %43 = vector.extract_strided_slice %39 {offsets = [0, 1, 0], sizes = [4, 15, 128], strides = [1, 1, 1]} : vector<4x16x128xf32> to vector<4x15x128xf32>
    %44 = vector.extract_strided_slice %39 {offsets = [0, 14, 0], sizes = [4, 1, 128], strides = [1, 1, 1]} : vector<4x16x128xf32> to vector<4x1x128xf32>
    %45 = tpu.concatenate %43, %44 in 1 : vector<4x15x128xf32>, vector<4x1x128xf32> -> vector<4x16x128xf32>
    %cst_16 = arith.constant 0.000000e+00 : f32
    %46 = vector.broadcast %cst_16 : f32 to vector<64x128xf32>
    %47 = vector.shape_cast %42 : vector<4x16x128xf32> to vector<64x128xf32>
    %48 = arith.truncf %47 : vector<64x128xf32> to vector<64x128xbf16>
    %c0_17 = arith.constant 0 : index
    %c0_18 = arith.constant 0 : index
    %c0_19 = arith.constant 0 : index
    %49 = vector.load %arg3[%c0_17, %c0_18, %c0_19] : memref<3x128x128xbf16, #tpu.memory_space<vmem>>, vector<1x128x128xbf16>
    %50 = vector.shape_cast %49 : vector<1x128x128xbf16> to vector<128x128xbf16>
    %cst_20 = arith.constant dense<0.000000e+00> : vector<64x128xf32>
    %51 = tpu.matmul %48, %50, %cst_20 {dimension_numbers = #tpu.dot_dimension_numbers<[1], [0], [0], [1], [0, 0, 1, 1], [], []>} : vector<64x128xbf16>, vector<128x128xbf16>, vector<64x128xf32> -> vector<64x128xf32>
    %52 = arith.addf %46, %51 : vector<64x128xf32>
    %53 = vector.shape_cast %39 : vector<4x16x128xf32> to vector<64x128xf32>
    %54 = arith.truncf %53 : vector<64x128xf32> to vector<64x128xbf16>
    %c1_21 = arith.constant 1 : index
    %c0_22 = arith.constant 0 : index
    %c0_23 = arith.constant 0 : index
    %55 = vector.load %arg3[%c1_21, %c0_22, %c0_23] : memref<3x128x128xbf16, #tpu.memory_space<vmem>>, vector<1x128x128xbf16>
    %56 = vector.shape_cast %55 : vector<1x128x128xbf16> to vector<128x128xbf16>
    %cst_24 = arith.constant dense<0.000000e+00> : vector<64x128xf32>
    %57 = tpu.matmul %54, %56, %cst_24 {dimension_numbers = #tpu.dot_dimension_numbers<[1], [0], [0], [1], [0, 0, 1, 1], [], []>} : vector<64x128xbf16>, vector<128x128xbf16>, vector<64x128xf32> -> vector<64x128xf32>
    %58 = arith.addf %52, %57 : vector<64x128xf32>
    %59 = vector.shape_cast %45 : vector<4x16x128xf32> to vector<64x128xf32>
    %60 = arith.truncf %59 : vector<64x128xf32> to vector<64x128xbf16>
    %c2_25 = arith.constant 2 : index
    %c0_26 = arith.constant 0 : index
    %c0_27 = arith.constant 0 : index
    %61 = vector.load %arg3[%c2_25, %c0_26, %c0_27] : memref<3x128x128xbf16, #tpu.memory_space<vmem>>, vector<1x128x128xbf16>
    %62 = vector.shape_cast %61 : vector<1x128x128xbf16> to vector<128x128xbf16>
    %cst_28 = arith.constant dense<0.000000e+00> : vector<64x128xf32>
    %63 = tpu.matmul %60, %62, %cst_28 {dimension_numbers = #tpu.dot_dimension_numbers<[1], [0], [0], [1], [0, 0, 1, 1], [], []>} : vector<64x128xbf16>, vector<128x128xbf16>, vector<64x128xf32> -> vector<64x128xf32>
    %64 = arith.addf %58, %63 : vector<64x128xf32>
    %c1_29 = arith.constant 1 : index
    %c0_30 = arith.constant 0 : index
    %c0_31 = arith.constant 0 : index
    %65 = vector.load %arg5[%c1_29, %c0_30, %c0_31] : memref<3x3x128xf32, #tpu.memory_space<vmem>>, vector<1x3x128xf32>
    %66 = vector.shape_cast %65 : vector<1x3x128xf32> to vector<3x128xf32>
    %67 = vector.extract_strided_slice %66 {offsets = [0, 0], sizes = [1, 128], strides = [1, 1]} : vector<3x128xf32> to vector<1x128xf32>
    %68 = vector.broadcast %67 : vector<1x128xf32> to vector<64x128xf32>
    %69 = arith.addf %64, %68 : vector<64x128xf32>
    %cst_32 = arith.constant 0.000000e+00 : f32
    %70 = vector.broadcast %cst_32 : f32 to vector<64x128xf32>
    %71 = arith.maximumf %69, %70 : vector<64x128xf32>
    %72 = vector.extract_strided_slice %66 {offsets = [1, 0], sizes = [1, 128], strides = [1, 1]} : vector<3x128xf32> to vector<1x128xf32>
    %73 = vector.broadcast %72 : vector<1x128xf32> to vector<64x128xf32>
    %74 = arith.mulf %71, %73 : vector<64x128xf32>
    %75 = vector.extract_strided_slice %66 {offsets = [2, 0], sizes = [1, 128], strides = [1, 1]} : vector<3x128xf32> to vector<1x128xf32>
    %76 = vector.broadcast %75 : vector<1x128xf32> to vector<64x128xf32>
    %77 = arith.addf %74, %76 : vector<64x128xf32>
    %78 = vector.shape_cast %77 : vector<64x128xf32> to vector<4x16x128xf32>
    %79 = vector.extract_strided_slice %78 {offsets = [0, 1, 0], sizes = [4, 1, 128], strides = [1, 1, 1]} : vector<4x16x128xf32> to vector<4x1x128xf32>
    %80 = vector.extract_strided_slice %78 {offsets = [0, 0, 0], sizes = [4, 15, 128], strides = [1, 1, 1]} : vector<4x16x128xf32> to vector<4x15x128xf32>
    %81 = tpu.concatenate %79, %80 in 1 : vector<4x1x128xf32>, vector<4x15x128xf32> -> vector<4x16x128xf32>
    %82 = vector.extract_strided_slice %78 {offsets = [0, 1, 0], sizes = [4, 15, 128], strides = [1, 1, 1]} : vector<4x16x128xf32> to vector<4x15x128xf32>
    %83 = vector.extract_strided_slice %78 {offsets = [0, 14, 0], sizes = [4, 1, 128], strides = [1, 1, 1]} : vector<4x16x128xf32> to vector<4x1x128xf32>
    %84 = tpu.concatenate %82, %83 in 1 : vector<4x15x128xf32>, vector<4x1x128xf32> -> vector<4x16x128xf32>
    %cst_33 = arith.constant 0.000000e+00 : f32
    %85 = vector.broadcast %cst_33 : f32 to vector<64x128xf32>
    %86 = vector.shape_cast %81 : vector<4x16x128xf32> to vector<64x128xf32>
    %87 = arith.truncf %86 : vector<64x128xf32> to vector<64x128xbf16>
    %c0_34 = arith.constant 0 : index
    %c0_35 = arith.constant 0 : index
    %c0_36 = arith.constant 0 : index
    %88 = vector.load %arg4[%c0_34, %c0_35, %c0_36] : memref<3x128x128xbf16, #tpu.memory_space<vmem>>, vector<1x128x128xbf16>
    %89 = vector.shape_cast %88 : vector<1x128x128xbf16> to vector<128x128xbf16>
    %cst_37 = arith.constant dense<0.000000e+00> : vector<64x128xf32>
    %90 = tpu.matmul %87, %89, %cst_37 {dimension_numbers = #tpu.dot_dimension_numbers<[1], [0], [0], [1], [0, 0, 1, 1], [], []>} : vector<64x128xbf16>, vector<128x128xbf16>, vector<64x128xf32> -> vector<64x128xf32>
    %91 = arith.addf %85, %90 : vector<64x128xf32>
    %92 = vector.shape_cast %78 : vector<4x16x128xf32> to vector<64x128xf32>
    %93 = arith.truncf %92 : vector<64x128xf32> to vector<64x128xbf16>
    %c1_38 = arith.constant 1 : index
    %c0_39 = arith.constant 0 : index
    %c0_40 = arith.constant 0 : index
    %94 = vector.load %arg4[%c1_38, %c0_39, %c0_40] : memref<3x128x128xbf16, #tpu.memory_space<vmem>>, vector<1x128x128xbf16>
    %95 = vector.shape_cast %94 : vector<1x128x128xbf16> to vector<128x128xbf16>
    %cst_41 = arith.constant dense<0.000000e+00> : vector<64x128xf32>
    %96 = tpu.matmul %93, %95, %cst_41 {dimension_numbers = #tpu.dot_dimension_numbers<[1], [0], [0], [1], [0, 0, 1, 1], [], []>} : vector<64x128xbf16>, vector<128x128xbf16>, vector<64x128xf32> -> vector<64x128xf32>
    %97 = arith.addf %91, %96 : vector<64x128xf32>
    %98 = vector.shape_cast %84 : vector<4x16x128xf32> to vector<64x128xf32>
    %99 = arith.truncf %98 : vector<64x128xf32> to vector<64x128xbf16>
    %c2_42 = arith.constant 2 : index
    %c0_43 = arith.constant 0 : index
    %c0_44 = arith.constant 0 : index
    %100 = vector.load %arg4[%c2_42, %c0_43, %c0_44] : memref<3x128x128xbf16, #tpu.memory_space<vmem>>, vector<1x128x128xbf16>
    %101 = vector.shape_cast %100 : vector<1x128x128xbf16> to vector<128x128xbf16>
    %cst_45 = arith.constant dense<0.000000e+00> : vector<64x128xf32>
    %102 = tpu.matmul %99, %101, %cst_45 {dimension_numbers = #tpu.dot_dimension_numbers<[1], [0], [0], [1], [0, 0, 1, 1], [], []>} : vector<64x128xbf16>, vector<128x128xbf16>, vector<64x128xf32> -> vector<64x128xf32>
    %103 = arith.addf %97, %102 : vector<64x128xf32>
    %c2_46 = arith.constant 2 : index
    %c0_47 = arith.constant 0 : index
    %c0_48 = arith.constant 0 : index
    %104 = vector.load %arg5[%c2_46, %c0_47, %c0_48] : memref<3x3x128xf32, #tpu.memory_space<vmem>>, vector<1x3x128xf32>
    %105 = vector.shape_cast %104 : vector<1x3x128xf32> to vector<3x128xf32>
    %106 = vector.extract_strided_slice %105 {offsets = [0, 0], sizes = [1, 128], strides = [1, 1]} : vector<3x128xf32> to vector<1x128xf32>
    %107 = vector.broadcast %106 : vector<1x128xf32> to vector<64x128xf32>
    %108 = arith.addf %103, %107 : vector<64x128xf32>
    %cst_49 = arith.constant 0.000000e+00 : f32
    %109 = vector.broadcast %cst_49 : f32 to vector<64x128xf32>
    %110 = arith.maximumf %108, %109 : vector<64x128xf32>
    %111 = vector.extract_strided_slice %105 {offsets = [1, 0], sizes = [1, 128], strides = [1, 1]} : vector<3x128xf32> to vector<1x128xf32>
    %112 = vector.broadcast %111 : vector<1x128xf32> to vector<64x128xf32>
    %113 = arith.mulf %110, %112 : vector<64x128xf32>
    %114 = vector.extract_strided_slice %105 {offsets = [2, 0], sizes = [1, 128], strides = [1, 1]} : vector<3x128xf32> to vector<1x128xf32>
    %115 = vector.broadcast %114 : vector<1x128xf32> to vector<64x128xf32>
    %116 = arith.addf %113, %115 : vector<64x128xf32>
    %117 = vector.shape_cast %116 : vector<64x128xf32> to vector<4x16x128xf32>
    %cst_50 = arith.constant 0.000000e+00 : f32
    %118 = vector.broadcast %cst_50 : f32 to vector<4x256xf32>
    %119 = vector.extract_strided_slice %117 {offsets = [0, 0, 0], sizes = [4, 1, 128], strides = [1, 1, 1]} : vector<4x16x128xf32> to vector<4x1x128xf32>
    %120 = vector.shape_cast %119 : vector<4x1x128xf32> to vector<4x128xf32>
    %121 = arith.truncf %120 : vector<4x128xf32> to vector<4x128xbf16>
    %c0_51 = arith.constant 0 : index
    %c0_52 = arith.constant 0 : index
    %c0_53 = arith.constant 0 : index
    %122 = vector.load %arg6[%c0_51, %c0_52, %c0_53] : memref<16x128x256xbf16, #tpu.memory_space<vmem>>, vector<1x128x256xbf16>
    %123 = vector.shape_cast %122 : vector<1x128x256xbf16> to vector<128x256xbf16>
    %cst_54 = arith.constant dense<0.000000e+00> : vector<4x256xf32>
    %124 = tpu.matmul %121, %123, %cst_54 {dimension_numbers = #tpu.dot_dimension_numbers<[1], [0], [0], [1], [0, 0, 1, 1], [], []>} : vector<4x128xbf16>, vector<128x256xbf16>, vector<4x256xf32> -> vector<4x256xf32>
    %125 = arith.addf %118, %124 : vector<4x256xf32>
    %126 = vector.extract_strided_slice %117 {offsets = [0, 1, 0], sizes = [4, 1, 128], strides = [1, 1, 1]} : vector<4x16x128xf32> to vector<4x1x128xf32>
    %127 = vector.shape_cast %126 : vector<4x1x128xf32> to vector<4x128xf32>
    %128 = arith.truncf %127 : vector<4x128xf32> to vector<4x128xbf16>
    %c1_55 = arith.constant 1 : index
    %c0_56 = arith.constant 0 : index
    %c0_57 = arith.constant 0 : index
    %129 = vector.load %arg6[%c1_55, %c0_56, %c0_57] : memref<16x128x256xbf16, #tpu.memory_space<vmem>>, vector<1x128x256xbf16>
    %130 = vector.shape_cast %129 : vector<1x128x256xbf16> to vector<128x256xbf16>
    %cst_58 = arith.constant dense<0.000000e+00> : vector<4x256xf32>
    %131 = tpu.matmul %128, %130, %cst_58 {dimension_numbers = #tpu.dot_dimension_numbers<[1], [0], [0], [1], [0, 0, 1, 1], [], []>} : vector<4x128xbf16>, vector<128x256xbf16>, vector<4x256xf32> -> vector<4x256xf32>
    %132 = arith.addf %125, %131 : vector<4x256xf32>
    %133 = vector.extract_strided_slice %117 {offsets = [0, 2, 0], sizes = [4, 1, 128], strides = [1, 1, 1]} : vector<4x16x128xf32> to vector<4x1x128xf32>
    %134 = vector.shape_cast %133 : vector<4x1x128xf32> to vector<4x128xf32>
    %135 = arith.truncf %134 : vector<4x128xf32> to vector<4x128xbf16>
    %c2_59 = arith.constant 2 : index
    %c0_60 = arith.constant 0 : index
    %c0_61 = arith.constant 0 : index
    %136 = vector.load %arg6[%c2_59, %c0_60, %c0_61] : memref<16x128x256xbf16, #tpu.memory_space<vmem>>, vector<1x128x256xbf16>
    %137 = vector.shape_cast %136 : vector<1x128x256xbf16> to vector<128x256xbf16>
    %cst_62 = arith.constant dense<0.000000e+00> : vector<4x256xf32>
    %138 = tpu.matmul %135, %137, %cst_62 {dimension_numbers = #tpu.dot_dimension_numbers<[1], [0], [0], [1], [0, 0, 1, 1], [], []>} : vector<4x128xbf16>, vector<128x256xbf16>, vector<4x256xf32> -> vector<4x256xf32>
    %139 = arith.addf %132, %138 : vector<4x256xf32>
    %140 = vector.extract_strided_slice %117 {offsets = [0, 3, 0], sizes = [4, 1, 128], strides = [1, 1, 1]} : vector<4x16x128xf32> to vector<4x1x128xf32>
    %141 = vector.shape_cast %140 : vector<4x1x128xf32> to vector<4x128xf32>
    %142 = arith.truncf %141 : vector<4x128xf32> to vector<4x128xbf16>
    %c3 = arith.constant 3 : index
    %c0_63 = arith.constant 0 : index
    %c0_64 = arith.constant 0 : index
    %143 = vector.load %arg6[%c3, %c0_63, %c0_64] : memref<16x128x256xbf16, #tpu.memory_space<vmem>>, vector<1x128x256xbf16>
    %144 = vector.shape_cast %143 : vector<1x128x256xbf16> to vector<128x256xbf16>
    %cst_65 = arith.constant dense<0.000000e+00> : vector<4x256xf32>
    %145 = tpu.matmul %142, %144, %cst_65 {dimension_numbers = #tpu.dot_dimension_numbers<[1], [0], [0], [1], [0, 0, 1, 1], [], []>} : vector<4x128xbf16>, vector<128x256xbf16>, vector<4x256xf32> -> vector<4x256xf32>
    %146 = arith.addf %139, %145 : vector<4x256xf32>
    %147 = vector.extract_strided_slice %117 {offsets = [0, 4, 0], sizes = [4, 1, 128], strides = [1, 1, 1]} : vector<4x16x128xf32> to vector<4x1x128xf32>
    %148 = vector.shape_cast %147 : vector<4x1x128xf32> to vector<4x128xf32>
    %149 = arith.truncf %148 : vector<4x128xf32> to vector<4x128xbf16>
    %c4 = arith.constant 4 : index
    %c0_66 = arith.constant 0 : index
    %c0_67 = arith.constant 0 : index
    %150 = vector.load %arg6[%c4, %c0_66, %c0_67] : memref<16x128x256xbf16, #tpu.memory_space<vmem>>, vector<1x128x256xbf16>
    %151 = vector.shape_cast %150 : vector<1x128x256xbf16> to vector<128x256xbf16>
    %cst_68 = arith.constant dense<0.000000e+00> : vector<4x256xf32>
    %152 = tpu.matmul %149, %151, %cst_68 {dimension_numbers = #tpu.dot_dimension_numbers<[1], [0], [0], [1], [0, 0, 1, 1], [], []>} : vector<4x128xbf16>, vector<128x256xbf16>, vector<4x256xf32> -> vector<4x256xf32>
    %153 = arith.addf %146, %152 : vector<4x256xf32>
    %154 = vector.extract_strided_slice %117 {offsets = [0, 5, 0], sizes = [4, 1, 128], strides = [1, 1, 1]} : vector<4x16x128xf32> to vector<4x1x128xf32>
    %155 = vector.shape_cast %154 : vector<4x1x128xf32> to vector<4x128xf32>
    %156 = arith.truncf %155 : vector<4x128xf32> to vector<4x128xbf16>
    %c5 = arith.constant 5 : index
    %c0_69 = arith.constant 0 : index
    %c0_70 = arith.constant 0 : index
    %157 = vector.load %arg6[%c5, %c0_69, %c0_70] : memref<16x128x256xbf16, #tpu.memory_space<vmem>>, vector<1x128x256xbf16>
    %158 = vector.shape_cast %157 : vector<1x128x256xbf16> to vector<128x256xbf16>
    %cst_71 = arith.constant dense<0.000000e+00> : vector<4x256xf32>
    %159 = tpu.matmul %156, %158, %cst_71 {dimension_numbers = #tpu.dot_dimension_numbers<[1], [0], [0], [1], [0, 0, 1, 1], [], []>} : vector<4x128xbf16>, vector<128x256xbf16>, vector<4x256xf32> -> vector<4x256xf32>
    %160 = arith.addf %153, %159 : vector<4x256xf32>
    %161 = vector.extract_strided_slice %117 {offsets = [0, 6, 0], sizes = [4, 1, 128], strides = [1, 1, 1]} : vector<4x16x128xf32> to vector<4x1x128xf32>
    %162 = vector.shape_cast %161 : vector<4x1x128xf32> to vector<4x128xf32>
    %163 = arith.truncf %162 : vector<4x128xf32> to vector<4x128xbf16>
    %c6 = arith.constant 6 : index
    %c0_72 = arith.constant 0 : index
    %c0_73 = arith.constant 0 : index
    %164 = vector.load %arg6[%c6, %c0_72, %c0_73] : memref<16x128x256xbf16, #tpu.memory_space<vmem>>, vector<1x128x256xbf16>
    %165 = vector.shape_cast %164 : vector<1x128x256xbf16> to vector<128x256xbf16>
    %cst_74 = arith.constant dense<0.000000e+00> : vector<4x256xf32>
    %166 = tpu.matmul %163, %165, %cst_74 {dimension_numbers = #tpu.dot_dimension_numbers<[1], [0], [0], [1], [0, 0, 1, 1], [], []>} : vector<4x128xbf16>, vector<128x256xbf16>, vector<4x256xf32> -> vector<4x256xf32>
    %167 = arith.addf %160, %166 : vector<4x256xf32>
    %168 = vector.extract_strided_slice %117 {offsets = [0, 7, 0], sizes = [4, 1, 128], strides = [1, 1, 1]} : vector<4x16x128xf32> to vector<4x1x128xf32>
    %169 = vector.shape_cast %168 : vector<4x1x128xf32> to vector<4x128xf32>
    %170 = arith.truncf %169 : vector<4x128xf32> to vector<4x128xbf16>
    %c7 = arith.constant 7 : index
    %c0_75 = arith.constant 0 : index
    %c0_76 = arith.constant 0 : index
    %171 = vector.load %arg6[%c7, %c0_75, %c0_76] : memref<16x128x256xbf16, #tpu.memory_space<vmem>>, vector<1x128x256xbf16>
    %172 = vector.shape_cast %171 : vector<1x128x256xbf16> to vector<128x256xbf16>
    %cst_77 = arith.constant dense<0.000000e+00> : vector<4x256xf32>
    %173 = tpu.matmul %170, %172, %cst_77 {dimension_numbers = #tpu.dot_dimension_numbers<[1], [0], [0], [1], [0, 0, 1, 1], [], []>} : vector<4x128xbf16>, vector<128x256xbf16>, vector<4x256xf32> -> vector<4x256xf32>
    %174 = arith.addf %167, %173 : vector<4x256xf32>
    %175 = vector.extract_strided_slice %117 {offsets = [0, 8, 0], sizes = [4, 1, 128], strides = [1, 1, 1]} : vector<4x16x128xf32> to vector<4x1x128xf32>
    %176 = vector.shape_cast %175 : vector<4x1x128xf32> to vector<4x128xf32>
    %177 = arith.truncf %176 : vector<4x128xf32> to vector<4x128xbf16>
    %c8 = arith.constant 8 : index
    %c0_78 = arith.constant 0 : index
    %c0_79 = arith.constant 0 : index
    %178 = vector.load %arg6[%c8, %c0_78, %c0_79] : memref<16x128x256xbf16, #tpu.memory_space<vmem>>, vector<1x128x256xbf16>
    %179 = vector.shape_cast %178 : vector<1x128x256xbf16> to vector<128x256xbf16>
    %cst_80 = arith.constant dense<0.000000e+00> : vector<4x256xf32>
    %180 = tpu.matmul %177, %179, %cst_80 {dimension_numbers = #tpu.dot_dimension_numbers<[1], [0], [0], [1], [0, 0, 1, 1], [], []>} : vector<4x128xbf16>, vector<128x256xbf16>, vector<4x256xf32> -> vector<4x256xf32>
    %181 = arith.addf %174, %180 : vector<4x256xf32>
    %182 = vector.extract_strided_slice %117 {offsets = [0, 9, 0], sizes = [4, 1, 128], strides = [1, 1, 1]} : vector<4x16x128xf32> to vector<4x1x128xf32>
    %183 = vector.shape_cast %182 : vector<4x1x128xf32> to vector<4x128xf32>
    %184 = arith.truncf %183 : vector<4x128xf32> to vector<4x128xbf16>
    %c9 = arith.constant 9 : index
    %c0_81 = arith.constant 0 : index
    %c0_82 = arith.constant 0 : index
    %185 = vector.load %arg6[%c9, %c0_81, %c0_82] : memref<16x128x256xbf16, #tpu.memory_space<vmem>>, vector<1x128x256xbf16>
    %186 = vector.shape_cast %185 : vector<1x128x256xbf16> to vector<128x256xbf16>
    %cst_83 = arith.constant dense<0.000000e+00> : vector<4x256xf32>
    %187 = tpu.matmul %184, %186, %cst_83 {dimension_numbers = #tpu.dot_dimension_numbers<[1], [0], [0], [1], [0, 0, 1, 1], [], []>} : vector<4x128xbf16>, vector<128x256xbf16>, vector<4x256xf32> -> vector<4x256xf32>
    %188 = arith.addf %181, %187 : vector<4x256xf32>
    %189 = vector.extract_strided_slice %117 {offsets = [0, 10, 0], sizes = [4, 1, 128], strides = [1, 1, 1]} : vector<4x16x128xf32> to vector<4x1x128xf32>
    %190 = vector.shape_cast %189 : vector<4x1x128xf32> to vector<4x128xf32>
    %191 = arith.truncf %190 : vector<4x128xf32> to vector<4x128xbf16>
    %c10 = arith.constant 10 : index
    %c0_84 = arith.constant 0 : index
    %c0_85 = arith.constant 0 : index
    %192 = vector.load %arg6[%c10, %c0_84, %c0_85] : memref<16x128x256xbf16, #tpu.memory_space<vmem>>, vector<1x128x256xbf16>
    %193 = vector.shape_cast %192 : vector<1x128x256xbf16> to vector<128x256xbf16>
    %cst_86 = arith.constant dense<0.000000e+00> : vector<4x256xf32>
    %194 = tpu.matmul %191, %193, %cst_86 {dimension_numbers = #tpu.dot_dimension_numbers<[1], [0], [0], [1], [0, 0, 1, 1], [], []>} : vector<4x128xbf16>, vector<128x256xbf16>, vector<4x256xf32> -> vector<4x256xf32>
    %195 = arith.addf %188, %194 : vector<4x256xf32>
    %196 = vector.extract_strided_slice %117 {offsets = [0, 11, 0], sizes = [4, 1, 128], strides = [1, 1, 1]} : vector<4x16x128xf32> to vector<4x1x128xf32>
    %197 = vector.shape_cast %196 : vector<4x1x128xf32> to vector<4x128xf32>
    %198 = arith.truncf %197 : vector<4x128xf32> to vector<4x128xbf16>
    %c11 = arith.constant 11 : index
    %c0_87 = arith.constant 0 : index
    %c0_88 = arith.constant 0 : index
    %199 = vector.load %arg6[%c11, %c0_87, %c0_88] : memref<16x128x256xbf16, #tpu.memory_space<vmem>>, vector<1x128x256xbf16>
    %200 = vector.shape_cast %199 : vector<1x128x256xbf16> to vector<128x256xbf16>
    %cst_89 = arith.constant dense<0.000000e+00> : vector<4x256xf32>
    %201 = tpu.matmul %198, %200, %cst_89 {dimension_numbers = #tpu.dot_dimension_numbers<[1], [0], [0], [1], [0, 0, 1, 1], [], []>} : vector<4x128xbf16>, vector<128x256xbf16>, vector<4x256xf32> -> vector<4x256xf32>
    %202 = arith.addf %195, %201 : vector<4x256xf32>
    %203 = vector.extract_strided_slice %117 {offsets = [0, 12, 0], sizes = [4, 1, 128], strides = [1, 1, 1]} : vector<4x16x128xf32> to vector<4x1x128xf32>
    %204 = vector.shape_cast %203 : vector<4x1x128xf32> to vector<4x128xf32>
    %205 = arith.truncf %204 : vector<4x128xf32> to vector<4x128xbf16>
    %c12 = arith.constant 12 : index
    %c0_90 = arith.constant 0 : index
    %c0_91 = arith.constant 0 : index
    %206 = vector.load %arg6[%c12, %c0_90, %c0_91] : memref<16x128x256xbf16, #tpu.memory_space<vmem>>, vector<1x128x256xbf16>
    %207 = vector.shape_cast %206 : vector<1x128x256xbf16> to vector<128x256xbf16>
    %cst_92 = arith.constant dense<0.000000e+00> : vector<4x256xf32>
    %208 = tpu.matmul %205, %207, %cst_92 {dimension_numbers = #tpu.dot_dimension_numbers<[1], [0], [0], [1], [0, 0, 1, 1], [], []>} : vector<4x128xbf16>, vector<128x256xbf16>, vector<4x256xf32> -> vector<4x256xf32>
    %209 = arith.addf %202, %208 : vector<4x256xf32>
    %210 = vector.extract_strided_slice %117 {offsets = [0, 13, 0], sizes = [4, 1, 128], strides = [1, 1, 1]} : vector<4x16x128xf32> to vector<4x1x128xf32>
    %211 = vector.shape_cast %210 : vector<4x1x128xf32> to vector<4x128xf32>
    %212 = arith.truncf %211 : vector<4x128xf32> to vector<4x128xbf16>
    %c13 = arith.constant 13 : index
    %c0_93 = arith.constant 0 : index
    %c0_94 = arith.constant 0 : index
    %213 = vector.load %arg6[%c13, %c0_93, %c0_94] : memref<16x128x256xbf16, #tpu.memory_space<vmem>>, vector<1x128x256xbf16>
    %214 = vector.shape_cast %213 : vector<1x128x256xbf16> to vector<128x256xbf16>
    %cst_95 = arith.constant dense<0.000000e+00> : vector<4x256xf32>
    %215 = tpu.matmul %212, %214, %cst_95 {dimension_numbers = #tpu.dot_dimension_numbers<[1], [0], [0], [1], [0, 0, 1, 1], [], []>} : vector<4x128xbf16>, vector<128x256xbf16>, vector<4x256xf32> -> vector<4x256xf32>
    %216 = arith.addf %209, %215 : vector<4x256xf32>
    %217 = vector.extract_strided_slice %117 {offsets = [0, 14, 0], sizes = [4, 1, 128], strides = [1, 1, 1]} : vector<4x16x128xf32> to vector<4x1x128xf32>
    %218 = vector.shape_cast %217 : vector<4x1x128xf32> to vector<4x128xf32>
    %219 = arith.truncf %218 : vector<4x128xf32> to vector<4x128xbf16>
    %c14 = arith.constant 14 : index
    %c0_96 = arith.constant 0 : index
    %c0_97 = arith.constant 0 : index
    %220 = vector.load %arg6[%c14, %c0_96, %c0_97] : memref<16x128x256xbf16, #tpu.memory_space<vmem>>, vector<1x128x256xbf16>
    %221 = vector.shape_cast %220 : vector<1x128x256xbf16> to vector<128x256xbf16>
    %cst_98 = arith.constant dense<0.000000e+00> : vector<4x256xf32>
    %222 = tpu.matmul %219, %221, %cst_98 {dimension_numbers = #tpu.dot_dimension_numbers<[1], [0], [0], [1], [0, 0, 1, 1], [], []>} : vector<4x128xbf16>, vector<128x256xbf16>, vector<4x256xf32> -> vector<4x256xf32>
    %223 = arith.addf %216, %222 : vector<4x256xf32>
    %224 = vector.extract_strided_slice %117 {offsets = [0, 15, 0], sizes = [4, 1, 128], strides = [1, 1, 1]} : vector<4x16x128xf32> to vector<4x1x128xf32>
    %225 = vector.shape_cast %224 : vector<4x1x128xf32> to vector<4x128xf32>
    %226 = arith.truncf %225 : vector<4x128xf32> to vector<4x128xbf16>
    %c15 = arith.constant 15 : index
    %c0_99 = arith.constant 0 : index
    %c0_100 = arith.constant 0 : index
    %227 = vector.load %arg6[%c15, %c0_99, %c0_100] : memref<16x128x256xbf16, #tpu.memory_space<vmem>>, vector<1x128x256xbf16>
    %228 = vector.shape_cast %227 : vector<1x128x256xbf16> to vector<128x256xbf16>
    %cst_101 = arith.constant dense<0.000000e+00> : vector<4x256xf32>
    %229 = tpu.matmul %226, %228, %cst_101 {dimension_numbers = #tpu.dot_dimension_numbers<[1], [0], [0], [1], [0, 0, 1, 1], [], []>} : vector<4x128xbf16>, vector<128x256xbf16>, vector<4x256xf32> -> vector<4x256xf32>
    %230 = arith.addf %223, %229 : vector<4x256xf32>
    %c0_102 = arith.constant 0 : index
    %c0_103 = arith.constant 0 : index
    %231 = vector.load %arg7[%c0_102, %c0_103] : memref<1x256xf32, #tpu.memory_space<vmem>>, vector<1x256xf32>
    %232 = vector.broadcast %231 : vector<1x256xf32> to vector<4x256xf32>
    %233 = arith.addf %230, %232 : vector<4x256xf32>
    %cst_104 = arith.constant 0.000000e+00 : f32
    %234 = vector.broadcast %cst_104 : f32 to vector<4x256xf32>
    %235 = arith.maximumf %233, %234 : vector<4x256xf32>
    %236 = arith.truncf %235 : vector<4x256xf32> to vector<4x256xbf16>
    %c0_105 = arith.constant 0 : index
    %c0_106 = arith.constant 0 : index
    %237 = vector.load %arg8[%c0_105, %c0_106] : memref<256x256xbf16, #tpu.memory_space<vmem>>, vector<256x256xbf16>
    %cst_107 = arith.constant dense<0.000000e+00> : vector<4x256xf32>
    %238 = tpu.matmul %236, %237, %cst_107 {dimension_numbers = #tpu.dot_dimension_numbers<[1], [0], [0], [1], [0, 0, 1, 1], [], []>} : vector<4x256xbf16>, vector<256x256xbf16>, vector<4x256xf32> -> vector<4x256xf32>
    %c0_108 = arith.constant 0 : index
    %c0_109 = arith.constant 0 : index
    %239 = vector.load %arg9[%c0_108, %c0_109] : memref<1x256xf32, #tpu.memory_space<vmem>>, vector<1x256xf32>
    %240 = vector.broadcast %239 : vector<1x256xf32> to vector<4x256xf32>
    %241 = arith.addf %238, %240 : vector<4x256xf32>
    %cst_110 = arith.constant 0.000000e+00 : f32
    %242 = vector.broadcast %cst_110 : f32 to vector<4x256xf32>
    %243 = arith.maximumf %241, %242 : vector<4x256xf32>
    %244 = arith.truncf %243 : vector<4x256xf32> to vector<4x256xbf16>
    %c0_111 = arith.constant 0 : index
    %c0_112 = arith.constant 0 : index
    %245 = vector.load %arg10[%c0_111, %c0_112] : memref<256x128xbf16, #tpu.memory_space<vmem>>, vector<256x128xbf16>
    %cst_113 = arith.constant dense<0.000000e+00> : vector<4x128xf32>
    %246 = tpu.matmul %244, %245, %cst_113 {dimension_numbers = #tpu.dot_dimension_numbers<[1], [0], [0], [1], [0, 0, 1, 1], [], []>} : vector<4x256xbf16>, vector<256x128xbf16>, vector<4x128xf32> -> vector<4x128xf32>
    %c0_114 = arith.constant 0 : index
    %c0_115 = arith.constant 0 : index
    %247 = vector.load %arg11[%c0_114, %c0_115] : memref<1x128xf32, #tpu.memory_space<vmem>>, vector<1x128xf32>
    %248 = vector.broadcast %247 : vector<1x128xf32> to vector<4x128xf32>
    %249 = arith.addf %246, %248 : vector<4x128xf32>
    %c0_116 = arith.constant 0 : index
    %c0_117 = arith.constant 0 : index
    %250 = vector.load %arg12[%c0_116, %c0_117] : memref<4x128xf32, #tpu.memory_space<vmem>>, vector<4x128xf32>
    tpu.vector_store %arg12[%c0_116, %c0_117], %249 {strides = array<i32>} : memref<4x128xf32, #tpu.memory_space<vmem>>, vector<4x128xf32>,
    return
  }
  func.func @transform_0(%arg0: i32) -> (i32, i32, i32) {
    %c0_i32 = arith.constant 0 : i32
    %c0_i32_0 = arith.constant 0 : i32
    %c0_i32_1 = arith.constant 0 : i32
    return %arg0, %c0_i32, %c0_i32_0 : i32, i32, i32
  }
  func.func @transform_1(%arg0: i32) -> (i32, i32, i32) {
    %c0_i32 = arith.constant 0 : i32
    %c0_i32_0 = arith.constant 0 : i32
    %c0_i32_1 = arith.constant 0 : i32
    %c0_i32_2 = arith.constant 0 : i32
    return %c0_i32, %c0_i32_0, %c0_i32_1 : i32, i32, i32
  }
  func.func @transform_2(%arg0: i32) -> (i32, i32, i32) {
    %c0_i32 = arith.constant 0 : i32
    %c0_i32_0 = arith.constant 0 : i32
    %c0_i32_1 = arith.constant 0 : i32
    %c0_i32_2 = arith.constant 0 : i32
    return %c0_i32, %c0_i32_0, %c0_i32_1 : i32, i32, i32
  }
  func.func @transform_3(%arg0: i32) -> (i32, i32, i32) {
    %c0_i32 = arith.constant 0 : i32
    %c0_i32_0 = arith.constant 0 : i32
    %c0_i32_1 = arith.constant 0 : i32
    %c0_i32_2 = arith.constant 0 : i32
    return %c0_i32, %c0_i32_0, %c0_i32_1 : i32, i32, i32
  }
  func.func @transform_4(%arg0: i32) -> (i32, i32, i32) {
    %c0_i32 = arith.constant 0 : i32
    %c0_i32_0 = arith.constant 0 : i32
    %c0_i32_1 = arith.constant 0 : i32
    %c0_i32_2 = arith.constant 0 : i32
    return %c0_i32, %c0_i32_0, %c0_i32_1 : i32, i32, i32
  }
  func.func @transform_5(%arg0: i32) -> (i32, i32, i32) {
    %c0_i32 = arith.constant 0 : i32
    %c0_i32_0 = arith.constant 0 : i32
    %c0_i32_1 = arith.constant 0 : i32
    %c0_i32_2 = arith.constant 0 : i32
    return %c0_i32, %c0_i32_0, %c0_i32_1 : i32, i32, i32
  }
  func.func @transform_6(%arg0: i32) -> (i32, i32) {
    %c0_i32 = arith.constant 0 : i32
    %c0_i32_0 = arith.constant 0 : i32
    %c0_i32_1 = arith.constant 0 : i32
    return %c0_i32, %c0_i32_0 : i32, i32
  }
  func.func @transform_7(%arg0: i32) -> (i32, i32) {
    %c0_i32 = arith.constant 0 : i32
    %c0_i32_0 = arith.constant 0 : i32
    %c0_i32_1 = arith.constant 0 : i32
    return %c0_i32, %c0_i32_0 : i32, i32
  }
  func.func @transform_8(%arg0: i32) -> (i32, i32) {
    %c0_i32 = arith.constant 0 : i32
    %c0_i32_0 = arith.constant 0 : i32
    %c0_i32_1 = arith.constant 0 : i32
    return %c0_i32, %c0_i32_0 : i32, i32
  }
  func.func @transform_9(%arg0: i32) -> (i32, i32) {
    %c0_i32 = arith.constant 0 : i32
    %c0_i32_0 = arith.constant 0 : i32
    %c0_i32_1 = arith.constant 0 : i32
    return %c0_i32, %c0_i32_0 : i32, i32
  }
  func.func @transform_10(%arg0: i32) -> (i32, i32) {
    %c0_i32 = arith.constant 0 : i32
    %c0_i32_0 = arith.constant 0 : i32
    %c0_i32_1 = arith.constant 0 : i32
    return %c0_i32, %c0_i32_0 : i32, i32
  }
  func.func @transform_11(%arg0: i32) -> (i32, i32) {
    %c0_i32 = arith.constant 0 : i32
    %c0_i32_0 = arith.constant 0 : i32
    return %arg0, %c0_i32 : i32, i32
  }
}

</mosaic_0001>

<llo_original>
// kernel: _lambda_.1
$region0: #{_lambda_.1}
  #allocation0 [shape = 'u32[]', space=smem, size = 0x4, offset = 0x4, fixed_abs, tag = 'smem constant byte address 0x4 - core index']
  #allocation1 [shape = 'u32[72,128]{1,0:T(1,128)}', space=vmem, size = 0x9000, scoped, tag = 'internal scratch']
  %s0 = inlined_call_operand.vmem [shape: f32[4,16,16], index: 0, kind: input, shape index: {}]
  %s1 = inlined_call_operand.hbm [shape: bf16[3,16,128], index: 1, kind: input, shape index: {}]
  %s2 = inlined_call_operand.hbm [shape: bf16[3,128,128], index: 2, kind: input, shape index: {}]
  %s3 = inlined_call_operand.hbm [shape: bf16[3,128,128], index: 3, kind: input, shape index: {}]
  %s4 = inlined_call_operand.hbm [shape: f32[3,3,128], index: 4, kind: input, shape index: {}]
  %s5 = inlined_call_operand.hbm [shape: bf16[16,128,256], index: 5, kind: input, shape index: {}]
  %s6 = inlined_call_operand.vmem [shape: f32[1,256], index: 6, kind: input, shape index: {}]
  %s7 = inlined_call_operand.hbm [shape: bf16[256,256], index: 7, kind: input, shape index: {}]
  %s8 = inlined_call_operand.vmem [shape: f32[1,256], index: 8, kind: input, shape index: {}]
  %s9 = inlined_call_operand.vmem [shape: bf16[256,128], index: 9, kind: input, shape index: {}]
  %s10 = inlined_call_operand.vmem [shape: f32[1,128], index: 10, kind: input, shape index: {}]
  %s11 = inlined_call_operand.vmem [shape: f32[4,128], index: 11, kind: output, shape index: {}]
  %s12 = sld [smem:[#allocation0]]
  $region78: #{_lambda_.1} parent=0
    _
  %s14 = ssub.s32 1, %s12
  %s15 = scalar_select 0, %s14, %s12
  $region1: #{_lambda_.1} parent=0
    #allocation2 [shape = 'u8[12288]{0}', space=vmem, size = 0x3000, scoped, tag = 'input window, operand 1, single buffered']
    #allocation3 [shape = 's32[1]{0}', space=sflag, size = 0x4, scoped, tag = 'scoped memory for _lambda_.1']
    #allocation4 [shape = 'u8[98304]{0}', space=vmem, size = 0x18000, scoped, tag = 'input window, operand 2, single buffered']
    #allocation5 [shape = 's32[1]{0}', space=sflag, size = 0x4, scoped, tag = 'scoped memory for _lambda_.1']
    #allocation6 [shape = 'u8[98304]{0}', space=vmem, size = 0x18000, scoped, tag = 'input window, operand 3, single buffered']
    #allocation7 [shape = 'u8[6144]{0}', space=vmem, size = 0x1800, scoped, tag = 'input window, operand 4, single buffered']
    #allocation8 [shape = 's32[1]{0}', space=sflag, size = 0x4, scoped, tag = 'scoped memory for _lambda_.1']
    #allocation9 [shape = 'u8[1048576]{0}', space=vmem, size = 0x100000, scoped, tag = 'input window, operand 5, single buffered']
    #allocation10 [shape = 'u8[131072]{0}', space=vmem, size = 0x20000, scoped, tag = 'input window, operand 7, single buffered']
    #allocation11 [shape = 's32[1]{0}', space=sflag, size = 0x4, scoped, tag = 'scoped memory for _lambda_.1']
    %16 = vsyncpa [#allocation3], 0
    %17 = vsyncpa [#allocation5], 0
    %18 = vsyncpa [#allocation8], 0
    %19 = vsyncpa [#allocation11], 0
    // Predicated region
    $region2: #{_lambda_.1} parent=1 // pred_check
      _
    $region3: #{_lambda_.1} parent=1 // pred_check_branch
      %21 = sbr.rel (0) target = $region5
    $region4: #{_lambda_.1} parent=1 // pred_region
      _
    $region5: #{_lambda_.1} parent=1 // pred_fallthru
      _
    // Predicated region
    $region6: #{_lambda_.1} parent=1 // pred_check
      _
    $region7: #{_lambda_.1} parent=1 // pred_check_branch
      %23 = sbr.rel (0) target = $region9
    $region8: #{_lambda_.1} parent=1 // pred_region
      %25 = vsyncadd [#allocation3], 0
      %s26 = sshll.u32 %s1, 4
      %s27 = int_to_ptr.hbm [resolvable:$true] %s26
      %s28 = sshll.u32 [#allocation2], 4
      %s29 = int_to_ptr.vmem [resolvable:$true] %s28
      %34 = dma.hbm_to_vmem [thread:$0]  %s27, 384, %s29, [#allocation3], 64, 64, 4
    $region9: #{_lambda_.1} parent=1 // pred_fallthru
      _
    // Predicated region
    $region10: #{_lambda_.1} parent=1 // pred_check
      _
    $region11: #{_lambda_.1} parent=1 // pred_check_branch
      %36 = sbr.rel (0) target = $region13
    $region12: #{_lambda_.1} parent=1 // pred_region
      %38 = vsyncadd [#allocation5], 0
      %s39 = sshll.u32 %s2, 4
      %s40 = int_to_ptr.hbm [resolvable:$true] %s39
      %s41 = sshll.u32 [#allocation4], 4
      %s42 = int_to_ptr.vmem [resolvable:$true] %s41
      %47 = dma.hbm_to_vmem [thread:$0]  %s40, 3072, %s42, [#allocation5], 64, 64, 4
    $region13: #{_lambda_.1} parent=1 // pred_fallthru
      _
    // Predicated region
    $region14: #{_lambda_.1} parent=1 // pred_check
      _
    $region15: #{_lambda_.1} parent=1 // pred_check_branch
      %49 = sbr.rel (0) target = $region17
    $region16: #{_lambda_.1} parent=1 // pred_region
      %51 = vsyncadd [#allocation5], 0
      %s52 = sshll.u32 %s3, 4
      %s53 = int_to_ptr.hbm [resolvable:$true] %s52
      %s54 = sshll.u32 [#allocation6], 4
      %s55 = int_to_ptr.vmem [resolvable:$true] %s54
      %60 = dma.hbm_to_vmem [thread:$0]  %s53, 3072, %s55, [#allocation5], 64, 64, 4
    $region17: #{_lambda_.1} parent=1 // pred_fallthru
      _
    // Predicated region
    $region18: #{_lambda_.1} parent=1 // pred_check
      _
    $region19: #{_lambda_.1} parent=1 // pred_check_branch
      %62 = sbr.rel (0) target = $region21
    $region20: #{_lambda_.1} parent=1 // pred_region
      %64 = vsyncadd [#allocation8], 0
      %s65 = sshll.u32 %s4, 4
      %s66 = int_to_ptr.hbm [resolvable:$true] %s65
      %s67 = sshll.u32 [#allocation7], 4
      %s68 = int_to_ptr.vmem [resolvable:$true] %s67
      %73 = dma.hbm_to_vmem [thread:$0]  %s66, 192, %s68, [#allocation8], 64, 64, 4
    $region21: #{_lambda_.1} parent=1 // pred_fallthru
      _
    // Predicated region
    $region22: #{_lambda_.1} parent=1 // pred_check
      _
    $region23: #{_lambda_.1} parent=1 // pred_check_branch
      %75 = sbr.rel (0) target = $region25
    $region24: #{_lambda_.1} parent=1 // pred_region
      %77 = vsyncadd [#allocation8], 0
      %s78 = sshll.u32 %s5, 4
      %s79 = int_to_ptr.hbm [resolvable:$true] %s78
      %s80 = sshll.u32 [#allocation9], 4
      %s81 = int_to_ptr.vmem [resolvable:$true] %s80
      %86 = dma.hbm_to_vmem [thread:$0]  %s79, 32768, %s81, [#allocation8], 128, 128, 8
    $region25: #{_lambda_.1} parent=1 // pred_fallthru
      _
    // Predicated region
    $region26: #{_lambda_.1} parent=1 // pred_check
      _
    $region27: #{_lambda_.1} parent=1 // pred_check_branch
      %88 = sbr.rel (0) target = $region29
    $region28: #{_lambda_.1} parent=1 // pred_region
      _
    $region29: #{_lambda_.1} parent=1 // pred_fallthru
      _
    // Predicated region
    $region30: #{_lambda_.1} parent=1 // pred_check
      _
    $region31: #{_lambda_.1} parent=1 // pred_check_branch
      %90 = sbr.rel (0) target = $region33
    $region32: #{_lambda_.1} parent=1 // pred_region
      %92 = vsyncadd [#allocation11], 0
      %s93 = sshll.u32 %s7, 4
      %s94 = int_to_ptr.hbm [resolvable:$true] %s93
      %s95 = sshll.u32 [#allocation10], 4
      %s96 = int_to_ptr.vmem [resolvable:$true] %s95
      %101 = dma.hbm_to_vmem [thread:$0]  %s94, 4096, %s96, [#allocation11], 128, 128, 8
    $region33: #{_lambda_.1} parent=1 // pred_fallthru
      _
    // Predicated region
    $region34: #{_lambda_.1} parent=1 // pred_check
      _
    $region35: #{_lambda_.1} parent=1 // pred_check_branch
      %103 = sbr.rel (0) target = $region37
    $region36: #{_lambda_.1} parent=1 // pred_region
      _
    $region37: #{_lambda_.1} parent=1 // pred_fallthru
      _
    // Predicated region
    $region38: #{_lambda_.1} parent=1 // pred_check
      _
    $region39: #{_lambda_.1} parent=1 // pred_check_branch
      %105 = sbr.rel (0) target = $region41
    $region40: #{_lambda_.1} parent=1 // pred_region
      _
    $region41: #{_lambda_.1} parent=1 // pred_fallthru
      _
    // Predicated region
    $region42: #{_lambda_.1} parent=1 // pred_check
      _
    $region43: #{_lambda_.1} parent=1 // pred_check_branch
      %107 = sbr.rel (0) target = $region45
    $region44: #{_lambda_.1} parent=1 // pred_region
      _
    $region45: #{_lambda_.1} parent=1 // pred_fallthru
      _
    // Predicated region
    $region46: #{_lambda_.1} parent=1 // pred_check
      _
    $region47: #{_lambda_.1} parent=1 // pred_check_branch
      %109 = sbr.rel (0) target = $region49
    $region48: #{_lambda_.1} parent=1 // pred_region
      %111 = dma.done [#allocation3], 384
    $region49: #{_lambda_.1} parent=1 // pred_fallthru
      _
    // Predicated region
    $region50: #{_lambda_.1} parent=1 // pred_check
      _
    $region51: #{_lambda_.1} parent=1 // pred_check_branch
      %113 = sbr.rel (0) target = $region53
    $region52: #{_lambda_.1} parent=1 // pred_region
      %115 = dma.done [#allocation5], 3072
    $region53: #{_lambda_.1} parent=1 // pred_fallthru
      _
    // Predicated region
    $region54: #{_lambda_.1} parent=1 // pred_check
      _
    $region55: #{_lambda_.1} parent=1 // pred_check_branch
      %117 = sbr.rel (0) target = $region57
    $region56: #{_lambda_.1} parent=1 // pred_region
      %119 = dma.done [#allocation5], 3072
    $region57: #{_lambda_.1} parent=1 // pred_fallthru
      _
    // Predicated region
    $region58: #{_lambda_.1} parent=1 // pred_check
      _
    $region59: #{_lambda_.1} parent=1 // pred_check_branch
      %121 = sbr.rel (0) target = $region61
    $region60: #{_lambda_.1} parent=1 // pred_region
      %123 = dma.done [#allocation8], 192
    $region61: #{_lambda_.1} parent=1 // pred_fallthru
      _
    // Predicated region
    $region62: #{_lambda_.1} parent=1 // pred_check
      _
    $region63: #{_lambda_.1} parent=1 // pred_check_branch
      %125 = sbr.rel (0) target = $region65
    $region64: #{_lambda_.1} parent=1 // pred_region
      %127 = dma.done [#allocation8], 32768
    $region65: #{_lambda_.1} parent=1 // pred_fallthru
      _
    // Predicated region
    $region66: #{_lambda_.1} parent=1 // pred_check
      _
    $region67: #{_lambda_.1} parent=1 // pred_check_branch
      %129 = sbr.rel (0) target = $region69
    $region68: #{_lambda_.1} parent=1 // pred_region
      %131 = dma.done [#allocation11], 4096
    $region69: #{_lambda_.1} parent=1 // pred_fallthru
      _
    %v133 = vld [vmem:[%s0] sm:$0xff]
    %v134 = vld [vmem:[%s0 + $0x8] sm:$0xff]
    %v135 = vld [vmem:[%s0 + $0x10] sm:$0xff]
    %v136 = vld [vmem:[%s0 + $0x18] sm:$0xff]
    %v137 = vld [vmem:[%s0 + $0x20] sm:$0xff]
    %v138 = vld [vmem:[%s0 + $0x28] sm:$0xff]
    %v139 = vld [vmem:[%s0 + $0x30] sm:$0xff]
    %v140 = vld [vmem:[%s0 + $0x38] sm:$0xff]
    %v145 = vrot.slane %v133, 1
    %v146 = vrot.slane %v135, 1
    %v147 = vrot.slane %v137, 1
    %v148 = vrot.slane %v139, 1
    %vm157 = vcmask 1040384
    %v158 = vrot.slane %v133, 7
    %v159 = vrot.slane %v134, 7
    %v160 = vsel %vm157, %v158, %v159
    %v161 = vrot.slane %v135, 7
    %v162 = vrot.slane %v136, 7
    %v163 = vsel %vm157, %v161, %v162
    %v164 = vrot.slane %v137, 7
    %v165 = vrot.slane %v138, 7
    %v166 = vsel %vm157, %v164, %v165
    %v167 = vrot.slane %v139, 7
    %v168 = vrot.slane %v140, 7
    %v169 = vsel %vm157, %v167, %v168
    %v178 = vsel %vm157, %v145, %v158
    %v179 = vsel %vm157, %v146, %v161
    %v180 = vsel %vm157, %v147, %v164
    %v181 = vsel %vm157, %v148, %v167
    %vm182 = vcmask 1046528
    %v183 = vrot.slane %v134, 1
    %v184 = vsel %vm182, %v145, %v183
    %v185 = vrot.slane %v136, 1
    %v186 = vsel %vm182, %v146, %v185
    %v187 = vrot.slane %v138, 1
    %v188 = vsel %vm182, %v147, %v187
    %v189 = vrot.slane %v140, 1
    %v190 = vsel %vm182, %v148, %v189
    %v203 = vsel %vm182, %v183, %v159
    %v204 = vsel %vm182, %v185, %v162
    %v205 = vsel %vm182, %v187, %v165
    %v206 = vsel %vm182, %v189, %v168
    %v207 = vpack.c.bf16 %v160, %v178
    %v208 = vpack.c.bf16 %v163, %v179
    %v209 = vpack.c.bf16 %v166, %v180
    %v210 = vpack.c.bf16 %v169, %v181
    %v211 = vld [vmem:[#allocation2] sm:$0xf]
    %v212 = vld [vmem:[#allocation2 + $0x4] sm:$0xf]
    %v213 = vpack.c.bf16 %v134, %v133
    %v214 = vpack.c.bf16 %v136, %v135
    %v215 = vpack.c.bf16 %v138, %v137
    %v216 = vpack.c.bf16 %v140, %v139
    %s217 = scalar_lea.vmem [#allocation2], 8
    %v218 = vld [vmem:[%s217] sm:$0xf]
    %v219 = vld [vmem:[%s217 + $0x4] sm:$0xf]
    %v222 = vunpack.c.l.b16 %v218
    %v223 = vunpack.c.l.b16 %v219
    %v224 = vpack.c.b16 %v223, %v222
    %vm226 = vcmask 130048
    %v228 = vsel %vm226, %v213, 0
    %v231 = vsel %vm226, %v214, 0
    %v234 = vsel %vm226, %v215, 0
    %v237 = vsel %vm226, %v216, 0
    %239 = vmatpush.bf16.msra.mxu0 0
    %240 = vmatpush.bf16.msra.mxu0 0
    %241 = vmatpush.bf16.msra.mxu0 0
    %242 = vmatpush.bf16.msra.mxu0 0
    %243 = vmatpush.bf16.msra.mxu0 0
    %244 = vmatpush.bf16.msra.mxu0 0
    %245 = vmatpush.bf16.msra.mxu0 0
    %246 = vmatpush.bf16.msra.mxu0 %v224
    %247 = vmatmul.bf16.gmra.mxu0 %v228
    %v248 = vpop.f32.mrf.mxu0
    %v249 = vadd.f32 0.0, %v248
    %v250 = vpop.f32.mrf.mxu0
    %v251 = vadd.f32 0.0, %v250
    %252 = vmatmul.bf16.gmra.mxu0 %v231
    %v253 = vpop.f32.mrf.mxu0
    %v254 = vadd.f32 0.0, %v253
    %v255 = vpop.f32.mrf.mxu0
    %v256 = vadd.f32 0.0, %v255
    %257 = vmatmul.bf16.gmra.mxu0 %v234
    %v258 = vpop.f32.mrf.mxu0
    %v259 = vadd.f32 0.0, %v258
    %v260 = vpop.f32.mrf.mxu0
    %v261 = vadd.f32 0.0, %v260
    %262 = vmatmul.bf16.gmra.mxu0 %v237
    %v263 = vpop.f32.mrf.mxu0
    %v264 = vadd.f32 0.0, %v263
    %v265 = vpop.f32.mrf.mxu0
    %v266 = vadd.f32 0.0, %v265
    %267 = vdwg.mxu0
    %v270 = vunpack.c.l.b16 %v211
    %v271 = vunpack.c.l.b16 %v212
    %v272 = vpack.c.b16 %v271, %v270
    %v275 = vsel %vm226, %v207, 0
    %v278 = vsel %vm226, %v208, 0
    %v281 = vsel %vm226, %v209, 0
    %v284 = vsel %vm226, %v210, 0
    %286 = vmatpush.bf16.msra.mxu0 0
    %287 = vmatpush.bf16.msra.mxu0 0
    %288 = vmatpush.bf16.msra.mxu0 0
    %289 = vmatpush.bf16.msra.mxu0 0
    %290 = vmatpush.bf16.msra.mxu0 0
    %291 = vmatpush.bf16.msra.mxu0 0
    %292 = vmatpush.bf16.msra.mxu0 0
    %293 = vmatpush.bf16.msra.mxu0 %v272
    %294 = vmatmul.bf16.gmra.mxu0 %v275
    %v295 = vpop.f32.mrf.mxu0
    %v296 = vadd.f32 %v249, %v295
    %v297 = vpop.f32.mrf.mxu0
    %v298 = vadd.f32 %v251, %v297
    %299 = vmatmul.bf16.gmra.mxu0 %v278
    %v300 = vpop.f32.mrf.mxu0
    %v301 = vadd.f32 %v254, %v300
    %v302 = vpop.f32.mrf.mxu0
    %v303 = vadd.f32 %v256, %v302
    %304 = vmatmul.bf16.gmra.mxu0 %v281
    %v305 = vpop.f32.mrf.mxu0
    %v306 = vadd.f32 %v259, %v305
    %v307 = vpop.f32.mrf.mxu0
    %v308 = vadd.f32 %v261, %v307
    %309 = vmatmul.bf16.gmra.mxu0 %v284
    %v310 = vpop.f32.mrf.mxu0
    %v311 = vadd.f32 %v264, %v310
    %v312 = vpop.f32.mrf.mxu0
    %v313 = vadd.f32 %v266, %v312
    %314 = vdwg.mxu0
    %v315 = vpack.c.bf16 %v203, %v184
    %v316 = vpack.c.bf16 %v204, %v186
    %v317 = vpack.c.bf16 %v205, %v188
    %v318 = vpack.c.bf16 %v206, %v190
    %s319 = scalar_lea.vmem [#allocation2], 16
    %v320 = vld [vmem:[%s319] sm:$0xf]
    %v321 = vld [vmem:[%s319 + $0x4] sm:$0xf]
    %v324 = vunpack.c.l.b16 %v320
    %v325 = vunpack.c.l.b16 %v321
    %v326 = vpack.c.b16 %v325, %v324
    %v329 = vsel %vm226, %v315, 0
    %v332 = vsel %vm226, %v316, 0
    %v335 = vsel %vm226, %v317, 0
    %v338 = vsel %vm226, %v318, 0
    %340 = vmatpush.bf16.msra.mxu0 0
    %341 = vmatpush.bf16.msra.mxu0 0
    %342 = vmatpush.bf16.msra.mxu0 0
    %343 = vmatpush.bf16.msra.mxu0 0
    %344 = vmatpush.bf16.msra.mxu0 0
    %345 = vmatpush.bf16.msra.mxu0 0
    %346 = vmatpush.bf16.msra.mxu0 0
    %347 = vmatpush.bf16.msra.mxu0 %v326
    %348 = vmatmul.bf16.gmra.mxu0 %v329
    %v349 = vpop.f32.mrf.mxu0
    %v350 = vadd.f32 0.0, %v349
    %v351 = vpop.f32.mrf.mxu0
    %v352 = vadd.f32 0.0, %v351
    %353 = vmatmul.bf16.gmra.mxu0 %v332
    %v354 = vpop.f32.mrf.mxu0
    %v355 = vadd.f32 0.0, %v354
    %v356 = vpop.f32.mrf.mxu0
    %v357 = vadd.f32 0.0, %v356
    %358 = vmatmul.bf16.gmra.mxu0 %v335
    %v359 = vpop.f32.mrf.mxu0
    %v360 = vadd.f32 0.0, %v359
    %v361 = vpop.f32.mrf.mxu0
    %v362 = vadd.f32 0.0, %v361
    %363 = vmatmul.bf16.gmra.mxu0 %v338
    %v364 = vpop.f32.mrf.mxu0
    %v365 = vadd.f32 0.0, %v364
    %v366 = vpop.f32.mrf.mxu0
    %v367 = vadd.f32 0.0, %v366
    %368 = vdwg.mxu0
    %v369 = vadd.f32 %v296, %v350
    %v370 = vadd.f32 %v298, %v352
    %v371 = vadd.f32 %v301, %v355
    %v372 = vadd.f32 %v303, %v357
    %v373 = vadd.f32 %v306, %v360
    %v374 = vadd.f32 %v308, %v362
    %v375 = vadd.f32 %v311, %v365
    %v376 = vadd.f32 %v313, %v367
    %v377 = vld [vmem:[#allocation7] sm:$0x7]
    %v378 = vperm.slane %v377, 0
    %v379 = vadd.f32 %v369, %v378
    %v380 = vadd.f32 %v370, %v378
    %v381 = vadd.f32 %v371, %v378
    %v382 = vadd.f32 %v372, %v378
    %v383 = vadd.f32 %v373, %v378
    %v384 = vadd.f32 %v374, %v378
    %v385 = vadd.f32 %v375, %v378
    %v386 = vadd.f32 %v376, %v378
    %v387 = vmax.f32 %v379, 0.0
    %v388 = vmax.f32 %v380, 0.0
    %v389 = vmax.f32 %v381, 0.0
    %v390 = vmax.f32 %v382, 0.0
    %v391 = vmax.f32 %v383, 0.0
    %v392 = vmax.f32 %v384, 0.0
    %v393 = vmax.f32 %v385, 0.0
    %v394 = vmax.f32 %v386, 0.0
    %v395 = vperm.slane %v377, 1
    %v396 = vmul.f32 %v387, %v395
    %v397 = vmul.f32 %v388, %v395
    %v398 = vmul.f32 %v389, %v395
    %v399 = vmul.f32 %v390, %v395
    %v400 = vmul.f32 %v391, %v395
    %v401 = vmul.f32 %v392, %v395
    %v402 = vmul.f32 %v393, %v395
    %v403 = vmul.f32 %v394, %v395
    %v404 = vperm.slane %v377, 2
    %v405 = vadd.f32 %v396, %v404
    %v406 = vadd.f32 %v397, %v404
    %v407 = vadd.f32 %v398, %v404
    %v408 = vadd.f32 %v399, %v404
    %v409 = vadd.f32 %v400, %v404
    %v410 = vadd.f32 %v401, %v404
    %v411 = vadd.f32 %v402, %v404
    %v412 = vadd.f32 %v403, %v404
    %v417 = vrot.slane %v405, 1
    %v418 = vrot.slane %v407, 1
    %v419 = vrot.slane %v409, 1
    %v420 = vrot.slane %v411, 1
    %v429 = vrot.slane %v405, 7
    %v430 = vrot.slane %v406, 7
    %v431 = vsel %vm157, %v429, %v430
    %v432 = vrot.slane %v407, 7
    %v433 = vrot.slane %v408, 7
    %v434 = vsel %vm157, %v432, %v433
    %v435 = vrot.slane %v409, 7
    %v436 = vrot.slane %v410, 7
    %v437 = vsel %vm157, %v435, %v436
    %v438 = vrot.slane %v411, 7
    %v439 = vrot.slane %v412, 7
    %v440 = vsel %vm157, %v438, %v439
    %v449 = vsel %vm157, %v417, %v429
    %v450 = vsel %vm157, %v418, %v432
    %v451 = vsel %vm157, %v419, %v435
    %v452 = vsel %vm157, %v420, %v438
    %v453 = vrot.slane %v406, 1
    %v454 = vsel %vm182, %v417, %v453
    %v455 = vrot.slane %v408, 1
    %v456 = vsel %vm182, %v418, %v455
    %v457 = vrot.slane %v410, 1
    %v458 = vsel %vm182, %v419, %v457
    %v459 = vrot.slane %v412, 1
    %v460 = vsel %vm182, %v420, %v459
    %v473 = vsel %vm182, %v453, %v430
    %v474 = vsel %vm182, %v455, %v433
    %v475 = vsel %vm182, %v457, %v436
    %v476 = vsel %vm182, %v459, %v439
    %v477 = vpack.c.bf16 %v431, %v449
    %v478 = vpack.c.bf16 %v434, %v450
    %v479 = vpack.c.bf16 %v437, %v451
    %v480 = vpack.c.bf16 %v440, %v452
    %v481 = vld [vmem:[#allocation4] sm:$0xf]
    %v482 = vld [vmem:[#allocation4 + $0x4] sm:$0xf]
    %v483 = vld [vmem:[#allocation4 + $0x8] sm:$0xf]
    %v484 = vld [vmem:[#allocation4 + $0xc] sm:$0xf]
    %v485 = vld [vmem:[#allocation4 + $0x10] sm:$0xf]
    %v486 = vld [vmem:[#allocation4 + $0x14] sm:$0xf]
    %v487 = vld [vmem:[#allocation4 + $0x18] sm:$0xf]
    %v488 = vld [vmem:[#allocation4 + $0x1c] sm:$0xf]
    %v489 = vld [vmem:[#allocation4 + $0x20] sm:$0xf]
    %v490 = vld [vmem:[#allocation4 + $0x24] sm:$0xf]
    %v491 = vld [vmem:[#allocation4 + $0x28] sm:$0xf]
    %v492 = vld [vmem:[#allocation4 + $0x2c] sm:$0xf]
    %v493 = vld [vmem:[#allocation4 + $0x30] sm:$0xf]
    %v494 = vld [vmem:[#allocation4 + $0x34] sm:$0xf]
    %v495 = vld [vmem:[#allocation4 + $0x38] sm:$0xf]
    %v496 = vld [vmem:[#allocation4 + $0x3c] sm:$0xf]
    %v497 = vpack.c.bf16 %v406, %v405
    %v498 = vpack.c.bf16 %v408, %v407
    %v499 = vpack.c.bf16 %v410, %v409
    %v500 = vpack.c.bf16 %v412, %v411
    %s501 = scalar_lea.vmem [#allocation4], 64
    %v502 = vld [vmem:[%s501] sm:$0xf]
    %v503 = vld [vmem:[%s501 + $0x4] sm:$0xf]
    %v504 = vld [vmem:[%s501 + $0x8] sm:$0xf]
    %v505 = vld [vmem:[%s501 + $0xc] sm:$0xf]
    %v506 = vld [vmem:[%s501 + $0x10] sm:$0xf]
    %v507 = vld [vmem:[%s501 + $0x14] sm:$0xf]
    %v508 = vld [vmem:[%s501 + $0x18] sm:$0xf]
    %v509 = vld [vmem:[%s501 + $0x1c] sm:$0xf]
    %v510 = vld [vmem:[%s501 + $0x20] sm:$0xf]
    %v511 = vld [vmem:[%s501 + $0x24] sm:$0xf]
    %v512 = vld [vmem:[%s501 + $0x28] sm:$0xf]
    %v513 = vld [vmem:[%s501 + $0x2c] sm:$0xf]
    %v514 = vld [vmem:[%s501 + $0x30] sm:$0xf]
    %v515 = vld [vmem:[%s501 + $0x34] sm:$0xf]
    %v516 = vld [vmem:[%s501 + $0x38] sm:$0xf]
    %v517 = vld [vmem:[%s501 + $0x3c] sm:$0xf]
    %v534 = vunpack.c.l.b16 %v502
    %v535 = vunpack.c.l.b16 %v503
    %v536 = vunpack.c.l.b16 %v504
    %v537 = vunpack.c.l.b16 %v505
    %v538 = vunpack.c.l.b16 %v506
    %v539 = vunpack.c.l.b16 %v507
    %v540 = vunpack.c.l.b16 %v508
    %v541 = vunpack.c.l.b16 %v509
    %v542 = vunpack.c.l.b16 %v510
    %v543 = vunpack.c.l.b16 %v511
    %v544 = vunpack.c.l.b16 %v512
    %v545 = vunpack.c.l.b16 %v513
    %v546 = vunpack.c.l.b16 %v514
    %v547 = vunpack.c.l.b16 %v515
    %v548 = vunpack.c.l.b16 %v516
    %v549 = vunpack.c.l.b16 %v517
    %v550 = vpack.c.b16 %v535, %v534
    %v551 = vpack.c.b16 %v537, %v536
    %v552 = vpack.c.b16 %v539, %v538
    %v553 = vpack.c.b16 %v541, %v540
    %v554 = vpack.c.b16 %v543, %v542
    %v555 = vpack.c.b16 %v545, %v544
    %v556 = vpack.c.b16 %v547, %v546
    %v557 = vpack.c.b16 %v549, %v548
    %566 = vmatpush.bf16.msra.mxu0 %v557
    %567 = vmatpush.bf16.msra.mxu0 %v556
    %568 = vmatpush.bf16.msra.mxu0 %v555
    %569 = vmatpush.bf16.msra.mxu0 %v554
    %570 = vmatpush.bf16.msra.mxu0 %v553
    %571 = vmatpush.bf16.msra.mxu0 %v552
    %572 = vmatpush.bf16.msra.mxu0 %v551
    %573 = vmatpush.bf16.msra.mxu0 %v550
    %574 = vmatmul.bf16.gmra.mxu0 %v497
    %v575 = vpop.f32.mrf.mxu0
    %v576 = vadd.f32 0.0, %v575
    %v577 = vpop.f32.mrf.mxu0
    %v578 = vadd.f32 0.0, %v577
    %579 = vmatmul.bf16.gmra.mxu0 %v498
    %v580 = vpop.f32.mrf.mxu0
    %v581 = vadd.f32 0.0, %v580
    %v582 = vpop.f32.mrf.mxu0
    %v583 = vadd.f32 0.0, %v582
    %584 = vmatmul.bf16.gmra.mxu0 %v499
    %v585 = vpop.f32.mrf.mxu0
    %v586 = vadd.f32 0.0, %v585
    %v587 = vpop.f32.mrf.mxu0
    %v588 = vadd.f32 0.0, %v587
    %589 = vmatmul.bf16.gmra.mxu0 %v500
    %v590 = vpop.f32.mrf.mxu0
    %v591 = vadd.f32 0.0, %v590
    %v592 = vpop.f32.mrf.mxu0
    %v593 = vadd.f32 0.0, %v592
    %594 = vdwg.mxu0
    %v611 = vunpack.c.l.b16 %v481
    %v612 = vunpack.c.l.b16 %v482
    %v613 = vunpack.c.l.b16 %v483
    %v614 = vunpack.c.l.b16 %v484
    %v615 = vunpack.c.l.b16 %v485
    %v616 = vunpack.c.l.b16 %v486
    %v617 = vunpack.c.l.b16 %v487
    %v618 = vunpack.c.l.b16 %v488
    %v619 = vunpack.c.l.b16 %v489
    %v620 = vunpack.c.l.b16 %v490
    %v621 = vunpack.c.l.b16 %v491
    %v622 = vunpack.c.l.b16 %v492
    %v623 = vunpack.c.l.b16 %v493
    %v624 = vunpack.c.l.b16 %v494
    %v625 = vunpack.c.l.b16 %v495
    %v626 = vunpack.c.l.b16 %v496
    %v627 = vpack.c.b16 %v612, %v611
    %v628 = vpack.c.b16 %v614, %v613
    %v629 = vpack.c.b16 %v616, %v615
    %v630 = vpack.c.b16 %v618, %v617
    %v631 = vpack.c.b16 %v620, %v619
    %v632 = vpack.c.b16 %v622, %v621
    %v633 = vpack.c.b16 %v624, %v623
    %v634 = vpack.c.b16 %v626, %v625
    %643 = vmatpush.bf16.msra.mxu0 %v634
    %644 = vmatpush.bf16.msra.mxu0 %v633
    %645 = vmatpush.bf16.msra.mxu0 %v632
    %646 = vmatpush.bf16.msra.mxu0 %v631
    %647 = vmatpush.bf16.msra.mxu0 %v630
    %648 = vmatpush.bf16.msra.mxu0 %v629
    %649 = vmatpush.bf16.msra.mxu0 %v628
    %650 = vmatpush.bf16.msra.mxu0 %v627
    %651 = vmatmul.bf16.gmra.mxu0 %v477
    %v652 = vpop.f32.mrf.mxu0
    %v653 = vadd.f32 %v576, %v652
    %v654 = vpop.f32.mrf.mxu0
    %v655 = vadd.f32 %v578, %v654
    %656 = vmatmul.bf16.gmra.mxu0 %v478
    %v657 = vpop.f32.mrf.mxu0
    %v658 = vadd.f32 %v581, %v657
    %v659 = vpop.f32.mrf.mxu0
    %v660 = vadd.f32 %v583, %v659
    %661 = vmatmul.bf16.gmra.mxu0 %v479
    %v662 = vpop.f32.mrf.mxu0
    %v663 = vadd.f32 %v586, %v662
    %v664 = vpop.f32.mrf.mxu0
    %v665 = vadd.f32 %v588, %v664
    %666 = vmatmul.bf16.gmra.mxu0 %v480
    %v667 = vpop.f32.mrf.mxu0
    %v668 = vadd.f32 %v591, %v667
    %v669 = vpop.f32.mrf.mxu0
    %v670 = vadd.f32 %v593, %v669
    %671 = vdwg.mxu0
    %v672 = vpack.c.bf16 %v473, %v454
    %v673 = vpack.c.bf16 %v474, %v456
    %v674 = vpack.c.bf16 %v475, %v458
    %v675 = vpack.c.bf16 %v476, %v460
    %s676 = scalar_lea.vmem [#allocation4], 128
    %v677 = vld [vmem:[%s676] sm:$0xf]
    %v678 = vld [vmem:[%s676 + $0x4] sm:$0xf]
    %v679 = vld [vmem:[%s676 + $0x8] sm:$0xf]
    %v680 = vld [vmem:[%s676 + $0xc] sm:$0xf]
    %v681 = vld [vmem:[%s676 + $0x10] sm:$0xf]
    %v682 = vld [vmem:[%s676 + $0x14] sm:$0xf]
    %v683 = vld [vmem:[%s676 + $0x18] sm:$0xf]
    %v684 = vld [vmem:[%s676 + $0x1c] sm:$0xf]
    %v685 = vld [vmem:[%s676 + $0x20] sm:$0xf]
    %v686 = vld [vmem:[%s676 + $0x24] sm:$0xf]
    %v687 = vld [vmem:[%s676 + $0x28] sm:$0xf]
    %v688 = vld [vmem:[%s676 + $0x2c] sm:$0xf]
    %v689 = vld [vmem:[%s676 + $0x30] sm:$0xf]
    %v690 = vld [vmem:[%s676 + $0x34] sm:$0xf]
    %v691 = vld [vmem:[%s676 + $0x38] sm:$0xf]
    %v692 = vld [vmem:[%s676 + $0x3c] sm:$0xf]
    %v709 = vunpack.c.l.b16 %v677
    %v710 = vunpack.c.l.b16 %v678
    %v711 = vunpack.c.l.b16 %v679
    %v712 = vunpack.c.l.b16 %v680
    %v713 = vunpack.c.l.b16 %v681
    %v714 = vunpack.c.l.b16 %v682
    %v715 = vunpack.c.l.b16 %v683
    %v716 = vunpack.c.l.b16 %v684
    %v717 = vunpack.c.l.b16 %v685
    %v718 = vunpack.c.l.b16 %v686
    %v719 = vunpack.c.l.b16 %v687
    %v720 = vunpack.c.l.b16 %v688
    %v721 = vunpack.c.l.b16 %v689
    %v722 = vunpack.c.l.b16 %v690
    %v723 = vunpack.c.l.b16 %v691
    %v724 = vunpack.c.l.b16 %v692
    %v725 = vpack.c.b16 %v710, %v709
    %v726 = vpack.c.b16 %v712, %v711
    %v727 = vpack.c.b16 %v714, %v713
    %v728 = vpack.c.b16 %v716, %v715
    %v729 = vpack.c.b16 %v718, %v717
    %v730 = vpack.c.b16 %v720, %v719
    %v731 = vpack.c.b16 %v722, %v721
    %v732 = vpack.c.b16 %v724, %v723
    %741 = vmatpush.bf16.msra.mxu0 %v732
    %742 = vmatpush.bf16.msra.mxu0 %v731
    %743 = vmatpush.bf16.msra.mxu0 %v730
    %744 = vmatpush.bf16.msra.mxu0 %v729
    %745 = vmatpush.bf16.msra.mxu0 %v728
    %746 = vmatpush.bf16.msra.mxu0 %v727
    %747 = vmatpush.bf16.msra.mxu0 %v726
    %748 = vmatpush.bf16.msra.mxu0 %v725
    %749 = vmatmul.bf16.gmra.mxu0 %v672
    %v750 = vpop.f32.mrf.mxu0
    %v751 = vadd.f32 0.0, %v750
    %v752 = vpop.f32.mrf.mxu0
    %v753 = vadd.f32 0.0, %v752
    %754 = vmatmul.bf16.gmra.mxu0 %v673
    %v755 = vpop.f32.mrf.mxu0
    %v756 = vadd.f32 0.0, %v755
    %v757 = vpop.f32.mrf.mxu0
    %v758 = vadd.f32 0.0, %v757
    %759 = vmatmul.bf16.gmra.mxu0 %v674
    %v760 = vpop.f32.mrf.mxu0
    %v761 = vadd.f32 0.0, %v760
    %v762 = vpop.f32.mrf.mxu0
    %v763 = vadd.f32 0.0, %v762
    %764 = vmatmul.bf16.gmra.mxu0 %v675
    %v765 = vpop.f32.mrf.mxu0
    %v766 = vadd.f32 0.0, %v765
    %v767 = vpop.f32.mrf.mxu0
    %v768 = vadd.f32 0.0, %v767
    %769 = vdwg.mxu0
    %v770 = vadd.f32 %v653, %v751
    %v771 = vadd.f32 %v655, %v753
    %v772 = vadd.f32 %v658, %v756
    %v773 = vadd.f32 %v660, %v758
    %v774 = vadd.f32 %v663, %v761
    %v775 = vadd.f32 %v665, %v763
    %v776 = vadd.f32 %v668, %v766
    %v777 = vadd.f32 %v670, %v768
    %s778 = scalar_lea.vmem [#allocation7], 4
    %v779 = vld [vmem:[%s778] sm:$0x7]
    %v780 = vperm.slane %v779, 0
    %v781 = vadd.f32 %v770, %v780
    %v782 = vadd.f32 %v771, %v780
    %v783 = vadd.f32 %v772, %v780
    %v784 = vadd.f32 %v773, %v780
    %v785 = vadd.f32 %v774, %v780
    %v786 = vadd.f32 %v775, %v780
    %v787 = vadd.f32 %v776, %v780
    %v788 = vadd.f32 %v777, %v780
    %v789 = vmax.f32 %v781, 0.0
    %v790 = vmax.f32 %v782, 0.0
    %v791 = vmax.f32 %v783, 0.0
    %v792 = vmax.f32 %v784, 0.0
    %v793 = vmax.f32 %v785, 0.0
    %v794 = vmax.f32 %v786, 0.0
    %v795 = vmax.f32 %v787, 0.0
    %v796 = vmax.f32 %v788, 0.0
    %v797 = vperm.slane %v779, 1
    %v798 = vmul.f32 %v789, %v797
    %v799 = vmul.f32 %v790, %v797
    %v800 = vmul.f32 %v791, %v797
    %v801 = vmul.f32 %v792, %v797
    %v802 = vmul.f32 %v793, %v797
    %v803 = vmul.f32 %v794, %v797
    %v804 = vmul.f32 %v795, %v797
    %v805 = vmul.f32 %v796, %v797
    %v806 = vperm.slane %v779, 2
    %v807 = vadd.f32 %v798, %v806
    %v808 = vadd.f32 %v799, %v806
    %v809 = vadd.f32 %v800, %v806
    %v810 = vadd.f32 %v801, %v806
    %v811 = vadd.f32 %v802, %v806
    %v812 = vadd.f32 %v803, %v806
    %v813 = vadd.f32 %v804, %v806
    %v814 = vadd.f32 %v805, %v806
    %v819 = vrot.slane %v807, 1
    %v820 = vrot.slane %v809, 1
    %v821 = vrot.slane %v811, 1
    %v822 = vrot.slane %v813, 1
    %v831 = vrot.slane %v807, 7
    %v832 = vrot.slane %v808, 7
    %v833 = vsel %vm157, %v831, %v832
    %v834 = vrot.slane %v809, 7
    %v835 = vrot.slane %v810, 7
    %v836 = vsel %vm157, %v834, %v835
    %v837 = vrot.slane %v811, 7
    %v838 = vrot.slane %v812, 7
    %v839 = vsel %vm157, %v837, %v838
    %v840 = vrot.slane %v813, 7
    %v841 = vrot.slane %v814, 7
    %v842 = vsel %vm157, %v840, %v841
    %v851 = vsel %vm157, %v819, %v831
    %v852 = vsel %vm157, %v820, %v834
    %v853 = vsel %vm157, %v821, %v837
    %v854 = vsel %vm157, %v822, %v840
    %v855 = vrot.slane %v808, 1
    %v856 = vsel %vm182, %v819, %v855
    %v857 = vrot.slane %v810, 1
    %v858 = vsel %vm182, %v820, %v857
    %v859 = vrot.slane %v812, 1
    %v860 = vsel %vm182, %v821, %v859
    %v861 = vrot.slane %v814, 1
    %v862 = vsel %vm182, %v822, %v861
    %v875 = vsel %vm182, %v855, %v832
    %v876 = vsel %vm182, %v857, %v835
    %v877 = vsel %vm182, %v859, %v838
    %v878 = vsel %vm182, %v861, %v841
    %v879 = vpack.c.bf16 %v833, %v851
    %v880 = vpack.c.bf16 %v836, %v852
    %v881 = vpack.c.bf16 %v839, %v853
    %v882 = vpack.c.bf16 %v842, %v854
    %v883 = vld [vmem:[#allocation6] sm:$0xf]
    %v884 = vld [vmem:[#allocation6 + $0x4] sm:$0xf]
    %v885 = vld [vmem:[#allocation6 + $0x8] sm:$0xf]
    %v886 = vld [vmem:[#allocation6 + $0xc] sm:$0xf]
    %v887 = vld [vmem:[#allocation6 + $0x10] sm:$0xf]
    %v888 = vld [vmem:[#allocation6 + $0x14] sm:$0xf]
    %v889 = vld [vmem:[#allocation6 + $0x18] sm:$0xf]
    %v890 = vld [vmem:[#allocation6 + $0x1c] sm:$0xf]
    %v891 = vld [vmem:[#allocation6 + $0x20] sm:$0xf]
    %v892 = vld [vmem:[#allocation6 + $0x24] sm:$0xf]
    %v893 = vld [vmem:[#allocation6 + $0x28] sm:$0xf]
    %v894 = vld [vmem:[#allocation6 + $0x2c] sm:$0xf]
    %v895 = vld [vmem:[#allocation6 + $0x30] sm:$0xf]
    %v896 = vld [vmem:[#allocation6 + $0x34] sm:$0xf]
    %v897 = vld [vmem:[#allocation6 + $0x38] sm:$0xf]
    %v898 = vld [vmem:[#allocation6 + $0x3c] sm:$0xf]
    %v899 = vpack.c.bf16 %v808, %v807
    %v900 = vpack.c.bf16 %v810, %v809
    %v901 = vpack.c.bf16 %v812, %v811
    %v902 = vpack.c.bf16 %v814, %v813
    %s903 = scalar_lea.vmem [#allocation6], 64
    %v904 = vld [vmem:[%s903] sm:$0xf]
    %v905 = vld [vmem:[%s903 + $0x4] sm:$0xf]
    %v906 = vld [vmem:[%s903 + $0x8] sm:$0xf]
    %v907 = vld [vmem:[%s903 + $0xc] sm:$0xf]
    %v908 = vld [vmem:[%s903 + $0x10] sm:$0xf]
    %v909 = vld [vmem:[%s903 + $0x14] sm:$0xf]
    %v910 = vld [vmem:[%s903 + $0x18] sm:$0xf]
    %v911 = vld [vmem:[%s903 + $0x1c] sm:$0xf]
    %v912 = vld [vmem:[%s903 + $0x20] sm:$0xf]
    %v913 = vld [vmem:[%s903 + $0x24] sm:$0xf]
    %v914 = vld [vmem:[%s903 + $0x28] sm:$0xf]
    %v915 = vld [vmem:[%s903 + $0x2c] sm:$0xf]
    %v916 = vld [vmem:[%s903 + $0x30] sm:$0xf]
    %v917 = vld [vmem:[%s903 + $0x34] sm:$0xf]
    %v918 = vld [vmem:[%s903 + $0x38] sm:$0xf]
    %v919 = vld [vmem:[%s903 + $0x3c] sm:$0xf]
    %v936 = vunpack.c.l.b16 %v904
    %v937 = vunpack.c.l.b16 %v905
    %v938 = vunpack.c.l.b16 %v906
    %v939 = vunpack.c.l.b16 %v907
    %v940 = vunpack.c.l.b16 %v908
    %v941 = vunpack.c.l.b16 %v909
    %v942 = vunpack.c.l.b16 %v910
    %v943 = vunpack.c.l.b16 %v911
    %v944 = vunpack.c.l.b16 %v912
    %v945 = vunpack.c.l.b16 %v913
    %v946 = vunpack.c.l.b16 %v914
    %v947 = vunpack.c.l.b16 %v915
    %v948 = vunpack.c.l.b16 %v916
    %v949 = vunpack.c.l.b16 %v917
    %v950 = vunpack.c.l.b16 %v918
    %v951 = vunpack.c.l.b16 %v919
    %v952 = vpack.c.b16 %v937, %v936
    %v953 = vpack.c.b16 %v939, %v938
    %v954 = vpack.c.b16 %v941, %v940
    %v955 = vpack.c.b16 %v943, %v942
    %v956 = vpack.c.b16 %v945, %v944
    %v957 = vpack.c.b16 %v947, %v946
    %v958 = vpack.c.b16 %v949, %v948
    %v959 = vpack.c.b16 %v951, %v950
    %968 = vmatpush.bf16.msra.mxu0 %v959
    %969 = vmatpush.bf16.msra.mxu0 %v958
    %970 = vmatpush.bf16.msra.mxu0 %v957
    %971 = vmatpush.bf16.msra.mxu0 %v956
    %972 = vmatpush.bf16.msra.mxu0 %v955
    %973 = vmatpush.bf16.msra.mxu0 %v954
    %974 = vmatpush.bf16.msra.mxu0 %v953
    %975 = vmatpush.bf16.msra.mxu0 %v952
    %976 = vmatmul.bf16.gmra.mxu0 %v899
    %v977 = vpop.f32.mrf.mxu0
    %v978 = vadd.f32 0.0, %v977
    %v979 = vpop.f32.mrf.mxu0
    %v980 = vadd.f32 0.0, %v979
    %981 = vmatmul.bf16.gmra.mxu0 %v900
    %v982 = vpop.f32.mrf.mxu0
    %v983 = vadd.f32 0.0, %v982
    %v984 = vpop.f32.mrf.mxu0
    %v985 = vadd.f32 0.0, %v984
    %986 = vmatmul.bf16.gmra.mxu0 %v901
    %v987 = vpop.f32.mrf.mxu0
    %v988 = vadd.f32 0.0, %v987
    %v989 = vpop.f32.mrf.mxu0
    %v990 = vadd.f32 0.0, %v989
    %991 = vmatmul.bf16.gmra.mxu0 %v902
    %v992 = vpop.f32.mrf.mxu0
    %v993 = vadd.f32 0.0, %v992
    %v994 = vpop.f32.mrf.mxu0
    %v995 = vadd.f32 0.0, %v994
    %996 = vdwg.mxu0
    %v1013 = vunpack.c.l.b16 %v883
    %v1014 = vunpack.c.l.b16 %v884
    %v1015 = vunpack.c.l.b16 %v885
    %v1016 = vunpack.c.l.b16 %v886
    %v1017 = vunpack.c.l.b16 %v887
    %v1018 = vunpack.c.l.b16 %v888
    %v1019 = vunpack.c.l.b16 %v889
    %v1020 = vunpack.c.l.b16 %v890
    %v1021 = vunpack.c.l.b16 %v891
    %v1022 = vunpack.c.l.b16 %v892
    %v1023 = vunpack.c.l.b16 %v893
    %v1024 = vunpack.c.l.b16 %v894
    %v1025 = vunpack.c.l.b16 %v895
    %v1026 = vunpack.c.l.b16 %v896
    %v1027 = vunpack.c.l.b16 %v897
    %v1028 = vunpack.c.l.b16 %v898
    %v1029 = vpack.c.b16 %v1014, %v1013
    %v1030 = vpack.c.b16 %v1016, %v1015
    %v1031 = vpack.c.b16 %v1018, %v1017
    %v1032 = vpack.c.b16 %v1020, %v1019
    %v1033 = vpack.c.b16 %v1022, %v1021
    %v1034 = vpack.c.b16 %v1024, %v1023
    %v1035 = vpack.c.b16 %v1026, %v1025
    %v1036 = vpack.c.b16 %v1028, %v1027
    %1045 = vmatpush.bf16.msra.mxu0 %v1036
    %1046 = vmatpush.bf16.msra.mxu0 %v1035
    %1047 = vmatpush.bf16.msra.mxu0 %v1034
    %1048 = vmatpush.bf16.msra.mxu0 %v1033
    %1049 = vmatpush.bf16.msra.mxu0 %v1032
    %1050 = vmatpush.bf16.msra.mxu0 %v1031
    %1051 = vmatpush.bf16.msra.mxu0 %v1030
    %1052 = vmatpush.bf16.msra.mxu0 %v1029
    %1053 = vmatmul.bf16.gmra.mxu0 %v879
    %v1054 = vpop.f32.mrf.mxu0
    %v1055 = vadd.f32 %v978, %v1054
    %v1056 = vpop.f32.mrf.mxu0
    %v1057 = vadd.f32 %v980, %v1056
    %1058 = vmatmul.bf16.gmra.mxu0 %v880
    %v1059 = vpop.f32.mrf.mxu0
    %v1060 = vadd.f32 %v983, %v1059
    %v1061 = vpop.f32.mrf.mxu0
    %v1062 = vadd.f32 %v985, %v1061
    %1063 = vmatmul.bf16.gmra.mxu0 %v881
    %v1064 = vpop.f32.mrf.mxu0
    %v1065 = vadd.f32 %v988, %v1064
    %v1066 = vpop.f32.mrf.mxu0
    %v1067 = vadd.f32 %v990, %v1066
    %1068 = vmatmul.bf16.gmra.mxu0 %v882
    %v1069 = vpop.f32.mrf.mxu0
    %v1070 = vadd.f32 %v993, %v1069
    %v1071 = vpop.f32.mrf.mxu0
    %v1072 = vadd.f32 %v995, %v1071
    %1073 = vdwg.mxu0
    %v1074 = vpack.c.bf16 %v875, %v856
    %v1075 = vpack.c.bf16 %v876, %v858
    %v1076 = vpack.c.bf16 %v877, %v860
    %v1077 = vpack.c.bf16 %v878, %v862
    %s1078 = scalar_lea.vmem [#allocation6], 128
    %v1079 = vld [vmem:[%s1078] sm:$0xf]
    %v1080 = vld [vmem:[%s1078 + $0x4] sm:$0xf]
    %v1081 = vld [vmem:[%s1078 + $0x8] sm:$0xf]
    %v1082 = vld [vmem:[%s1078 + $0xc] sm:$0xf]
    %v1083 = vld [vmem:[%s1078 + $0x10] sm:$0xf]
    %v1084 = vld [vmem:[%s1078 + $0x14] sm:$0xf]
    %v1085 = vld [vmem:[%s1078 + $0x18] sm:$0xf]
    %v1086 = vld [vmem:[%s1078 + $0x1c] sm:$0xf]
    %v1087 = vld [vmem:[%s1078 + $0x20] sm:$0xf]
    %v1088 = vld [vmem:[%s1078 + $0x24] sm:$0xf]
    %v1089 = vld [vmem:[%s1078 + $0x28] sm:$0xf]
    %v1090 = vld [vmem:[%s1078 + $0x2c] sm:$0xf]
    %v1091 = vld [vmem:[%s1078 + $0x30] sm:$0xf]
    %v1092 = vld [vmem:[%s1078 + $0x34] sm:$0xf]
    %v1093 = vld [vmem:[%s1078 + $0x38] sm:$0xf]
    %v1094 = vld [vmem:[%s1078 + $0x3c] sm:$0xf]
    %v1111 = vunpack.c.l.b16 %v1079
    %v1112 = vunpack.c.l.b16 %v1080
    %v1113 = vunpack.c.l.b16 %v1081
    %v1114 = vunpack.c.l.b16 %v1082
    %v1115 = vunpack.c.l.b16 %v1083
    %v1116 = vunpack.c.l.b16 %v1084
    %v1117 = vunpack.c.l.b16 %v1085
    %v1118 = vunpack.c.l.b16 %v1086
    %v1119 = vunpack.c.l.b16 %v1087
    %v1120 = vunpack.c.l.b16 %v1088
    %v1121 = vunpack.c.l.b16 %v1089
    %v1122 = vunpack.c.l.b16 %v1090
    %v1123 = vunpack.c.l.b16 %v1091
    %v1124 = vunpack.c.l.b16 %v1092
    %v1125 = vunpack.c.l.b16 %v1093
    %v1126 = vunpack.c.l.b16 %v1094
    %v1127 = vpack.c.b16 %v1112, %v1111
    %v1128 = vpack.c.b16 %v1114, %v1113
    %v1129 = vpack.c.b16 %v1116, %v1115
    %v1130 = vpack.c.b16 %v1118, %v1117
    %v1131 = vpack.c.b16 %v1120, %v1119
    %v1132 = vpack.c.b16 %v1122, %v1121
    %v1133 = vpack.c.b16 %v1124, %v1123
    %v1134 = vpack.c.b16 %v1126, %v1125
    %1143 = vmatpush.bf16.msra.mxu0 %v1134
    %1144 = vmatpush.bf16.msra.mxu0 %v1133
    %1145 = vmatpush.bf16.msra.mxu0 %v1132
    %1146 = vmatpush.bf16.msra.mxu0 %v1131
    %1147 = vmatpush.bf16.msra.mxu0 %v1130
    %1148 = vmatpush.bf16.msra.mxu0 %v1129
    %1149 = vmatpush.bf16.msra.mxu0 %v1128
    %1150 = vmatpush.bf16.msra.mxu0 %v1127
    %1151 = vmatmul.bf16.gmra.mxu0 %v1074
    %v1152 = vpop.f32.mrf.mxu0
    %v1153 = vadd.f32 0.0, %v1152
    %v1154 = vpop.f32.mrf.mxu0
    %v1155 = vadd.f32 0.0, %v1154
    %1156 = vmatmul.bf16.gmra.mxu0 %v1075
    %v1157 = vpop.f32.mrf.mxu0
    %v1158 = vadd.f32 0.0, %v1157
    %v1159 = vpop.f32.mrf.mxu0
    %v1160 = vadd.f32 0.0, %v1159
    %1161 = vmatmul.bf16.gmra.mxu0 %v1076
    %v1162 = vpop.f32.mrf.mxu0
    %v1163 = vadd.f32 0.0, %v1162
    %v1164 = vpop.f32.mrf.mxu0
    %v1165 = vadd.f32 0.0, %v1164
    %1166 = vmatmul.bf16.gmra.mxu0 %v1077
    %v1167 = vpop.f32.mrf.mxu0
    %v1168 = vadd.f32 0.0, %v1167
    %v1169 = vpop.f32.mrf.mxu0
    %v1170 = vadd.f32 0.0, %v1169
    %1171 = vdwg.mxu0
    %v1172 = vadd.f32 %v1055, %v1153
    %v1173 = vadd.f32 %v1057, %v1155
    %v1174 = vadd.f32 %v1060, %v1158
    %v1175 = vadd.f32 %v1062, %v1160
    %v1176 = vadd.f32 %v1065, %v1163
    %v1177 = vadd.f32 %v1067, %v1165
    %v1178 = vadd.f32 %v1070, %v1168
    %v1179 = vadd.f32 %v1072, %v1170
    %s1180 = scalar_lea.vmem [#allocation7], 8
    %v1181 = vld [vmem:[%s1180] sm:$0x7]
    %v1182 = vperm.slane %v1181, 0
    %v1183 = vadd.f32 %v1172, %v1182
    %v1184 = vadd.f32 %v1173, %v1182
    %v1185 = vadd.f32 %v1174, %v1182
    %v1186 = vadd.f32 %v1175, %v1182
    %v1187 = vadd.f32 %v1176, %v1182
    %v1188 = vadd.f32 %v1177, %v1182
    %v1189 = vadd.f32 %v1178, %v1182
    %v1190 = vadd.f32 %v1179, %v1182
    %v1191 = vmax.f32 %v1183, 0.0
    %v1192 = vmax.f32 %v1184, 0.0
    %v1193 = vmax.f32 %v1185, 0.0
    %v1194 = vmax.f32 %v1186, 0.0
    %v1195 = vmax.f32 %v1187, 0.0
    %v1196 = vmax.f32 %v1188, 0.0
    %v1197 = vmax.f32 %v1189, 0.0
    %v1198 = vmax.f32 %v1190, 0.0
    %v1199 = vperm.slane %v1181, 1
    %v1200 = vmul.f32 %v1191, %v1199
    %v1201 = vmul.f32 %v1192, %v1199
    %v1202 = vmul.f32 %v1193, %v1199
    %v1203 = vmul.f32 %v1194, %v1199
    %v1204 = vmul.f32 %v1195, %v1199
    %v1205 = vmul.f32 %v1196, %v1199
    %v1206 = vmul.f32 %v1197, %v1199
    %v1207 = vmul.f32 %v1198, %v1199
    %v1208 = vperm.slane %v1181, 2
    %v1209 = vadd.f32 %v1200, %v1208
    %v1210 = vadd.f32 %v1201, %v1208
    %v1211 = vadd.f32 %v1202, %v1208
    %v1212 = vadd.f32 %v1203, %v1208
    %v1213 = vadd.f32 %v1204, %v1208
    %v1214 = vadd.f32 %v1205, %v1208
    %v1215 = vadd.f32 %v1206, %v1208
    %v1216 = vadd.f32 %v1207, %v1208
    %v1217 = vpack.c.bf16 %v1209, %v1209
    %v1218 = vpack.c.bf16 %v1211, %v1211
    %v1219 = vpack.c.bf16 %v1213, %v1213
    %v1220 = vpack.c.bf16 %v1215, %v1215
    %v1221 = vld [vmem:[#allocation9] sm:$0xff]
    %v1222 = vld [vmem:[#allocation9 + $0x8] sm:$0xff]
    %v1223 = vld [vmem:[#allocation9 + $0x10] sm:$0xff]
    %v1224 = vld [vmem:[#allocation9 + $0x18] sm:$0xff]
    %v1225 = vld [vmem:[#allocation9 + $0x20] sm:$0xff]
    %v1226 = vld [vmem:[#allocation9 + $0x28] sm:$0xff]
    %v1227 = vld [vmem:[#allocation9 + $0x30] sm:$0xff]
    %v1228 = vld [vmem:[#allocation9 + $0x38] sm:$0xff]
    %v1229 = vld [vmem:[#allocation9 + $0x40] sm:$0xff]
    %v1230 = vld [vmem:[#allocation9 + $0x48] sm:$0xff]
    %v1231 = vld [vmem:[#allocation9 + $0x50] sm:$0xff]
    %v1232 = vld [vmem:[#allocation9 + $0x58] sm:$0xff]
    %v1233 = vld [vmem:[#allocation9 + $0x60] sm:$0xff]
    %v1234 = vld [vmem:[#allocation9 + $0x68] sm:$0xff]
    %v1235 = vld [vmem:[#allocation9 + $0x70] sm:$0xff]
    %v1236 = vld [vmem:[#allocation9 + $0x78] sm:$0xff]
    %s1237 = scalar_lea.vmem [#allocation9], 128
    %v1238 = vld [vmem:[%s1237] sm:$0xff]
    %v1239 = vld [vmem:[%s1237 + $0x8] sm:$0xff]
    %v1240 = vld [vmem:[%s1237 + $0x10] sm:$0xff]
    %v1241 = vld [vmem:[%s1237 + $0x18] sm:$0xff]
    %v1242 = vld [vmem:[%s1237 + $0x20] sm:$0xff]
    %v1243 = vld [vmem:[%s1237 + $0x28] sm:$0xff]
    %v1244 = vld [vmem:[%s1237 + $0x30] sm:$0xff]
    %v1245 = vld [vmem:[%s1237 + $0x38] sm:$0xff]
    %v1246 = vld [vmem:[%s1237 + $0x40] sm:$0xff]
    %v1247 = vld [vmem:[%s1237 + $0x48] sm:$0xff]
    %v1248 = vld [vmem:[%s1237 + $0x50] sm:$0xff]
    %v1249 = vld [vmem:[%s1237 + $0x58] sm:$0xff]
    %v1250 = vld [vmem:[%s1237 + $0x60] sm:$0xff]
    %v1251 = vld [vmem:[%s1237 + $0x68] sm:$0xff]
    %v1252 = vld [vmem:[%s1237 + $0x70] sm:$0xff]
    %v1253 = vld [vmem:[%s1237 + $0x78] sm:$0xff]
    %v1258 = vunpack.c.l.b16 %v1217
    %v1259 = vunpack.c.l.b16 %v1218
    %v1260 = vunpack.c.l.b16 %v1219
    %v1261 = vunpack.c.l.b16 %v1220
    %v1262 = vrot.slane %v1258, 1
    %vm1263 = vcmask 1041409
    %v1264 = vsel %vm1263, %v1259, %v1262
    %v1265 = vrot.slane %v1260, 7
    %vm1266 = vcmask 1042434
    %v1267 = vsel %vm1266, %v1265, %v1264
    %v1268 = vrot.slane %v1261, 6
    %vm1269 = vcmask 1043459
    %v1270 = vsel %vm1269, %v1268, %v1267
    %v1271 = vpack.c.b16 %v1270, %v1270
    %v1289 = vunpack.c.l.b16 %v1238
    %v1290 = vunpack.c.h.b16 %v1238
    %v1291 = vunpack.c.l.b16 %v1239
    %v1292 = vunpack.c.h.b16 %v1239
    %v1293 = vunpack.c.l.b16 %v1240
    %v1294 = vunpack.c.h.b16 %v1240
    %v1295 = vunpack.c.l.b16 %v1241
    %v1296 = vunpack.c.h.b16 %v1241
    %v1297 = vunpack.c.l.b16 %v1242
    %v1298 = vunpack.c.h.b16 %v1242
    %v1299 = vunpack.c.l.b16 %v1243
    %v1300 = vunpack.c.h.b16 %v1243
    %v1301 = vunpack.c.l.b16 %v1244
    %v1302 = vunpack.c.h.b16 %v1244
    %v1303 = vunpack.c.l.b16 %v1245
    %v1304 = vunpack.c.h.b16 %v1245
    %v1305 = vunpack.c.l.b16 %v1246
    %v1306 = vunpack.c.h.b16 %v1246
    %v1307 = vunpack.c.l.b16 %v1247
    %v1308 = vunpack.c.h.b16 %v1247
    %v1309 = vunpack.c.l.b16 %v1248
    %v1310 = vunpack.c.h.b16 %v1248
    %v1311 = vunpack.c.l.b16 %v1249
    %v1312 = vunpack.c.h.b16 %v1249
    %v1313 = vunpack.c.l.b16 %v1250
    %v1314 = vunpack.c.h.b16 %v1250
    %v1315 = vunpack.c.l.b16 %v1251
    %v1316 = vunpack.c.h.b16 %v1251
    %v1317 = vunpack.c.l.b16 %v1252
    %v1318 = vunpack.c.h.b16 %v1252
    %v1319 = vunpack.c.l.b16 %v1253
    %v1320 = vunpack.c.h.b16 %v1253
    %v1321 = vpack.c.b16 %v1291, %v1289
    %v1322 = vpack.c.b16 %v1292, %v1290
    %v1323 = vpack.c.b16 %v1295, %v1293
    %v1324 = vpack.c.b16 %v1296, %v1294
    %v1325 = vpack.c.b16 %v1299, %v1297
    %v1326 = vpack.c.b16 %v1300, %v1298
    %v1327 = vpack.c.b16 %v1303, %v1301
    %v1328 = vpack.c.b16 %v1304, %v1302
    %v1329 = vpack.c.b16 %v1307, %v1305
    %v1330 = vpack.c.b16 %v1308, %v1306
    %v1331 = vpack.c.b16 %v1311, %v1309
    %v1332 = vpack.c.b16 %v1312, %v1310
    %v1333 = vpack.c.b16 %v1315, %v1313
    %v1334 = vpack.c.b16 %v1316, %v1314
    %v1335 = vpack.c.b16 %v1319, %v1317
    %v1336 = vpack.c.b16 %v1320, %v1318
    %1353 = vmatpush.bf16.msra.mxu0 %v1335
    %1354 = vmatpush.bf16.msra.mxu0 %v1333
    %1355 = vmatpush.bf16.msra.mxu0 %v1331
    %1356 = vmatpush.bf16.msra.mxu0 %v1329
    %1357 = vmatpush.bf16.msra.mxu0 %v1327
    %1358 = vmatpush.bf16.msra.mxu0 %v1325
    %1359 = vmatpush.bf16.msra.mxu0 %v1323
    %1360 = vmatpush.bf16.msra.mxu0 %v1321
    %1361 = vmatmul.bf16.gmra.mxu0 %v1271
    %v1362 = vpop.f32.mrf.mxu0
    %v1363 = vadd.f32 0.0, %v1362
    %v1364 = vpop.f32.mrf.mxu0
    %1365 = vdwg.mxu0
    %1366 = vmatpush.bf16.msra.mxu0 %v1336
    %1367 = vmatpush.bf16.msra.mxu0 %v1334
    %1368 = vmatpush.bf16.msra.mxu0 %v1332
    %1369 = vmatpush.bf16.msra.mxu0 %v1330
    %1370 = vmatpush.bf16.msra.mxu0 %v1328
    %1371 = vmatpush.bf16.msra.mxu0 %v1326
    %1372 = vmatpush.bf16.msra.mxu0 %v1324
    %1373 = vmatpush.bf16.msra.mxu0 %v1322
    %1374 = vmatmul.bf16.gmra.mxu0 %v1271
    %v1375 = vpop.f32.mrf.mxu0
    %v1376 = vadd.f32 0.0, %v1375
    %v1377 = vpop.f32.mrf.mxu0
    %1378 = vdwg.mxu0
    %v1379 = vrot.slane %v1259, 7
    %v1380 = vsel %vm1263, %v1379, %v1258
    %v1381 = vrot.slane %v1260, 6
    %v1382 = vsel %vm1266, %v1381, %v1380
    %v1383 = vrot.slane %v1261, 5
    %v1384 = vsel %vm1269, %v1383, %v1382
    %v1385 = vpack.c.b16 %v1384, %v1384
    %v1403 = vunpack.c.l.b16 %v1221
    %v1404 = vunpack.c.h.b16 %v1221
    %v1405 = vunpack.c.l.b16 %v1222
    %v1406 = vunpack.c.h.b16 %v1222
    %v1407 = vunpack.c.l.b16 %v1223
    %v1408 = vunpack.c.h.b16 %v1223
    %v1409 = vunpack.c.l.b16 %v1224
    %v1410 = vunpack.c.h.b16 %v1224
    %v1411 = vunpack.c.l.b16 %v1225
    %v1412 = vunpack.c.h.b16 %v1225
    %v1413 = vunpack.c.l.b16 %v1226
    %v1414 = vunpack.c.h.b16 %v1226
    %v1415 = vunpack.c.l.b16 %v1227
    %v1416 = vunpack.c.h.b16 %v1227
    %v1417 = vunpack.c.l.b16 %v1228
    %v1418 = vunpack.c.h.b16 %v1228
    %v1419 = vunpack.c.l.b16 %v1229
    %v1420 = vunpack.c.h.b16 %v1229
    %v1421 = vunpack.c.l.b16 %v1230
    %v1422 = vunpack.c.h.b16 %v1230
    %v1423 = vunpack.c.l.b16 %v1231
    %v1424 = vunpack.c.h.b16 %v1231
    %v1425 = vunpack.c.l.b16 %v1232
    %v1426 = vunpack.c.h.b16 %v1232
    %v1427 = vunpack.c.l.b16 %v1233
    %v1428 = vunpack.c.h.b16 %v1233
    %v1429 = vunpack.c.l.b16 %v1234
    %v1430 = vunpack.c.h.b16 %v1234
    %v1431 = vunpack.c.l.b16 %v1235
    %v1432 = vunpack.c.h.b16 %v1235
    %v1433 = vunpack.c.l.b16 %v1236
    %v1434 = vunpack.c.h.b16 %v1236
    %v1435 = vpack.c.b16 %v1405, %v1403
    %v1436 = vpack.c.b16 %v1406, %v1404
    %v1437 = vpack.c.b16 %v1409, %v1407
    %v1438 = vpack.c.b16 %v1410, %v1408
    %v1439 = vpack.c.b16 %v1413, %v1411
    %v1440 = vpack.c.b16 %v1414, %v1412
    %v1441 = vpack.c.b16 %v1417, %v1415
    %v1442 = vpack.c.b16 %v1418, %v1416
    %v1443 = vpack.c.b16 %v1421, %v1419
    %v1444 = vpack.c.b16 %v1422, %v1420
    %v1445 = vpack.c.b16 %v1425, %v1423
    %v1446 = vpack.c.b16 %v1426, %v1424
    %v1447 = vpack.c.b16 %v1429, %v1427
    %v1448 = vpack.c.b16 %v1430, %v1428
    %v1449 = vpack.c.b16 %v1433, %v1431
    %v1450 = vpack.c.b16 %v1434, %v1432
    %1467 = vmatpush.bf16.msra.mxu0 %v1449
    %1468 = vmatpush.bf16.msra.mxu0 %v1447
    %1469 = vmatpush.bf16.msra.mxu0 %v1445
    %1470 = vmatpush.bf16.msra.mxu0 %v1443
    %1471 = vmatpush.bf16.msra.mxu0 %v1441
    %1472 = vmatpush.bf16.msra.mxu0 %v1439
    %1473 = vmatpush.bf16.msra.mxu0 %v1437
    %1474 = vmatpush.bf16.msra.mxu0 %v1435
    %1475 = vmatmul.bf16.gmra.mxu0 %v1385
    %v1476 = vpop.f32.mrf.mxu0
    %v1477 = vadd.f32 %v1363, %v1476
    %v1478 = vpop.f32.mrf.mxu0
    %1479 = vdwg.mxu0
    %1480 = vmatpush.bf16.msra.mxu0 %v1450
    %1481 = vmatpush.bf16.msra.mxu0 %v1448
    %1482 = vmatpush.bf16.msra.mxu0 %v1446
    %1483 = vmatpush.bf16.msra.mxu0 %v1444
    %1484 = vmatpush.bf16.msra.mxu0 %v1442
    %1485 = vmatpush.bf16.msra.mxu0 %v1440
    %1486 = vmatpush.bf16.msra.mxu0 %v1438
    %1487 = vmatpush.bf16.msra.mxu0 %v1436
    %1488 = vmatmul.bf16.gmra.mxu0 %v1385
    %v1489 = vpop.f32.mrf.mxu0
    %v1490 = vadd.f32 %v1376, %v1489
    %v1491 = vpop.f32.mrf.mxu0
    %1492 = vdwg.mxu0
    %s1493 = scalar_lea.vmem [#allocation9], 256
    %v1494 = vld [vmem:[%s1493] sm:$0xff]
    %v1495 = vld [vmem:[%s1493 + $0x8] sm:$0xff]
    %v1496 = vld [vmem:[%s1493 + $0x10] sm:$0xff]
    %v1497 = vld [vmem:[%s1493 + $0x18] sm:$0xff]
    %v1498 = vld [vmem:[%s1493 + $0x20] sm:$0xff]
    %v1499 = vld [vmem:[%s1493 + $0x28] sm:$0xff]
    %v1500 = vld [vmem:[%s1493 + $0x30] sm:$0xff]
    %v1501 = vld [vmem:[%s1493 + $0x38] sm:$0xff]
    %v1502 = vld [vmem:[%s1493 + $0x40] sm:$0xff]
    %v1503 = vld [vmem:[%s1493 + $0x48] sm:$0xff]
    %v1504 = vld [vmem:[%s1493 + $0x50] sm:$0xff]
    %v1505 = vld [vmem:[%s1493 + $0x58] sm:$0xff]
    %v1506 = vld [vmem:[%s1493 + $0x60] sm:$0xff]
    %v1507 = vld [vmem:[%s1493 + $0x68] sm:$0xff]
    %v1508 = vld [vmem:[%s1493 + $0x70] sm:$0xff]
    %v1509 = vld [vmem:[%s1493 + $0x78] sm:$0xff]
    %v1510 = vrot.slane %v1258, 2
    %v1511 = vrot.slane %v1259, 1
    %v1512 = vsel %vm1263, %v1511, %v1510
    %v1513 = vsel %vm1266, %v1260, %v1512
    %v1514 = vrot.slane %v1261, 7
    %v1515 = vsel %vm1269, %v1514, %v1513
    %v1516 = vpack.c.b16 %v1515, %v1515
    %v1534 = vunpack.c.l.b16 %v1494
    %v1535 = vunpack.c.h.b16 %v1494
    %v1536 = vunpack.c.l.b16 %v1495
    %v1537 = vunpack.c.h.b16 %v1495
    %v1538 = vunpack.c.l.b16 %v1496
    %v1539 = vunpack.c.h.b16 %v1496
    %v1540 = vunpack.c.l.b16 %v1497
    %v1541 = vunpack.c.h.b16 %v1497
    %v1542 = vunpack.c.l.b16 %v1498
    %v1543 = vunpack.c.h.b16 %v1498
    %v1544 = vunpack.c.l.b16 %v1499
    %v1545 = vunpack.c.h.b16 %v1499
    %v1546 = vunpack.c.l.b16 %v1500
    %v1547 = vunpack.c.h.b16 %v1500
    %v1548 = vunpack.c.l.b16 %v1501
    %v1549 = vunpack.c.h.b16 %v1501
    %v1550 = vunpack.c.l.b16 %v1502
    %v1551 = vunpack.c.h.b16 %v1502
    %v1552 = vunpack.c.l.b16 %v1503
    %v1553 = vunpack.c.h.b16 %v1503
    %v1554 = vunpack.c.l.b16 %v1504
    %v1555 = vunpack.c.h.b16 %v1504
    %v1556 = vunpack.c.l.b16 %v1505
    %v1557 = vunpack.c.h.b16 %v1505
    %v1558 = vunpack.c.l.b16 %v1506
    %v1559 = vunpack.c.h.b16 %v1506
    %v1560 = vunpack.c.l.b16 %v1507
    %v1561 = vunpack.c.h.b16 %v1507
    %v1562 = vunpack.c.l.b16 %v1508
    %v1563 = vunpack.c.h.b16 %v1508
    %v1564 = vunpack.c.l.b16 %v1509
    %v1565 = vunpack.c.h.b16 %v1509
    %v1566 = vpack.c.b16 %v1536, %v1534
    %v1567 = vpack.c.b16 %v1537, %v1535
    %v1568 = vpack.c.b16 %v1540, %v1538
    %v1569 = vpack.c.b16 %v1541, %v1539
    %v1570 = vpack.c.b16 %v1544, %v1542
    %v1571 = vpack.c.b16 %v1545, %v1543
    %v1572 = vpack.c.b16 %v1548, %v1546
    %v1573 = vpack.c.b16 %v1549, %v1547
    %v1574 = vpack.c.b16 %v1552, %v1550
    %v1575 = vpack.c.b16 %v1553, %v1551
    %v1576 = vpack.c.b16 %v1556, %v1554
    %v1577 = vpack.c.b16 %v1557, %v1555
    %v1578 = vpack.c.b16 %v1560, %v1558
    %v1579 = vpack.c.b16 %v1561, %v1559
    %v1580 = vpack.c.b16 %v1564, %v1562
    %v1581 = vpack.c.b16 %v1565, %v1563
    %1598 = vmatpush.bf16.msra.mxu0 %v1580
    %1599 = vmatpush.bf16.msra.mxu0 %v1578
    %1600 = vmatpush.bf16.msra.mxu0 %v1576
    %1601 = vmatpush.bf16.msra.mxu0 %v1574
    %1602 = vmatpush.bf16.msra.mxu0 %v1572
    %1603 = vmatpush.bf16.msra.mxu0 %v1570
    %1604 = vmatpush.bf16.msra.mxu0 %v1568
    %1605 = vmatpush.bf16.msra.mxu0 %v1566
    %1606 = vmatmul.bf16.gmra.mxu0 %v1516
    %v1607 = vpop.f32.mrf.mxu0
    %v1608 = vadd.f32 0.0, %v1607
    %v1609 = vpop.f32.mrf.mxu0
    %1610 = vdwg.mxu0
    %1611 = vmatpush.bf16.msra.mxu0 %v1581
    %1612 = vmatpush.bf16.msra.mxu0 %v1579
    %1613 = vmatpush.bf16.msra.mxu0 %v1577
    %1614 = vmatpush.bf16.msra.mxu0 %v1575
    %1615 = vmatpush.bf16.msra.mxu0 %v1573
    %1616 = vmatpush.bf16.msra.mxu0 %v1571
    %1617 = vmatpush.bf16.msra.mxu0 %v1569
    %1618 = vmatpush.bf16.msra.mxu0 %v1567
    %1619 = vmatmul.bf16.gmra.mxu0 %v1516
    %v1620 = vpop.f32.mrf.mxu0
    %v1621 = vadd.f32 0.0, %v1620
    %v1622 = vpop.f32.mrf.mxu0
    %1623 = vdwg.mxu0
    %v1624 = vadd.f32 %v1477, %v1608
    %v1625 = vadd.f32 %v1490, %v1621
    %s1626 = scalar_lea.vmem [#allocation9], 384
    %v1627 = vld [vmem:[%s1626] sm:$0xff]
    %v1628 = vld [vmem:[%s1626 + $0x8] sm:$0xff]
    %v1629 = vld [vmem:[%s1626 + $0x10] sm:$0xff]
    %v1630 = vld [vmem:[%s1626 + $0x18] sm:$0xff]
    %v1631 = vld [vmem:[%s1626 + $0x20] sm:$0xff]
    %v1632 = vld [vmem:[%s1626 + $0x28] sm:$0xff]
    %v1633 = vld [vmem:[%s1626 + $0x30] sm:$0xff]
    %v1634 = vld [vmem:[%s1626 + $0x38] sm:$0xff]
    %v1635 = vld [vmem:[%s1626 + $0x40] sm:$0xff]
    %v1636 = vld [vmem:[%s1626 + $0x48] sm:$0xff]
    %v1637 = vld [vmem:[%s1626 + $0x50] sm:$0xff]
    %v1638 = vld [vmem:[%s1626 + $0x58] sm:$0xff]
    %v1639 = vld [vmem:[%s1626 + $0x60] sm:$0xff]
    %v1640 = vld [vmem:[%s1626 + $0x68] sm:$0xff]
    %v1641 = vld [vmem:[%s1626 + $0x70] sm:$0xff]
    %v1642 = vld [vmem:[%s1626 + $0x78] sm:$0xff]
    %v1643 = vrot.slane %v1258, 3
    %v1644 = vrot.slane %v1259, 2
    %v1645 = vsel %vm1263, %v1644, %v1643
    %v1646 = vrot.slane %v1260, 1
    %v1647 = vsel %vm1266, %v1646, %v1645
    %v1648 = vsel %vm1269, %v1261, %v1647
    %v1649 = vpack.c.b16 %v1648, %v1648
    %v1667 = vunpack.c.l.b16 %v1627
    %v1668 = vunpack.c.h.b16 %v1627
    %v1669 = vunpack.c.l.b16 %v1628
    %v1670 = vunpack.c.h.b16 %v1628
    %v1671 = vunpack.c.l.b16 %v1629
    %v1672 = vunpack.c.h.b16 %v1629
    %v1673 = vunpack.c.l.b16 %v1630
    %v1674 = vunpack.c.h.b16 %v1630
    %v1675 = vunpack.c.l.b16 %v1631
    %v1676 = vunpack.c.h.b16 %v1631
    %v1677 = vunpack.c.l.b16 %v1632
    %v1678 = vunpack.c.h.b16 %v1632
    %v1679 = vunpack.c.l.b16 %v1633
    %v1680 = vunpack.c.h.b16 %v1633
    %v1681 = vunpack.c.l.b16 %v1634
    %v1682 = vunpack.c.h.b16 %v1634
    %v1683 = vunpack.c.l.b16 %v1635
    %v1684 = vunpack.c.h.b16 %v1635
    %v1685 = vunpack.c.l.b16 %v1636
    %v1686 = vunpack.c.h.b16 %v1636
    %v1687 = vunpack.c.l.b16 %v1637
    %v1688 = vunpack.c.h.b16 %v1637
    %v1689 = vunpack.c.l.b16 %v1638
    %v1690 = vunpack.c.h.b16 %v1638
    %v1691 = vunpack.c.l.b16 %v1639
    %v1692 = vunpack.c.h.b16 %v1639
    %v1693 = vunpack.c.l.b16 %v1640
    %v1694 = vunpack.c.h.b16 %v1640
    %v1695 = vunpack.c.l.b16 %v1641
    %v1696 = vunpack.c.h.b16 %v1641
    %v1697 = vunpack.c.l.b16 %v1642
    %v1698 = vunpack.c.h.b16 %v1642
    %v1699 = vpack.c.b16 %v1669, %v1667
    %v1700 = vpack.c.b16 %v1670, %v1668
    %v1701 = vpack.c.b16 %v1673, %v1671
    %v1702 = vpack.c.b16 %v1674, %v1672
    %v1703 = vpack.c.b16 %v1677, %v1675
    %v1704 = vpack.c.b16 %v1678, %v1676
    %v1705 = vpack.c.b16 %v1681, %v1679
    %v1706 = vpack.c.b16 %v1682, %v1680
    %v1707 = vpack.c.b16 %v1685, %v1683
    %v1708 = vpack.c.b16 %v1686, %v1684
    %v1709 = vpack.c.b16 %v1689, %v1687
    %v1710 = vpack.c.b16 %v1690, %v1688
    %v1711 = vpack.c.b16 %v1693, %v1691
    %v1712 = vpack.c.b16 %v1694, %v1692
    %v1713 = vpack.c.b16 %v1697, %v1695
    %v1714 = vpack.c.b16 %v1698, %v1696
    %1731 = vmatpush.bf16.msra.mxu0 %v1713
    %1732 = vmatpush.bf16.msra.mxu0 %v1711
    %1733 = vmatpush.bf16.msra.mxu0 %v1709
    %1734 = vmatpush.bf16.msra.mxu0 %v1707
    %1735 = vmatpush.bf16.msra.mxu0 %v1705
    %1736 = vmatpush.bf16.msra.mxu0 %v1703
    %1737 = vmatpush.bf16.msra.mxu0 %v1701
    %1738 = vmatpush.bf16.msra.mxu0 %v1699
    %1739 = vmatmul.bf16.gmra.mxu0 %v1649
    %v1740 = vpop.f32.mrf.mxu0
    %v1741 = vadd.f32 0.0, %v1740
    %v1742 = vpop.f32.mrf.mxu0
    %1743 = vdwg.mxu0
    %1744 = vmatpush.bf16.msra.mxu0 %v1714
    %1745 = vmatpush.bf16.msra.mxu0 %v1712
    %1746 = vmatpush.bf16.msra.mxu0 %v1710
    %1747 = vmatpush.bf16.msra.mxu0 %v1708
    %1748 = vmatpush.bf16.msra.mxu0 %v1706
    %1749 = vmatpush.bf16.msra.mxu0 %v1704
    %1750 = vmatpush.bf16.msra.mxu0 %v1702
    %1751 = vmatpush.bf16.msra.mxu0 %v1700
    %1752 = vmatmul.bf16.gmra.mxu0 %v1649
    %v1753 = vpop.f32.mrf.mxu0
    %v1754 = vadd.f32 0.0, %v1753
    %v1755 = vpop.f32.mrf.mxu0
    %1756 = vdwg.mxu0
    %v1757 = vadd.f32 %v1624, %v1741
    %v1758 = vadd.f32 %v1625, %v1754
    %s1759 = scalar_lea.vmem [#allocation9], 512
    %v1760 = vld [vmem:[%s1759] sm:$0xff]
    %v1761 = vld [vmem:[%s1759 + $0x8] sm:$0xff]
    %v1762 = vld [vmem:[%s1759 + $0x10] sm:$0xff]
    %v1763 = vld [vmem:[%s1759 + $0x18] sm:$0xff]
    %v1764 = vld [vmem:[%s1759 + $0x20] sm:$0xff]
    %v1765 = vld [vmem:[%s1759 + $0x28] sm:$0xff]
    %v1766 = vld [vmem:[%s1759 + $0x30] sm:$0xff]
    %v1767 = vld [vmem:[%s1759 + $0x38] sm:$0xff]
    %v1768 = vld [vmem:[%s1759 + $0x40] sm:$0xff]
    %v1769 = vld [vmem:[%s1759 + $0x48] sm:$0xff]
    %v1770 = vld [vmem:[%s1759 + $0x50] sm:$0xff]
    %v1771 = vld [vmem:[%s1759 + $0x58] sm:$0xff]
    %v1772 = vld [vmem:[%s1759 + $0x60] sm:$0xff]
    %v1773 = vld [vmem:[%s1759 + $0x68] sm:$0xff]
    %v1774 = vld [vmem:[%s1759 + $0x70] sm:$0xff]
    %v1775 = vld [vmem:[%s1759 + $0x78] sm:$0xff]
    %v1776 = vrot.slane %v1258, 4
    %v1777 = vrot.slane %v1259, 3
    %v1778 = vsel %vm1263, %v1777, %v1776
    %v1779 = vrot.slane %v1260, 2
    %v1780 = vsel %vm1266, %v1779, %v1778
    %v1781 = vrot.slane %v1261, 1
    %v1782 = vsel %vm1269, %v1781, %v1780
    %v1783 = vpack.c.b16 %v1782, %v1782
    %v1801 = vunpack.c.l.b16 %v1760
    %v1802 = vunpack.c.h.b16 %v1760
    %v1803 = vunpack.c.l.b16 %v1761
    %v1804 = vunpack.c.h.b16 %v1761
    %v1805 = vunpack.c.l.b16 %v1762
    %v1806 = vunpack.c.h.b16 %v1762
    %v1807 = vunpack.c.l.b16 %v1763
    %v1808 = vunpack.c.h.b16 %v1763
    %v1809 = vunpack.c.l.b16 %v1764
    %v1810 = vunpack.c.h.b16 %v1764
    %v1811 = vunpack.c.l.b16 %v1765
    %v1812 = vunpack.c.h.b16 %v1765
    %v1813 = vunpack.c.l.b16 %v1766
    %v1814 = vunpack.c.h.b16 %v1766
    %v1815 = vunpack.c.l.b16 %v1767
    %v1816 = vunpack.c.h.b16 %v1767
    %v1817 = vunpack.c.l.b16 %v1768
    %v1818 = vunpack.c.h.b16 %v1768
    %v1819 = vunpack.c.l.b16 %v1769
    %v1820 = vunpack.c.h.b16 %v1769
    %v1821 = vunpack.c.l.b16 %v1770
    %v1822 = vunpack.c.h.b16 %v1770
    %v1823 = vunpack.c.l.b16 %v1771
    %v1824 = vunpack.c.h.b16 %v1771
    %v1825 = vunpack.c.l.b16 %v1772
    %v1826 = vunpack.c.h.b16 %v1772
    %v1827 = vunpack.c.l.b16 %v1773
    %v1828 = vunpack.c.h.b16 %v1773
    %v1829 = vunpack.c.l.b16 %v1774
    %v1830 = vunpack.c.h.b16 %v1774
    %v1831 = vunpack.c.l.b16 %v1775
    %v1832 = vunpack.c.h.b16 %v1775
    %v1833 = vpack.c.b16 %v1803, %v1801
    %v1834 = vpack.c.b16 %v1804, %v1802
    %v1835 = vpack.c.b16 %v1807, %v1805
    %v1836 = vpack.c.b16 %v1808, %v1806
    %v1837 = vpack.c.b16 %v1811, %v1809
    %v1838 = vpack.c.b16 %v1812, %v1810
    %v1839 = vpack.c.b16 %v1815, %v1813
    %v1840 = vpack.c.b16 %v1816, %v1814
    %v1841 = vpack.c.b16 %v1819, %v1817
    %v1842 = vpack.c.b16 %v1820, %v1818
    %v1843 = vpack.c.b16 %v1823, %v1821
    %v1844 = vpack.c.b16 %v1824, %v1822
    %v1845 = vpack.c.b16 %v1827, %v1825
    %v1846 = vpack.c.b16 %v1828, %v1826
    %v1847 = vpack.c.b16 %v1831, %v1829
    %v1848 = vpack.c.b16 %v1832, %v1830
    %1865 = vmatpush.bf16.msra.mxu0 %v1847
    %1866 = vmatpush.bf16.msra.mxu0 %v1845
    %1867 = vmatpush.bf16.msra.mxu0 %v1843
    %1868 = vmatpush.bf16.msra.mxu0 %v1841
    %1869 = vmatpush.bf16.msra.mxu0 %v1839
    %1870 = vmatpush.bf16.msra.mxu0 %v1837
    %1871 = vmatpush.bf16.msra.mxu0 %v1835
    %1872 = vmatpush.bf16.msra.mxu0 %v1833
    %1873 = vmatmul.bf16.gmra.mxu0 %v1783
    %v1874 = vpop.f32.mrf.mxu0
    %v1875 = vadd.f32 0.0, %v1874
    %v1876 = vpop.f32.mrf.mxu0
    %1877 = vdwg.mxu0
    %1878 = vmatpush.bf16.msra.mxu0 %v1848
    %1879 = vmatpush.bf16.msra.mxu0 %v1846
    %1880 = vmatpush.bf16.msra.mxu0 %v1844
    %1881 = vmatpush.bf16.msra.mxu0 %v1842
    %1882 = vmatpush.bf16.msra.mxu0 %v1840
    %1883 = vmatpush.bf16.msra.mxu0 %v1838
    %1884 = vmatpush.bf16.msra.mxu0 %v1836
    %1885 = vmatpush.bf16.msra.mxu0 %v1834
    %1886 = vmatmul.bf16.gmra.mxu0 %v1783
    %v1887 = vpop.f32.mrf.mxu0
    %v1888 = vadd.f32 0.0, %v1887
    %v1889 = vpop.f32.mrf.mxu0
    %1890 = vdwg.mxu0
    %v1891 = vadd.f32 %v1757, %v1875
    %v1892 = vadd.f32 %v1758, %v1888
    %s1893 = scalar_lea.vmem [#allocation9], 640
    %v1894 = vld [vmem:[%s1893] sm:$0xff]
    %v1895 = vld [vmem:[%s1893 + $0x8] sm:$0xff]
    %v1896 = vld [vmem:[%s1893 + $0x10] sm:$0xff]
    %v1897 = vld [vmem:[%s1893 + $0x18] sm:$0xff]
    %v1898 = vld [vmem:[%s1893 + $0x20] sm:$0xff]
    %v1899 = vld [vmem:[%s1893 + $0x28] sm:$0xff]
    %v1900 = vld [vmem:[%s1893 + $0x30] sm:$0xff]
    %v1901 = vld [vmem:[%s1893 + $0x38] sm:$0xff]
    %v1902 = vld [vmem:[%s1893 + $0x40] sm:$0xff]
    %v1903 = vld [vmem:[%s1893 + $0x48] sm:$0xff]
    %v1904 = vld [vmem:[%s1893 + $0x50] sm:$0xff]
    %v1905 = vld [vmem:[%s1893 + $0x58] sm:$0xff]
    %v1906 = vld [vmem:[%s1893 + $0x60] sm:$0xff]
    %v1907 = vld [vmem:[%s1893 + $0x68] sm:$0xff]
    %v1908 = vld [vmem:[%s1893 + $0x70] sm:$0xff]
    %v1909 = vld [vmem:[%s1893 + $0x78] sm:$0xff]
    %v1910 = vrot.slane %v1258, 5
    %v1911 = vrot.slane %v1259, 4
    %v1912 = vsel %vm1263, %v1911, %v1910
    %v1913 = vrot.slane %v1260, 3
    %v1914 = vsel %vm1266, %v1913, %v1912
    %v1915 = vrot.slane %v1261, 2
    %v1916 = vsel %vm1269, %v1915, %v1914
    %v1917 = vpack.c.b16 %v1916, %v1916
    %v1935 = vunpack.c.l.b16 %v1894
    %v1936 = vunpack.c.h.b16 %v1894
    %v1937 = vunpack.c.l.b16 %v1895
    %v1938 = vunpack.c.h.b16 %v1895
    %v1939 = vunpack.c.l.b16 %v1896
    %v1940 = vunpack.c.h.b16 %v1896
    %v1941 = vunpack.c.l.b16 %v1897
    %v1942 = vunpack.c.h.b16 %v1897
    %v1943 = vunpack.c.l.b16 %v1898
    %v1944 = vunpack.c.h.b16 %v1898
    %v1945 = vunpack.c.l.b16 %v1899
    %v1946 = vunpack.c.h.b16 %v1899
    %v1947 = vunpack.c.l.b16 %v1900
    %v1948 = vunpack.c.h.b16 %v1900
    %v1949 = vunpack.c.l.b16 %v1901
    %v1950 = vunpack.c.h.b16 %v1901
    %v1951 = vunpack.c.l.b16 %v1902
    %v1952 = vunpack.c.h.b16 %v1902
    %v1953 = vunpack.c.l.b16 %v1903
    %v1954 = vunpack.c.h.b16 %v1903
    %v1955 = vunpack.c.l.b16 %v1904
    %v1956 = vunpack.c.h.b16 %v1904
    %v1957 = vunpack.c.l.b16 %v1905
    %v1958 = vunpack.c.h.b16 %v1905
    %v1959 = vunpack.c.l.b16 %v1906
    %v1960 = vunpack.c.h.b16 %v1906
    %v1961 = vunpack.c.l.b16 %v1907
    %v1962 = vunpack.c.h.b16 %v1907
    %v1963 = vunpack.c.l.b16 %v1908
    %v1964 = vunpack.c.h.b16 %v1908
    %v1965 = vunpack.c.l.b16 %v1909
    %v1966 = vunpack.c.h.b16 %v1909
    %v1967 = vpack.c.b16 %v1937, %v1935
    %v1968 = vpack.c.b16 %v1938, %v1936
    %v1969 = vpack.c.b16 %v1941, %v1939
    %v1970 = vpack.c.b16 %v1942, %v1940
    %v1971 = vpack.c.b16 %v1945, %v1943
    %v1972 = vpack.c.b16 %v1946, %v1944
    %v1973 = vpack.c.b16 %v1949, %v1947
    %v1974 = vpack.c.b16 %v1950, %v1948
    %v1975 = vpack.c.b16 %v1953, %v1951
    %v1976 = vpack.c.b16 %v1954, %v1952
    %v1977 = vpack.c.b16 %v1957, %v1955
    %v1978 = vpack.c.b16 %v1958, %v1956
    %v1979 = vpack.c.b16 %v1961, %v1959
    %v1980 = vpack.c.b16 %v1962, %v1960
    %v1981 = vpack.c.b16 %v1965, %v1963
    %v1982 = vpack.c.b16 %v1966, %v1964
    %1999 = vmatpush.bf16.msra.mxu0 %v1981
    %2000 = vmatpush.bf16.msra.mxu0 %v1979
    %2001 = vmatpush.bf16.msra.mxu0 %v1977
    %2002 = vmatpush.bf16.msra.mxu0 %v1975
    %2003 = vmatpush.bf16.msra.mxu0 %v1973
    %2004 = vmatpush.bf16.msra.mxu0 %v1971
    %2005 = vmatpush.bf16.msra.mxu0 %v1969
    %2006 = vmatpush.bf16.msra.mxu0 %v1967
    %2007 = vmatmul.bf16.gmra.mxu0 %v1917
    %v2008 = vpop.f32.mrf.mxu0
    %v2009 = vadd.f32 0.0, %v2008
    %v2010 = vpop.f32.mrf.mxu0
    %2011 = vdwg.mxu0
    %2012 = vmatpush.bf16.msra.mxu0 %v1982
    %2013 = vmatpush.bf16.msra.mxu0 %v1980
    %2014 = vmatpush.bf16.msra.mxu0 %v1978
    %2015 = vmatpush.bf16.msra.mxu0 %v1976
    %2016 = vmatpush.bf16.msra.mxu0 %v1974
    %2017 = vmatpush.bf16.msra.mxu0 %v1972
    %2018 = vmatpush.bf16.msra.mxu0 %v1970
    %2019 = vmatpush.bf16.msra.mxu0 %v1968
    %2020 = vmatmul.bf16.gmra.mxu0 %v1917
    %v2021 = vpop.f32.mrf.mxu0
    %v2022 = vadd.f32 0.0, %v2021
    %v2023 = vpop.f32.mrf.mxu0
    %2024 = vdwg.mxu0
    %v2025 = vadd.f32 %v1891, %v2009
    %v2026 = vadd.f32 %v1892, %v2022
    %s2027 = scalar_lea.vmem [#allocation9], 768
    %v2028 = vld [vmem:[%s2027] sm:$0xff]
    %v2029 = vld [vmem:[%s2027 + $0x8] sm:$0xff]
    %v2030 = vld [vmem:[%s2027 + $0x10] sm:$0xff]
    %v2031 = vld [vmem:[%s2027 + $0x18] sm:$0xff]
    %v2032 = vld [vmem:[%s2027 + $0x20] sm:$0xff]
    %v2033 = vld [vmem:[%s2027 + $0x28] sm:$0xff]
    %v2034 = vld [vmem:[%s2027 + $0x30] sm:$0xff]
    %v2035 = vld [vmem:[%s2027 + $0x38] sm:$0xff]
    %v2036 = vld [vmem:[%s2027 + $0x40] sm:$0xff]
    %v2037 = vld [vmem:[%s2027 + $0x48] sm:$0xff]
    %v2038 = vld [vmem:[%s2027 + $0x50] sm:$0xff]
    %v2039 = vld [vmem:[%s2027 + $0x58] sm:$0xff]
    %v2040 = vld [vmem:[%s2027 + $0x60] sm:$0xff]
    %v2041 = vld [vmem:[%s2027 + $0x68] sm:$0xff]
    %v2042 = vld [vmem:[%s2027 + $0x70] sm:$0xff]
    %v2043 = vld [vmem:[%s2027 + $0x78] sm:$0xff]
    %v2044 = vrot.slane %v1258, 6
    %v2045 = vrot.slane %v1259, 5
    %v2046 = vsel %vm1263, %v2045, %v2044
    %v2047 = vrot.slane %v1260, 4
    %v2048 = vsel %vm1266, %v2047, %v2046
    %v2049 = vrot.slane %v1261, 3
    %v2050 = vsel %vm1269, %v2049, %v2048
    %v2051 = vpack.c.b16 %v2050, %v2050
    %v2069 = vunpack.c.l.b16 %v2028
    %v2070 = vunpack.c.h.b16 %v2028
    %v2071 = vunpack.c.l.b16 %v2029
    %v2072 = vunpack.c.h.b16 %v2029
    %v2073 = vunpack.c.l.b16 %v2030
    %v2074 = vunpack.c.h.b16 %v2030
    %v2075 = vunpack.c.l.b16 %v2031
    %v2076 = vunpack.c.h.b16 %v2031
    %v2077 = vunpack.c.l.b16 %v2032
    %v2078 = vunpack.c.h.b16 %v2032
    %v2079 = vunpack.c.l.b16 %v2033
    %v2080 = vunpack.c.h.b16 %v2033
    %v2081 = vunpack.c.l.b16 %v2034
    %v2082 = vunpack.c.h.b16 %v2034
    %v2083 = vunpack.c.l.b16 %v2035
    %v2084 = vunpack.c.h.b16 %v2035
    %v2085 = vunpack.c.l.b16 %v2036
    %v2086 = vunpack.c.h.b16 %v2036
    %v2087 = vunpack.c.l.b16 %v2037
    %v2088 = vunpack.c.h.b16 %v2037
    %v2089 = vunpack.c.l.b16 %v2038
    %v2090 = vunpack.c.h.b16 %v2038
    %v2091 = vunpack.c.l.b16 %v2039
    %v2092 = vunpack.c.h.b16 %v2039
    %v2093 = vunpack.c.l.b16 %v2040
    %v2094 = vunpack.c.h.b16 %v2040
    %v2095 = vunpack.c.l.b16 %v2041
    %v2096 = vunpack.c.h.b16 %v2041
    %v2097 = vunpack.c.l.b16 %v2042
    %v2098 = vunpack.c.h.b16 %v2042
    %v2099 = vunpack.c.l.b16 %v2043
    %v2100 = vunpack.c.h.b16 %v2043
    %v2101 = vpack.c.b16 %v2071, %v2069
    %v2102 = vpack.c.b16 %v2072, %v2070
    %v2103 = vpack.c.b16 %v2075, %v2073
    %v2104 = vpack.c.b16 %v2076, %v2074
    %v2105 = vpack.c.b16 %v2079, %v2077
    %v2106 = vpack.c.b16 %v2080, %v2078
    %v2107 = vpack.c.b16 %v2083, %v2081
    %v2108 = vpack.c.b16 %v2084, %v2082
    %v2109 = vpack.c.b16 %v2087, %v2085
    %v2110 = vpack.c.b16 %v2088, %v2086
    %v2111 = vpack.c.b16 %v2091, %v2089
    %v2112 = vpack.c.b16 %v2092, %v2090
    %v2113 = vpack.c.b16 %v2095, %v2093
    %v2114 = vpack.c.b16 %v2096, %v2094
    %v2115 = vpack.c.b16 %v2099, %v2097
    %v2116 = vpack.c.b16 %v2100, %v2098
    %2133 = vmatpush.bf16.msra.mxu0 %v2115
    %2134 = vmatpush.bf16.msra.mxu0 %v2113
    %2135 = vmatpush.bf16.msra.mxu0 %v2111
    %2136 = vmatpush.bf16.msra.mxu0 %v2109
    %2137 = vmatpush.bf16.msra.mxu0 %v2107
    %2138 = vmatpush.bf16.msra.mxu0 %v2105
    %2139 = vmatpush.bf16.msra.mxu0 %v2103
    %2140 = vmatpush.bf16.msra.mxu0 %v2101
    %2141 = vmatmul.bf16.gmra.mxu0 %v2051
    %v2142 = vpop.f32.mrf.mxu0
    %v2143 = vadd.f32 0.0, %v2142
    %v2144 = vpop.f32.mrf.mxu0
    %2145 = vdwg.mxu0
    %2146 = vmatpush.bf16.msra.mxu0 %v2116
    %2147 = vmatpush.bf16.msra.mxu0 %v2114
    %2148 = vmatpush.bf16.msra.mxu0 %v2112
    %2149 = vmatpush.bf16.msra.mxu0 %v2110
    %2150 = vmatpush.bf16.msra.mxu0 %v2108
    %2151 = vmatpush.bf16.msra.mxu0 %v2106
    %2152 = vmatpush.bf16.msra.mxu0 %v2104
    %2153 = vmatpush.bf16.msra.mxu0 %v2102
    %2154 = vmatmul.bf16.gmra.mxu0 %v2051
    %v2155 = vpop.f32.mrf.mxu0
    %v2156 = vadd.f32 0.0, %v2155
    %v2157 = vpop.f32.mrf.mxu0
    %2158 = vdwg.mxu0
    %v2159 = vadd.f32 %v2025, %v2143
    %v2160 = vadd.f32 %v2026, %v2156
    %s2161 = scalar_lea.vmem [#allocation9], 896
    %v2162 = vld [vmem:[%s2161] sm:$0xff]
    %v2163 = vld [vmem:[%s2161 + $0x8] sm:$0xff]
    %v2164 = vld [vmem:[%s2161 + $0x10] sm:$0xff]
    %v2165 = vld [vmem:[%s2161 + $0x18] sm:$0xff]
    %v2166 = vld [vmem:[%s2161 + $0x20] sm:$0xff]
    %v2167 = vld [vmem:[%s2161 + $0x28] sm:$0xff]
    %v2168 = vld [vmem:[%s2161 + $0x30] sm:$0xff]
    %v2169 = vld [vmem:[%s2161 + $0x38] sm:$0xff]
    %v2170 = vld [vmem:[%s2161 + $0x40] sm:$0xff]
    %v2171 = vld [vmem:[%s2161 + $0x48] sm:$0xff]
    %v2172 = vld [vmem:[%s2161 + $0x50] sm:$0xff]
    %v2173 = vld [vmem:[%s2161 + $0x58] sm:$0xff]
    %v2174 = vld [vmem:[%s2161 + $0x60] sm:$0xff]
    %v2175 = vld [vmem:[%s2161 + $0x68] sm:$0xff]
    %v2176 = vld [vmem:[%s2161 + $0x70] sm:$0xff]
    %v2177 = vld [vmem:[%s2161 + $0x78] sm:$0xff]
    %v2178 = vrot.slane %v1258, 7
    %v2179 = vrot.slane %v1259, 6
    %v2180 = vsel %vm1263, %v2179, %v2178
    %v2181 = vrot.slane %v1260, 5
    %v2182 = vsel %vm1266, %v2181, %v2180
    %v2183 = vrot.slane %v1261, 4
    %v2184 = vsel %vm1269, %v2183, %v2182
    %v2185 = vpack.c.b16 %v2184, %v2184
    %v2203 = vunpack.c.l.b16 %v2162
    %v2204 = vunpack.c.h.b16 %v2162
    %v2205 = vunpack.c.l.b16 %v2163
    %v2206 = vunpack.c.h.b16 %v2163
    %v2207 = vunpack.c.l.b16 %v2164
    %v2208 = vunpack.c.h.b16 %v2164
    %v2209 = vunpack.c.l.b16 %v2165
    %v2210 = vunpack.c.h.b16 %v2165
    %v2211 = vunpack.c.l.b16 %v2166
    %v2212 = vunpack.c.h.b16 %v2166
    %v2213 = vunpack.c.l.b16 %v2167
    %v2214 = vunpack.c.h.b16 %v2167
    %v2215 = vunpack.c.l.b16 %v2168
    %v2216 = vunpack.c.h.b16 %v2168
    %v2217 = vunpack.c.l.b16 %v2169
    %v2218 = vunpack.c.h.b16 %v2169
    %v2219 = vunpack.c.l.b16 %v2170
    %v2220 = vunpack.c.h.b16 %v2170
    %v2221 = vunpack.c.l.b16 %v2171
    %v2222 = vunpack.c.h.b16 %v2171
    %v2223 = vunpack.c.l.b16 %v2172
    %v2224 = vunpack.c.h.b16 %v2172
    %v2225 = vunpack.c.l.b16 %v2173
    %v2226 = vunpack.c.h.b16 %v2173
    %v2227 = vunpack.c.l.b16 %v2174
    %v2228 = vunpack.c.h.b16 %v2174
    %v2229 = vunpack.c.l.b16 %v2175
    %v2230 = vunpack.c.h.b16 %v2175
    %v2231 = vunpack.c.l.b16 %v2176
    %v2232 = vunpack.c.h.b16 %v2176
    %v2233 = vunpack.c.l.b16 %v2177
    %v2234 = vunpack.c.h.b16 %v2177
    %v2235 = vpack.c.b16 %v2205, %v2203
    %v2236 = vpack.c.b16 %v2206, %v2204
    %v2237 = vpack.c.b16 %v2209, %v2207
    %v2238 = vpack.c.b16 %v2210, %v2208
    %v2239 = vpack.c.b16 %v2213, %v2211
    %v2240 = vpack.c.b16 %v2214, %v2212
    %v2241 = vpack.c.b16 %v2217, %v2215
    %v2242 = vpack.c.b16 %v2218, %v2216
    %v2243 = vpack.c.b16 %v2221, %v2219
    %v2244 = vpack.c.b16 %v2222, %v2220
    %v2245 = vpack.c.b16 %v2225, %v2223
    %v2246 = vpack.c.b16 %v2226, %v2224
    %v2247 = vpack.c.b16 %v2229, %v2227
    %v2248 = vpack.c.b16 %v2230, %v2228
    %v2249 = vpack.c.b16 %v2233, %v2231
    %v2250 = vpack.c.b16 %v2234, %v2232
    %2267 = vmatpush.bf16.msra.mxu0 %v2249
    %2268 = vmatpush.bf16.msra.mxu0 %v2247
    %2269 = vmatpush.bf16.msra.mxu0 %v2245
    %2270 = vmatpush.bf16.msra.mxu0 %v2243
    %2271 = vmatpush.bf16.msra.mxu0 %v2241
    %2272 = vmatpush.bf16.msra.mxu0 %v2239
    %2273 = vmatpush.bf16.msra.mxu0 %v2237
    %2274 = vmatpush.bf16.msra.mxu0 %v2235
    %2275 = vmatmul.bf16.gmra.mxu0 %v2185
    %v2276 = vpop.f32.mrf.mxu0
    %v2277 = vadd.f32 0.0, %v2276
    %v2278 = vpop.f32.mrf.mxu0
    %2279 = vdwg.mxu0
    %2280 = vmatpush.bf16.msra.mxu0 %v2250
    %2281 = vmatpush.bf16.msra.mxu0 %v2248
    %2282 = vmatpush.bf16.msra.mxu0 %v2246
    %2283 = vmatpush.bf16.msra.mxu0 %v2244
    %2284 = vmatpush.bf16.msra.mxu0 %v2242
    %2285 = vmatpush.bf16.msra.mxu0 %v2240
    %2286 = vmatpush.bf16.msra.mxu0 %v2238
    %2287 = vmatpush.bf16.msra.mxu0 %v2236
    %2288 = vmatmul.bf16.gmra.mxu0 %v2185
    %v2289 = vpop.f32.mrf.mxu0
    %v2290 = vadd.f32 0.0, %v2289
    %v2291 = vpop.f32.mrf.mxu0
    %2292 = vdwg.mxu0
    %v2293 = vadd.f32 %v2159, %v2277
    %v2294 = vadd.f32 %v2160, %v2290
    %v2295 = vpack.c.bf16 %v1210, %v1210
    %v2296 = vpack.c.bf16 %v1212, %v1212
    %v2297 = vpack.c.bf16 %v1214, %v1214
    %v2298 = vpack.c.bf16 %v1216, %v1216
    %s2299 = scalar_lea.vmem [#allocation9], 1024
    %v2300 = vld [vmem:[%s2299] sm:$0xff]
    %v2301 = vld [vmem:[%s2299 + $0x8] sm:$0xff]
    %v2302 = vld [vmem:[%s2299 + $0x10] sm:$0xff]
    %v2303 = vld [vmem:[%s2299 + $0x18] sm:$0xff]
    %v2304 = vld [vmem:[%s2299 + $0x20] sm:$0xff]
    %v2305 = vld [vmem:[%s2299 + $0x28] sm:$0xff]
    %v2306 = vld [vmem:[%s2299 + $0x30] sm:$0xff]
    %v2307 = vld [vmem:[%s2299 + $0x38] sm:$0xff]
    %v2308 = vld [vmem:[%s2299 + $0x40] sm:$0xff]
    %v2309 = vld [vmem:[%s2299 + $0x48] sm:$0xff]
    %v2310 = vld [vmem:[%s2299 + $0x50] sm:$0xff]
    %v2311 = vld [vmem:[%s2299 + $0x58] sm:$0xff]
    %v2312 = vld [vmem:[%s2299 + $0x60] sm:$0xff]
    %v2313 = vld [vmem:[%s2299 + $0x68] sm:$0xff]
    %v2314 = vld [vmem:[%s2299 + $0x70] sm:$0xff]
    %v2315 = vld [vmem:[%s2299 + $0x78] sm:$0xff]
    %v2320 = vunpack.c.l.b16 %v2295
    %v2321 = vunpack.c.l.b16 %v2296
    %v2322 = vunpack.c.l.b16 %v2297
    %v2323 = vunpack.c.l.b16 %v2298
    %v2324 = vrot.slane %v2321, 7
    %v2325 = vsel %vm1263, %v2324, %v2320
    %v2326 = vrot.slane %v2322, 6
    %v2327 = vsel %vm1266, %v2326, %v2325
    %v2328 = vrot.slane %v2323, 5
    %v2329 = vsel %vm1269, %v2328, %v2327
    %v2330 = vpack.c.b16 %v2329, %v2329
    %v2348 = vunpack.c.l.b16 %v2300
    %v2349 = vunpack.c.h.b16 %v2300
    %v2350 = vunpack.c.l.b16 %v2301
    %v2351 = vunpack.c.h.b16 %v2301
    %v2352 = vunpack.c.l.b16 %v2302
    %v2353 = vunpack.c.h.b16 %v2302
    %v2354 = vunpack.c.l.b16 %v2303
    %v2355 = vunpack.c.h.b16 %v2303
    %v2356 = vunpack.c.l.b16 %v2304
    %v2357 = vunpack.c.h.b16 %v2304
    %v2358 = vunpack.c.l.b16 %v2305
    %v2359 = vunpack.c.h.b16 %v2305
    %v2360 = vunpack.c.l.b16 %v2306
    %v2361 = vunpack.c.h.b16 %v2306
    %v2362 = vunpack.c.l.b16 %v2307
    %v2363 = vunpack.c.h.b16 %v2307
    %v2364 = vunpack.c.l.b16 %v2308
    %v2365 = vunpack.c.h.b16 %v2308
    %v2366 = vunpack.c.l.b16 %v2309
    %v2367 = vunpack.c.h.b16 %v2309
    %v2368 = vunpack.c.l.b16 %v2310
    %v2369 = vunpack.c.h.b16 %v2310
    %v2370 = vunpack.c.l.b16 %v2311
    %v2371 = vunpack.c.h.b16 %v2311
    %v2372 = vunpack.c.l.b16 %v2312
    %v2373 = vunpack.c.h.b16 %v2312
    %v2374 = vunpack.c.l.b16 %v2313
    %v2375 = vunpack.c.h.b16 %v2313
    %v2376 = vunpack.c.l.b16 %v2314
    %v2377 = vunpack.c.h.b16 %v2314
    %v2378 = vunpack.c.l.b16 %v2315
    %v2379 = vunpack.c.h.b16 %v2315
    %v2380 = vpack.c.b16 %v2350, %v2348
    %v2381 = vpack.c.b16 %v2351, %v2349
    %v2382 = vpack.c.b16 %v2354, %v2352
    %v2383 = vpack.c.b16 %v2355, %v2353
    %v2384 = vpack.c.b16 %v2358, %v2356
    %v2385 = vpack.c.b16 %v2359, %v2357
    %v2386 = vpack.c.b16 %v2362, %v2360
    %v2387 = vpack.c.b16 %v2363, %v2361
    %v2388 = vpack.c.b16 %v2366, %v2364
    %v2389 = vpack.c.b16 %v2367, %v2365
    %v2390 = vpack.c.b16 %v2370, %v2368
    %v2391 = vpack.c.b16 %v2371, %v2369
    %v2392 = vpack.c.b16 %v2374, %v2372
    %v2393 = vpack.c.b16 %v2375, %v2373
    %v2394 = vpack.c.b16 %v2378, %v2376
    %v2395 = vpack.c.b16 %v2379, %v2377
    %2412 = vmatpush.bf16.msra.mxu0 %v2394
    %2413 = vmatpush.bf16.msra.mxu0 %v2392
    %2414 = vmatpush.bf16.msra.mxu0 %v2390
    %2415 = vmatpush.bf16.msra.mxu0 %v2388
    %2416 = vmatpush.bf16.msra.mxu0 %v2386
    %2417 = vmatpush.bf16.msra.mxu0 %v2384
    %2418 = vmatpush.bf16.msra.mxu0 %v2382
    %2419 = vmatpush.bf16.msra.mxu0 %v2380
    %2420 = vmatmul.bf16.gmra.mxu0 %v2330
    %v2421 = vpop.f32.mrf.mxu0
    %v2422 = vadd.f32 0.0, %v2421
    %v2423 = vpop.f32.mrf.mxu0
    %2424 = vdwg.mxu0
    %2425 = vmatpush.bf16.msra.mxu0 %v2395
    %2426 = vmatpush.bf16.msra.mxu0 %v2393
    %2427 = vmatpush.bf16.msra.mxu0 %v2391
    %2428 = vmatpush.bf16.msra.mxu0 %v2389
    %2429 = vmatpush.bf16.msra.mxu0 %v2387
    %2430 = vmatpush.bf16.msra.mxu0 %v2385
    %2431 = vmatpush.bf16.msra.mxu0 %v2383
    %2432 = vmatpush.bf16.msra.mxu0 %v2381
    %2433 = vmatmul.bf16.gmra.mxu0 %v2330
    %v2434 = vpop.f32.mrf.mxu0
    %v2435 = vadd.f32 0.0, %v2434
    %v2436 = vpop.f32.mrf.mxu0
    %2437 = vdwg.mxu0
    %v2438 = vadd.f32 %v2293, %v2422
    %v2439 = vadd.f32 %v2294, %v2435
    %s2440 = scalar_lea.vmem [#allocation9], 1152
    %v2441 = vld [vmem:[%s2440] sm:$0xff]
    %v2442 = vld [vmem:[%s2440 + $0x8] sm:$0xff]
    %v2443 = vld [vmem:[%s2440 + $0x10] sm:$0xff]
    %v2444 = vld [vmem:[%s2440 + $0x18] sm:$0xff]
    %v2445 = vld [vmem:[%s2440 + $0x20] sm:$0xff]
    %v2446 = vld [vmem:[%s2440 + $0x28] sm:$0xff]
    %v2447 = vld [vmem:[%s2440 + $0x30] sm:$0xff]
    %v2448 = vld [vmem:[%s2440 + $0x38] sm:$0xff]
    %v2449 = vld [vmem:[%s2440 + $0x40] sm:$0xff]
    %v2450 = vld [vmem:[%s2440 + $0x48] sm:$0xff]
    %v2451 = vld [vmem:[%s2440 + $0x50] sm:$0xff]
    %v2452 = vld [vmem:[%s2440 + $0x58] sm:$0xff]
    %v2453 = vld [vmem:[%s2440 + $0x60] sm:$0xff]
    %v2454 = vld [vmem:[%s2440 + $0x68] sm:$0xff]
    %v2455 = vld [vmem:[%s2440 + $0x70] sm:$0xff]
    %v2456 = vld [vmem:[%s2440 + $0x78] sm:$0xff]
    %v2457 = vrot.slane %v2320, 1
    %v2458 = vsel %vm1263, %v2321, %v2457
    %v2459 = vrot.slane %v2322, 7
    %v2460 = vsel %vm1266, %v2459, %v2458
    %v2461 = vrot.slane %v2323, 6
    %v2462 = vsel %vm1269, %v2461, %v2460
    %v2463 = vpack.c.b16 %v2462, %v2462
    %v2481 = vunpack.c.l.b16 %v2441
    %v2482 = vunpack.c.h.b16 %v2441
    %v2483 = vunpack.c.l.b16 %v2442
    %v2484 = vunpack.c.h.b16 %v2442
    %v2485 = vunpack.c.l.b16 %v2443
    %v2486 = vunpack.c.h.b16 %v2443
    %v2487 = vunpack.c.l.b16 %v2444
    %v2488 = vunpack.c.h.b16 %v2444
    %v2489 = vunpack.c.l.b16 %v2445
    %v2490 = vunpack.c.h.b16 %v2445
    %v2491 = vunpack.c.l.b16 %v2446
    %v2492 = vunpack.c.h.b16 %v2446
    %v2493 = vunpack.c.l.b16 %v2447
    %v2494 = vunpack.c.h.b16 %v2447
    %v2495 = vunpack.c.l.b16 %v2448
    %v2496 = vunpack.c.h.b16 %v2448
    %v2497 = vunpack.c.l.b16 %v2449
    %v2498 = vunpack.c.h.b16 %v2449
    %v2499 = vunpack.c.l.b16 %v2450
    %v2500 = vunpack.c.h.b16 %v2450
    %v2501 = vunpack.c.l.b16 %v2451
    %v2502 = vunpack.c.h.b16 %v2451
    %v2503 = vunpack.c.l.b16 %v2452
    %v2504 = vunpack.c.h.b16 %v2452
    %v2505 = vunpack.c.l.b16 %v2453
    %v2506 = vunpack.c.h.b16 %v2453
    %v2507 = vunpack.c.l.b16 %v2454
    %v2508 = vunpack.c.h.b16 %v2454
    %v2509 = vunpack.c.l.b16 %v2455
    %v2510 = vunpack.c.h.b16 %v2455
    %v2511 = vunpack.c.l.b16 %v2456
    %v2512 = vunpack.c.h.b16 %v2456
    %v2513 = vpack.c.b16 %v2483, %v2481
    %v2514 = vpack.c.b16 %v2484, %v2482
    %v2515 = vpack.c.b16 %v2487, %v2485
    %v2516 = vpack.c.b16 %v2488, %v2486
    %v2517 = vpack.c.b16 %v2491, %v2489
    %v2518 = vpack.c.b16 %v2492, %v2490
    %v2519 = vpack.c.b16 %v2495, %v2493
    %v2520 = vpack.c.b16 %v2496, %v2494
    %v2521 = vpack.c.b16 %v2499, %v2497
    %v2522 = vpack.c.b16 %v2500, %v2498
    %v2523 = vpack.c.b16 %v2503, %v2501
    %v2524 = vpack.c.b16 %v2504, %v2502
    %v2525 = vpack.c.b16 %v2507, %v2505
    %v2526 = vpack.c.b16 %v2508, %v2506
    %v2527 = vpack.c.b16 %v2511, %v2509
    %v2528 = vpack.c.b16 %v2512, %v2510
    %2545 = vmatpush.bf16.msra.mxu0 %v2527
    %2546 = vmatpush.bf16.msra.mxu0 %v2525
    %2547 = vmatpush.bf16.msra.mxu0 %v2523
    %2548 = vmatpush.bf16.msra.mxu0 %v2521
    %2549 = vmatpush.bf16.msra.mxu0 %v2519
    %2550 = vmatpush.bf16.msra.mxu0 %v2517
    %2551 = vmatpush.bf16.msra.mxu0 %v2515
    %2552 = vmatpush.bf16.msra.mxu0 %v2513
    %2553 = vmatmul.bf16.gmra.mxu0 %v2463
    %v2554 = vpop.f32.mrf.mxu0
    %v2555 = vadd.f32 0.0, %v2554
    %v2556 = vpop.f32.mrf.mxu0
    %2557 = vdwg.mxu0
    %2558 = vmatpush.bf16.msra.mxu0 %v2528
    %2559 = vmatpush.bf16.msra.mxu0 %v2526
    %2560 = vmatpush.bf16.msra.mxu0 %v2524
    %2561 = vmatpush.bf16.msra.mxu0 %v2522
    %2562 = vmatpush.bf16.msra.mxu0 %v2520
    %2563 = vmatpush.bf16.msra.mxu0 %v2518
    %2564 = vmatpush.bf16.msra.mxu0 %v2516
    %2565 = vmatpush.bf16.msra.mxu0 %v2514
    %2566 = vmatmul.bf16.gmra.mxu0 %v2463
    %v2567 = vpop.f32.mrf.mxu0
    %v2568 = vadd.f32 0.0, %v2567
    %v2569 = vpop.f32.mrf.mxu0
    %2570 = vdwg.mxu0
    %v2571 = vadd.f32 %v2438, %v2555
    %v2572 = vadd.f32 %v2439, %v2568
    %s2573 = scalar_lea.vmem [#allocation9], 1280
    %v2574 = vld [vmem:[%s2573] sm:$0xff]
    %v2575 = vld [vmem:[%s2573 + $0x8] sm:$0xff]
    %v2576 = vld [vmem:[%s2573 + $0x10] sm:$0xff]
    %v2577 = vld [vmem:[%s2573 + $0x18] sm:$0xff]
    %v2578 = vld [vmem:[%s2573 + $0x20] sm:$0xff]
    %v2579 = vld [vmem:[%s2573 + $0x28] sm:$0xff]
    %v2580 = vld [vmem:[%s2573 + $0x30] sm:$0xff]
    %v2581 = vld [vmem:[%s2573 + $0x38] sm:$0xff]
    %v2582 = vld [vmem:[%s2573 + $0x40] sm:$0xff]
    %v2583 = vld [vmem:[%s2573 + $0x48] sm:$0xff]
    %v2584 = vld [vmem:[%s2573 + $0x50] sm:$0xff]
    %v2585 = vld [vmem:[%s2573 + $0x58] sm:$0xff]
    %v2586 = vld [vmem:[%s2573 + $0x60] sm:$0xff]
    %v2587 = vld [vmem:[%s2573 + $0x68] sm:$0xff]
    %v2588 = vld [vmem:[%s2573 + $0x70] sm:$0xff]
    %v2589 = vld [vmem:[%s2573 + $0x78] sm:$0xff]
    %v2590 = vrot.slane %v2320, 2
    %v2591 = vrot.slane %v2321, 1
    %v2592 = vsel %vm1263, %v2591, %v2590
    %v2593 = vsel %vm1266, %v2322, %v2592
    %v2594 = vrot.slane %v2323, 7
    %v2595 = vsel %vm1269, %v2594, %v2593
    %v2596 = vpack.c.b16 %v2595, %v2595
    %v2614 = vunpack.c.l.b16 %v2574
    %v2615 = vunpack.c.h.b16 %v2574
    %v2616 = vunpack.c.l.b16 %v2575
    %v2617 = vunpack.c.h.b16 %v2575
    %v2618 = vunpack.c.l.b16 %v2576
    %v2619 = vunpack.c.h.b16 %v2576
    %v2620 = vunpack.c.l.b16 %v2577
    %v2621 = vunpack.c.h.b16 %v2577
    %v2622 = vunpack.c.l.b16 %v2578
    %v2623 = vunpack.c.h.b16 %v2578
    %v2624 = vunpack.c.l.b16 %v2579
    %v2625 = vunpack.c.h.b16 %v2579
    %v2626 = vunpack.c.l.b16 %v2580
    %v2627 = vunpack.c.h.b16 %v2580
    %v2628 = vunpack.c.l.b16 %v2581
    %v2629 = vunpack.c.h.b16 %v2581
    %v2630 = vunpack.c.l.b16 %v2582
    %v2631 = vunpack.c.h.b16 %v2582
    %v2632 = vunpack.c.l.b16 %v2583
    %v2633 = vunpack.c.h.b16 %v2583
    %v2634 = vunpack.c.l.b16 %v2584
    %v2635 = vunpack.c.h.b16 %v2584
    %v2636 = vunpack.c.l.b16 %v2585
    %v2637 = vunpack.c.h.b16 %v2585
    %v2638 = vunpack.c.l.b16 %v2586
    %v2639 = vunpack.c.h.b16 %v2586
    %v2640 = vunpack.c.l.b16 %v2587
    %v2641 = vunpack.c.h.b16 %v2587
    %v2642 = vunpack.c.l.b16 %v2588
    %v2643 = vunpack.c.h.b16 %v2588
    %v2644 = vunpack.c.l.b16 %v2589
    %v2645 = vunpack.c.h.b16 %v2589
    %v2646 = vpack.c.b16 %v2616, %v2614
    %v2647 = vpack.c.b16 %v2617, %v2615
    %v2648 = vpack.c.b16 %v2620, %v2618
    %v2649 = vpack.c.b16 %v2621, %v2619
    %v2650 = vpack.c.b16 %v2624, %v2622
    %v2651 = vpack.c.b16 %v2625, %v2623
    %v2652 = vpack.c.b16 %v2628, %v2626
    %v2653 = vpack.c.b16 %v2629, %v2627
    %v2654 = vpack.c.b16 %v2632, %v2630
    %v2655 = vpack.c.b16 %v2633, %v2631
    %v2656 = vpack.c.b16 %v2636, %v2634
    %v2657 = vpack.c.b16 %v2637, %v2635
    %v2658 = vpack.c.b16 %v2640, %v2638
    %v2659 = vpack.c.b16 %v2641, %v2639
    %v2660 = vpack.c.b16 %v2644, %v2642
    %v2661 = vpack.c.b16 %v2645, %v2643
    %2678 = vmatpush.bf16.msra.mxu0 %v2660
    %2679 = vmatpush.bf16.msra.mxu0 %v2658
    %2680 = vmatpush.bf16.msra.mxu0 %v2656
    %2681 = vmatpush.bf16.msra.mxu0 %v2654
    %2682 = vmatpush.bf16.msra.mxu0 %v2652
    %2683 = vmatpush.bf16.msra.mxu0 %v2650
    %2684 = vmatpush.bf16.msra.mxu0 %v2648
    %2685 = vmatpush.bf16.msra.mxu0 %v2646
    %2686 = vmatmul.bf16.gmra.mxu0 %v2596
    %v2687 = vpop.f32.mrf.mxu0
    %v2688 = vadd.f32 0.0, %v2687
    %v2689 = vpop.f32.mrf.mxu0
    %2690 = vdwg.mxu0
    %2691 = vmatpush.bf16.msra.mxu0 %v2661
    %2692 = vmatpush.bf16.msra.mxu0 %v2659
    %2693 = vmatpush.bf16.msra.mxu0 %v2657
    %2694 = vmatpush.bf16.msra.mxu0 %v2655
    %2695 = vmatpush.bf16.msra.mxu0 %v2653
    %2696 = vmatpush.bf16.msra.mxu0 %v2651
    %2697 = vmatpush.bf16.msra.mxu0 %v2649
    %2698 = vmatpush.bf16.msra.mxu0 %v2647
    %2699 = vmatmul.bf16.gmra.mxu0 %v2596
    %v2700 = vpop.f32.mrf.mxu0
    %v2701 = vadd.f32 0.0, %v2700
    %v2702 = vpop.f32.mrf.mxu0
    %2703 = vdwg.mxu0
    %v2704 = vadd.f32 %v2571, %v2688
    %v2705 = vadd.f32 %v2572, %v2701
    %s2706 = scalar_lea.vmem [#allocation9], 1408
    %v2707 = vld [vmem:[%s2706] sm:$0xff]
    %v2708 = vld [vmem:[%s2706 + $0x8] sm:$0xff]
    %v2709 = vld [vmem:[%s2706 + $0x10] sm:$0xff]
    %v2710 = vld [vmem:[%s2706 + $0x18] sm:$0xff]
    %v2711 = vld [vmem:[%s2706 + $0x20] sm:$0xff]
    %v2712 = vld [vmem:[%s2706 + $0x28] sm:$0xff]
    %v2713 = vld [vmem:[%s2706 + $0x30] sm:$0xff]
    %v2714 = vld [vmem:[%s2706 + $0x38] sm:$0xff]
    %v2715 = vld [vmem:[%s2706 + $0x40] sm:$0xff]
    %v2716 = vld [vmem:[%s2706 + $0x48] sm:$0xff]
    %v2717 = vld [vmem:[%s2706 + $0x50] sm:$0xff]
    %v2718 = vld [vmem:[%s2706 + $0x58] sm:$0xff]
    %v2719 = vld [vmem:[%s2706 + $0x60] sm:$0xff]
    %v2720 = vld [vmem:[%s2706 + $0x68] sm:$0xff]
    %v2721 = vld [vmem:[%s2706 + $0x70] sm:$0xff]
    %v2722 = vld [vmem:[%s2706 + $0x78] sm:$0xff]
    %v2723 = vrot.slane %v2320, 3
    %v2724 = vrot.slane %v2321, 2
    %v2725 = vsel %vm1263, %v2724, %v2723
    %v2726 = vrot.slane %v2322, 1
    %v2727 = vsel %vm1266, %v2726, %v2725
    %v2728 = vsel %vm1269, %v2323, %v2727
    %v2729 = vpack.c.b16 %v2728, %v2728
    %v2747 = vunpack.c.l.b16 %v2707
    %v2748 = vunpack.c.h.b16 %v2707
    %v2749 = vunpack.c.l.b16 %v2708
    %v2750 = vunpack.c.h.b16 %v2708
    %v2751 = vunpack.c.l.b16 %v2709
    %v2752 = vunpack.c.h.b16 %v2709
    %v2753 = vunpack.c.l.b16 %v2710
    %v2754 = vunpack.c.h.b16 %v2710
    %v2755 = vunpack.c.l.b16 %v2711
    %v2756 = vunpack.c.h.b16 %v2711
    %v2757 = vunpack.c.l.b16 %v2712
    %v2758 = vunpack.c.h.b16 %v2712
    %v2759 = vunpack.c.l.b16 %v2713
    %v2760 = vunpack.c.h.b16 %v2713
    %v2761 = vunpack.c.l.b16 %v2714
    %v2762 = vunpack.c.h.b16 %v2714
    %v2763 = vunpack.c.l.b16 %v2715
    %v2764 = vunpack.c.h.b16 %v2715
    %v2765 = vunpack.c.l.b16 %v2716
    %v2766 = vunpack.c.h.b16 %v2716
    %v2767 = vunpack.c.l.b16 %v2717
    %v2768 = vunpack.c.h.b16 %v2717
    %v2769 = vunpack.c.l.b16 %v2718
    %v2770 = vunpack.c.h.b16 %v2718
    %v2771 = vunpack.c.l.b16 %v2719
    %v2772 = vunpack.c.h.b16 %v2719
    %v2773 = vunpack.c.l.b16 %v2720
    %v2774 = vunpack.c.h.b16 %v2720
    %v2775 = vunpack.c.l.b16 %v2721
    %v2776 = vunpack.c.h.b16 %v2721
    %v2777 = vunpack.c.l.b16 %v2722
    %v2778 = vunpack.c.h.b16 %v2722
    %v2779 = vpack.c.b16 %v2749, %v2747
    %v2780 = vpack.c.b16 %v2750, %v2748
    %v2781 = vpack.c.b16 %v2753, %v2751
    %v2782 = vpack.c.b16 %v2754, %v2752
    %v2783 = vpack.c.b16 %v2757, %v2755
    %v2784 = vpack.c.b16 %v2758, %v2756
    %v2785 = vpack.c.b16 %v2761, %v2759
    %v2786 = vpack.c.b16 %v2762, %v2760
    %v2787 = vpack.c.b16 %v2765, %v2763
    %v2788 = vpack.c.b16 %v2766, %v2764
    %v2789 = vpack.c.b16 %v2769, %v2767
    %v2790 = vpack.c.b16 %v2770, %v2768
    %v2791 = vpack.c.b16 %v2773, %v2771
    %v2792 = vpack.c.b16 %v2774, %v2772
    %v2793 = vpack.c.b16 %v2777, %v2775
    %v2794 = vpack.c.b16 %v2778, %v2776
    %2811 = vmatpush.bf16.msra.mxu0 %v2793
    %2812 = vmatpush.bf16.msra.mxu0 %v2791
    %2813 = vmatpush.bf16.msra.mxu0 %v2789
    %2814 = vmatpush.bf16.msra.mxu0 %v2787
    %2815 = vmatpush.bf16.msra.mxu0 %v2785
    %2816 = vmatpush.bf16.msra.mxu0 %v2783
    %2817 = vmatpush.bf16.msra.mxu0 %v2781
    %2818 = vmatpush.bf16.msra.mxu0 %v2779
    %2819 = vmatmul.bf16.gmra.mxu0 %v2729
    %v2820 = vpop.f32.mrf.mxu0
    %v2821 = vadd.f32 0.0, %v2820
    %v2822 = vpop.f32.mrf.mxu0
    %2823 = vdwg.mxu0
    %2824 = vmatpush.bf16.msra.mxu0 %v2794
    %2825 = vmatpush.bf16.msra.mxu0 %v2792
    %2826 = vmatpush.bf16.msra.mxu0 %v2790
    %2827 = vmatpush.bf16.msra.mxu0 %v2788
    %2828 = vmatpush.bf16.msra.mxu0 %v2786
    %2829 = vmatpush.bf16.msra.mxu0 %v2784
    %2830 = vmatpush.bf16.msra.mxu0 %v2782
    %2831 = vmatpush.bf16.msra.mxu0 %v2780
    %2832 = vmatmul.bf16.gmra.mxu0 %v2729
    %v2833 = vpop.f32.mrf.mxu0
    %v2834 = vadd.f32 0.0, %v2833
    %v2835 = vpop.f32.mrf.mxu0
    %2836 = vdwg.mxu0
    %v2837 = vadd.f32 %v2704, %v2821
    %v2838 = vadd.f32 %v2705, %v2834
    %s2839 = scalar_lea.vmem [#allocation9], 1536
    %v2840 = vld [vmem:[%s2839] sm:$0xff]
    %v2841 = vld [vmem:[%s2839 + $0x8] sm:$0xff]
    %v2842 = vld [vmem:[%s2839 + $0x10] sm:$0xff]
    %v2843 = vld [vmem:[%s2839 + $0x18] sm:$0xff]
    %v2844 = vld [vmem:[%s2839 + $0x20] sm:$0xff]
    %v2845 = vld [vmem:[%s2839 + $0x28] sm:$0xff]
    %v2846 = vld [vmem:[%s2839 + $0x30] sm:$0xff]
    %v2847 = vld [vmem:[%s2839 + $0x38] sm:$0xff]
    %v2848 = vld [vmem:[%s2839 + $0x40] sm:$0xff]
    %v2849 = vld [vmem:[%s2839 + $0x48] sm:$0xff]
    %v2850 = vld [vmem:[%s2839 + $0x50] sm:$0xff]
    %v2851 = vld [vmem:[%s2839 + $0x58] sm:$0xff]
    %v2852 = vld [vmem:[%s2839 + $0x60] sm:$0xff]
    %v2853 = vld [vmem:[%s2839 + $0x68] sm:$0xff]
    %v2854 = vld [vmem:[%s2839 + $0x70] sm:$0xff]
    %v2855 = vld [vmem:[%s2839 + $0x78] sm:$0xff]
    %v2856 = vrot.slane %v2320, 4
    %v2857 = vrot.slane %v2321, 3
    %v2858 = vsel %vm1263, %v2857, %v2856
    %v2859 = vrot.slane %v2322, 2
    %v2860 = vsel %vm1266, %v2859, %v2858
    %v2861 = vrot.slane %v2323, 1
    %v2862 = vsel %vm1269, %v2861, %v2860
    %v2863 = vpack.c.b16 %v2862, %v2862
    %v2881 = vunpack.c.l.b16 %v2840
    %v2882 = vunpack.c.h.b16 %v2840
    %v2883 = vunpack.c.l.b16 %v2841
    %v2884 = vunpack.c.h.b16 %v2841
    %v2885 = vunpack.c.l.b16 %v2842
    %v2886 = vunpack.c.h.b16 %v2842
    %v2887 = vunpack.c.l.b16 %v2843
    %v2888 = vunpack.c.h.b16 %v2843
    %v2889 = vunpack.c.l.b16 %v2844
    %v2890 = vunpack.c.h.b16 %v2844
    %v2891 = vunpack.c.l.b16 %v2845
    %v2892 = vunpack.c.h.b16 %v2845
    %v2893 = vunpack.c.l.b16 %v2846
    %v2894 = vunpack.c.h.b16 %v2846
    %v2895 = vunpack.c.l.b16 %v2847
    %v2896 = vunpack.c.h.b16 %v2847
    %v2897 = vunpack.c.l.b16 %v2848
    %v2898 = vunpack.c.h.b16 %v2848
    %v2899 = vunpack.c.l.b16 %v2849
    %v2900 = vunpack.c.h.b16 %v2849
    %v2901 = vunpack.c.l.b16 %v2850
    %v2902 = vunpack.c.h.b16 %v2850
    %v2903 = vunpack.c.l.b16 %v2851
    %v2904 = vunpack.c.h.b16 %v2851
    %v2905 = vunpack.c.l.b16 %v2852
    %v2906 = vunpack.c.h.b16 %v2852
    %v2907 = vunpack.c.l.b16 %v2853
    %v2908 = vunpack.c.h.b16 %v2853
    %v2909 = vunpack.c.l.b16 %v2854
    %v2910 = vunpack.c.h.b16 %v2854
    %v2911 = vunpack.c.l.b16 %v2855
    %v2912 = vunpack.c.h.b16 %v2855
    %v2913 = vpack.c.b16 %v2883, %v2881
    %v2914 = vpack.c.b16 %v2884, %v2882
    %v2915 = vpack.c.b16 %v2887, %v2885
    %v2916 = vpack.c.b16 %v2888, %v2886
    %v2917 = vpack.c.b16 %v2891, %v2889
    %v2918 = vpack.c.b16 %v2892, %v2890
    %v2919 = vpack.c.b16 %v2895, %v2893
    %v2920 = vpack.c.b16 %v2896, %v2894
    %v2921 = vpack.c.b16 %v2899, %v2897
    %v2922 = vpack.c.b16 %v2900, %v2898
    %v2923 = vpack.c.b16 %v2903, %v2901
    %v2924 = vpack.c.b16 %v2904, %v2902
    %v2925 = vpack.c.b16 %v2907, %v2905
    %v2926 = vpack.c.b16 %v2908, %v2906
    %v2927 = vpack.c.b16 %v2911, %v2909
    %v2928 = vpack.c.b16 %v2912, %v2910
    %2945 = vmatpush.bf16.msra.mxu0 %v2927
    %2946 = vmatpush.bf16.msra.mxu0 %v2925
    %2947 = vmatpush.bf16.msra.mxu0 %v2923
    %2948 = vmatpush.bf16.msra.mxu0 %v2921
    %2949 = vmatpush.bf16.msra.mxu0 %v2919
    %2950 = vmatpush.bf16.msra.mxu0 %v2917
    %2951 = vmatpush.bf16.msra.mxu0 %v2915
    %2952 = vmatpush.bf16.msra.mxu0 %v2913
    %2953 = vmatmul.bf16.gmra.mxu0 %v2863
    %v2954 = vpop.f32.mrf.mxu0
    %v2955 = vadd.f32 0.0, %v2954
    %v2956 = vpop.f32.mrf.mxu0
    %2957 = vdwg.mxu0
    %2958 = vmatpush.bf16.msra.mxu0 %v2928
    %2959 = vmatpush.bf16.msra.mxu0 %v2926
    %2960 = vmatpush.bf16.msra.mxu0 %v2924
    %2961 = vmatpush.bf16.msra.mxu0 %v2922
    %2962 = vmatpush.bf16.msra.mxu0 %v2920
    %2963 = vmatpush.bf16.msra.mxu0 %v2918
    %2964 = vmatpush.bf16.msra.mxu0 %v2916
    %2965 = vmatpush.bf16.msra.mxu0 %v2914
    %2966 = vmatmul.bf16.gmra.mxu0 %v2863
    %v2967 = vpop.f32.mrf.mxu0
    %v2968 = vadd.f32 0.0, %v2967
    %v2969 = vpop.f32.mrf.mxu0
    %2970 = vdwg.mxu0
    %v2971 = vadd.f32 %v2837, %v2955
    %v2972 = vadd.f32 %v2838, %v2968
    %s2973 = scalar_lea.vmem [#allocation9], 1664
    %v2974 = vld [vmem:[%s2973] sm:$0xff]
    %v2975 = vld [vmem:[%s2973 + $0x8] sm:$0xff]
    %v2976 = vld [vmem:[%s2973 + $0x10] sm:$0xff]
    %v2977 = vld [vmem:[%s2973 + $0x18] sm:$0xff]
    %v2978 = vld [vmem:[%s2973 + $0x20] sm:$0xff]
    %v2979 = vld [vmem:[%s2973 + $0x28] sm:$0xff]
    %v2980 = vld [vmem:[%s2973 + $0x30] sm:$0xff]
    %v2981 = vld [vmem:[%s2973 + $0x38] sm:$0xff]
    %v2982 = vld [vmem:[%s2973 + $0x40] sm:$0xff]
    %v2983 = vld [vmem:[%s2973 + $0x48] sm:$0xff]
    %v2984 = vld [vmem:[%s2973 + $0x50] sm:$0xff]
    %v2985 = vld [vmem:[%s2973 + $0x58] sm:$0xff]
    %v2986 = vld [vmem:[%s2973 + $0x60] sm:$0xff]
    %v2987 = vld [vmem:[%s2973 + $0x68] sm:$0xff]
    %v2988 = vld [vmem:[%s2973 + $0x70] sm:$0xff]
    %v2989 = vld [vmem:[%s2973 + $0x78] sm:$0xff]
    %v2990 = vrot.slane %v2320, 5
    %v2991 = vrot.slane %v2321, 4
    %v2992 = vsel %vm1263, %v2991, %v2990
    %v2993 = vrot.slane %v2322, 3
    %v2994 = vsel %vm1266, %v2993, %v2992
    %v2995 = vrot.slane %v2323, 2
    %v2996 = vsel %vm1269, %v2995, %v2994
    %v2997 = vpack.c.b16 %v2996, %v2996
    %v3015 = vunpack.c.l.b16 %v2974
    %v3016 = vunpack.c.h.b16 %v2974
    %v3017 = vunpack.c.l.b16 %v2975
    %v3018 = vunpack.c.h.b16 %v2975
    %v3019 = vunpack.c.l.b16 %v2976
    %v3020 = vunpack.c.h.b16 %v2976
    %v3021 = vunpack.c.l.b16 %v2977
    %v3022 = vunpack.c.h.b16 %v2977
    %v3023 = vunpack.c.l.b16 %v2978
    %v3024 = vunpack.c.h.b16 %v2978
    %v3025 = vunpack.c.l.b16 %v2979
    %v3026 = vunpack.c.h.b16 %v2979
    %v3027 = vunpack.c.l.b16 %v2980
    %v3028 = vunpack.c.h.b16 %v2980
    %v3029 = vunpack.c.l.b16 %v2981
    %v3030 = vunpack.c.h.b16 %v2981
    %v3031 = vunpack.c.l.b16 %v2982
    %v3032 = vunpack.c.h.b16 %v2982
    %v3033 = vunpack.c.l.b16 %v2983
    %v3034 = vunpack.c.h.b16 %v2983
    %v3035 = vunpack.c.l.b16 %v2984
    %v3036 = vunpack.c.h.b16 %v2984
    %v3037 = vunpack.c.l.b16 %v2985
    %v3038 = vunpack.c.h.b16 %v2985
    %v3039 = vunpack.c.l.b16 %v2986
    %v3040 = vunpack.c.h.b16 %v2986
    %v3041 = vunpack.c.l.b16 %v2987
    %v3042 = vunpack.c.h.b16 %v2987
    %v3043 = vunpack.c.l.b16 %v2988
    %v3044 = vunpack.c.h.b16 %v2988
    %v3045 = vunpack.c.l.b16 %v2989
    %v3046 = vunpack.c.h.b16 %v2989
    %v3047 = vpack.c.b16 %v3017, %v3015
    %v3048 = vpack.c.b16 %v3018, %v3016
    %v3049 = vpack.c.b16 %v3021, %v3019
    %v3050 = vpack.c.b16 %v3022, %v3020
    %v3051 = vpack.c.b16 %v3025, %v3023
    %v3052 = vpack.c.b16 %v3026, %v3024
    %v3053 = vpack.c.b16 %v3029, %v3027
    %v3054 = vpack.c.b16 %v3030, %v3028
    %v3055 = vpack.c.b16 %v3033, %v3031
    %v3056 = vpack.c.b16 %v3034, %v3032
    %v3057 = vpack.c.b16 %v3037, %v3035
    %v3058 = vpack.c.b16 %v3038, %v3036
    %v3059 = vpack.c.b16 %v3041, %v3039
    %v3060 = vpack.c.b16 %v3042, %v3040
    %v3061 = vpack.c.b16 %v3045, %v3043
    %v3062 = vpack.c.b16 %v3046, %v3044
    %3079 = vmatpush.bf16.msra.mxu0 %v3061
    %3080 = vmatpush.bf16.msra.mxu0 %v3059
    %3081 = vmatpush.bf16.msra.mxu0 %v3057
    %3082 = vmatpush.bf16.msra.mxu0 %v3055
    %3083 = vmatpush.bf16.msra.mxu0 %v3053
    %3084 = vmatpush.bf16.msra.mxu0 %v3051
    %3085 = vmatpush.bf16.msra.mxu0 %v3049
    %3086 = vmatpush.bf16.msra.mxu0 %v3047
    %3087 = vmatmul.bf16.gmra.mxu0 %v2997
    %v3088 = vpop.f32.mrf.mxu0
    %v3089 = vadd.f32 0.0, %v3088
    %v3090 = vpop.f32.mrf.mxu0
    %3091 = vdwg.mxu0
    %3092 = vmatpush.bf16.msra.mxu0 %v3062
    %3093 = vmatpush.bf16.msra.mxu0 %v3060
    %3094 = vmatpush.bf16.msra.mxu0 %v3058
    %3095 = vmatpush.bf16.msra.mxu0 %v3056
    %3096 = vmatpush.bf16.msra.mxu0 %v3054
    %3097 = vmatpush.bf16.msra.mxu0 %v3052
    %3098 = vmatpush.bf16.msra.mxu0 %v3050
    %3099 = vmatpush.bf16.msra.mxu0 %v3048
    %3100 = vmatmul.bf16.gmra.mxu0 %v2997
    %v3101 = vpop.f32.mrf.mxu0
    %v3102 = vadd.f32 0.0, %v3101
    %v3103 = vpop.f32.mrf.mxu0
    %3104 = vdwg.mxu0
    %v3105 = vadd.f32 %v2971, %v3089
    %v3106 = vadd.f32 %v2972, %v3102
    %s3107 = scalar_lea.vmem [#allocation9], 1792
    %v3108 = vld [vmem:[%s3107] sm:$0xff]
    %v3109 = vld [vmem:[%s3107 + $0x8] sm:$0xff]
    %v3110 = vld [vmem:[%s3107 + $0x10] sm:$0xff]
    %v3111 = vld [vmem:[%s3107 + $0x18] sm:$0xff]
    %v3112 = vld [vmem:[%s3107 + $0x20] sm:$0xff]
    %v3113 = vld [vmem:[%s3107 + $0x28] sm:$0xff]
    %v3114 = vld [vmem:[%s3107 + $0x30] sm:$0xff]
    %v3115 = vld [vmem:[%s3107 + $0x38] sm:$0xff]
    %v3116 = vld [vmem:[%s3107 + $0x40] sm:$0xff]
    %v3117 = vld [vmem:[%s3107 + $0x48] sm:$0xff]
    %v3118 = vld [vmem:[%s3107 + $0x50] sm:$0xff]
    %v3119 = vld [vmem:[%s3107 + $0x58] sm:$0xff]
    %v3120 = vld [vmem:[%s3107 + $0x60] sm:$0xff]
    %v3121 = vld [vmem:[%s3107 + $0x68] sm:$0xff]
    %v3122 = vld [vmem:[%s3107 + $0x70] sm:$0xff]
    %v3123 = vld [vmem:[%s3107 + $0x78] sm:$0xff]
    %v3124 = vrot.slane %v2320, 6
    %v3125 = vrot.slane %v2321, 5
    %v3126 = vsel %vm1263, %v3125, %v3124
    %v3127 = vrot.slane %v2322, 4
    %v3128 = vsel %vm1266, %v3127, %v3126
    %v3129 = vrot.slane %v2323, 3
    %v3130 = vsel %vm1269, %v3129, %v3128
    %v3131 = vpack.c.b16 %v3130, %v3130
    %v3149 = vunpack.c.l.b16 %v3108
    %v3150 = vunpack.c.h.b16 %v3108
    %v3151 = vunpack.c.l.b16 %v3109
    %v3152 = vunpack.c.h.b16 %v3109
    %v3153 = vunpack.c.l.b16 %v3110
    %v3154 = vunpack.c.h.b16 %v3110
    %v3155 = vunpack.c.l.b16 %v3111
    %v3156 = vunpack.c.h.b16 %v3111
    %v3157 = vunpack.c.l.b16 %v3112
    %v3158 = vunpack.c.h.b16 %v3112
    %v3159 = vunpack.c.l.b16 %v3113
    %v3160 = vunpack.c.h.b16 %v3113
    %v3161 = vunpack.c.l.b16 %v3114
    %v3162 = vunpack.c.h.b16 %v3114
    %v3163 = vunpack.c.l.b16 %v3115
    %v3164 = vunpack.c.h.b16 %v3115
    %v3165 = vunpack.c.l.b16 %v3116
    %v3166 = vunpack.c.h.b16 %v3116
    %v3167 = vunpack.c.l.b16 %v3117
    %v3168 = vunpack.c.h.b16 %v3117
    %v3169 = vunpack.c.l.b16 %v3118
    %v3170 = vunpack.c.h.b16 %v3118
    %v3171 = vunpack.c.l.b16 %v3119
    %v3172 = vunpack.c.h.b16 %v3119
    %v3173 = vunpack.c.l.b16 %v3120
    %v3174 = vunpack.c.h.b16 %v3120
    %v3175 = vunpack.c.l.b16 %v3121
    %v3176 = vunpack.c.h.b16 %v3121
    %v3177 = vunpack.c.l.b16 %v3122
    %v3178 = vunpack.c.h.b16 %v3122
    %v3179 = vunpack.c.l.b16 %v3123
    %v3180 = vunpack.c.h.b16 %v3123
    %v3181 = vpack.c.b16 %v3151, %v3149
    %v3182 = vpack.c.b16 %v3152, %v3150
    %v3183 = vpack.c.b16 %v3155, %v3153
    %v3184 = vpack.c.b16 %v3156, %v3154
    %v3185 = vpack.c.b16 %v3159, %v3157
    %v3186 = vpack.c.b16 %v3160, %v3158
    %v3187 = vpack.c.b16 %v3163, %v3161
    %v3188 = vpack.c.b16 %v3164, %v3162
    %v3189 = vpack.c.b16 %v3167, %v3165
    %v3190 = vpack.c.b16 %v3168, %v3166
    %v3191 = vpack.c.b16 %v3171, %v3169
    %v3192 = vpack.c.b16 %v3172, %v3170
    %v3193 = vpack.c.b16 %v3175, %v3173
    %v3194 = vpack.c.b16 %v3176, %v3174
    %v3195 = vpack.c.b16 %v3179, %v3177
    %v3196 = vpack.c.b16 %v3180, %v3178
    %3213 = vmatpush.bf16.msra.mxu0 %v3195
    %3214 = vmatpush.bf16.msra.mxu0 %v3193
    %3215 = vmatpush.bf16.msra.mxu0 %v3191
    %3216 = vmatpush.bf16.msra.mxu0 %v3189
    %3217 = vmatpush.bf16.msra.mxu0 %v3187
    %3218 = vmatpush.bf16.msra.mxu0 %v3185
    %3219 = vmatpush.bf16.msra.mxu0 %v3183
    %3220 = vmatpush.bf16.msra.mxu0 %v3181
    %3221 = vmatmul.bf16.gmra.mxu0 %v3131
    %v3222 = vpop.f32.mrf.mxu0
    %v3223 = vadd.f32 0.0, %v3222
    %v3224 = vpop.f32.mrf.mxu0
    %3225 = vdwg.mxu0
    %3226 = vmatpush.bf16.msra.mxu0 %v3196
    %3227 = vmatpush.bf16.msra.mxu0 %v3194
    %3228 = vmatpush.bf16.msra.mxu0 %v3192
    %3229 = vmatpush.bf16.msra.mxu0 %v3190
    %3230 = vmatpush.bf16.msra.mxu0 %v3188
    %3231 = vmatpush.bf16.msra.mxu0 %v3186
    %3232 = vmatpush.bf16.msra.mxu0 %v3184
    %3233 = vmatpush.bf16.msra.mxu0 %v3182
    %3234 = vmatmul.bf16.gmra.mxu0 %v3131
    %v3235 = vpop.f32.mrf.mxu0
    %v3236 = vadd.f32 0.0, %v3235
    %v3237 = vpop.f32.mrf.mxu0
    %3238 = vdwg.mxu0
    %v3239 = vadd.f32 %v3105, %v3223
    %v3240 = vadd.f32 %v3106, %v3236
    %s3241 = scalar_lea.vmem [#allocation9], 1920
    %v3242 = vld [vmem:[%s3241] sm:$0xff]
    %v3243 = vld [vmem:[%s3241 + $0x8] sm:$0xff]
    %v3244 = vld [vmem:[%s3241 + $0x10] sm:$0xff]
    %v3245 = vld [vmem:[%s3241 + $0x18] sm:$0xff]
    %v3246 = vld [vmem:[%s3241 + $0x20] sm:$0xff]
    %v3247 = vld [vmem:[%s3241 + $0x28] sm:$0xff]
    %v3248 = vld [vmem:[%s3241 + $0x30] sm:$0xff]
    %v3249 = vld [vmem:[%s3241 + $0x38] sm:$0xff]
    %v3250 = vld [vmem:[%s3241 + $0x40] sm:$0xff]
    %v3251 = vld [vmem:[%s3241 + $0x48] sm:$0xff]
    %v3252 = vld [vmem:[%s3241 + $0x50] sm:$0xff]
    %v3253 = vld [vmem:[%s3241 + $0x58] sm:$0xff]
    %v3254 = vld [vmem:[%s3241 + $0x60] sm:$0xff]
    %v3255 = vld [vmem:[%s3241 + $0x68] sm:$0xff]
    %v3256 = vld [vmem:[%s3241 + $0x70] sm:$0xff]
    %v3257 = vld [vmem:[%s3241 + $0x78] sm:$0xff]
    %v3258 = vrot.slane %v2320, 7
    %v3259 = vrot.slane %v2321, 6
    %v3260 = vsel %vm1263, %v3259, %v3258
    %v3261 = vrot.slane %v2322, 5
    %v3262 = vsel %vm1266, %v3261, %v3260
    %v3263 = vrot.slane %v2323, 4
    %v3264 = vsel %vm1269, %v3263, %v3262
    %v3265 = vpack.c.b16 %v3264, %v3264
    %v3283 = vunpack.c.l.b16 %v3242
    %v3284 = vunpack.c.h.b16 %v3242
    %v3285 = vunpack.c.l.b16 %v3243
    %v3286 = vunpack.c.h.b16 %v3243
    %v3287 = vunpack.c.l.b16 %v3244
    %v3288 = vunpack.c.h.b16 %v3244
    %v3289 = vunpack.c.l.b16 %v3245
    %v3290 = vunpack.c.h.b16 %v3245
    %v3291 = vunpack.c.l.b16 %v3246
    %v3292 = vunpack.c.h.b16 %v3246
    %v3293 = vunpack.c.l.b16 %v3247
    %v3294 = vunpack.c.h.b16 %v3247
    %v3295 = vunpack.c.l.b16 %v3248
    %v3296 = vunpack.c.h.b16 %v3248
    %v3297 = vunpack.c.l.b16 %v3249
    %v3298 = vunpack.c.h.b16 %v3249
    %v3299 = vunpack.c.l.b16 %v3250
    %v3300 = vunpack.c.h.b16 %v3250
    %v3301 = vunpack.c.l.b16 %v3251
    %v3302 = vunpack.c.h.b16 %v3251
    %v3303 = vunpack.c.l.b16 %v3252
    %v3304 = vunpack.c.h.b16 %v3252
    %v3305 = vunpack.c.l.b16 %v3253
    %v3306 = vunpack.c.h.b16 %v3253
    %v3307 = vunpack.c.l.b16 %v3254
    %v3308 = vunpack.c.h.b16 %v3254
    %v3309 = vunpack.c.l.b16 %v3255
    %v3310 = vunpack.c.h.b16 %v3255
    %v3311 = vunpack.c.l.b16 %v3256
    %v3312 = vunpack.c.h.b16 %v3256
    %v3313 = vunpack.c.l.b16 %v3257
    %v3314 = vunpack.c.h.b16 %v3257
    %v3315 = vpack.c.b16 %v3285, %v3283
    %v3316 = vpack.c.b16 %v3286, %v3284
    %v3317 = vpack.c.b16 %v3289, %v3287
    %v3318 = vpack.c.b16 %v3290, %v3288
    %v3319 = vpack.c.b16 %v3293, %v3291
    %v3320 = vpack.c.b16 %v3294, %v3292
    %v3321 = vpack.c.b16 %v3297, %v3295
    %v3322 = vpack.c.b16 %v3298, %v3296
    %v3323 = vpack.c.b16 %v3301, %v3299
    %v3324 = vpack.c.b16 %v3302, %v3300
    %v3325 = vpack.c.b16 %v3305, %v3303
    %v3326 = vpack.c.b16 %v3306, %v3304
    %v3327 = vpack.c.b16 %v3309, %v3307
    %v3328 = vpack.c.b16 %v3310, %v3308
    %v3329 = vpack.c.b16 %v3313, %v3311
    %v3330 = vpack.c.b16 %v3314, %v3312
    %3347 = vmatpush.bf16.msra.mxu0 %v3329
    %3348 = vmatpush.bf16.msra.mxu0 %v3327
    %3349 = vmatpush.bf16.msra.mxu0 %v3325
    %3350 = vmatpush.bf16.msra.mxu0 %v3323
    %3351 = vmatpush.bf16.msra.mxu0 %v3321
    %3352 = vmatpush.bf16.msra.mxu0 %v3319
    %3353 = vmatpush.bf16.msra.mxu0 %v3317
    %3354 = vmatpush.bf16.msra.mxu0 %v3315
    %3355 = vmatmul.bf16.gmra.mxu0 %v3265
    %v3356 = vpop.f32.mrf.mxu0
    %v3357 = vadd.f32 0.0, %v3356
    %v3358 = vpop.f32.mrf.mxu0
    %3359 = vdwg.mxu0
    %3360 = vmatpush.bf16.msra.mxu0 %v3330
    %3361 = vmatpush.bf16.msra.mxu0 %v3328
    %3362 = vmatpush.bf16.msra.mxu0 %v3326
    %3363 = vmatpush.bf16.msra.mxu0 %v3324
    %3364 = vmatpush.bf16.msra.mxu0 %v3322
    %3365 = vmatpush.bf16.msra.mxu0 %v3320
    %3366 = vmatpush.bf16.msra.mxu0 %v3318
    %3367 = vmatpush.bf16.msra.mxu0 %v3316
    %3368 = vmatmul.bf16.gmra.mxu0 %v3265
    %v3369 = vpop.f32.mrf.mxu0
    %v3370 = vadd.f32 0.0, %v3369
    %v3371 = vpop.f32.mrf.mxu0
    %3372 = vdwg.mxu0
    %v3373 = vadd.f32 %v3239, %v3357
    %v3374 = vadd.f32 %v3240, %v3370
    %v3375 = vld [vmem:[%s6] sm:$0x3]
    %v3377 = vperm.slane %v3375, 0
    %v3378 = vperm.slane %v3375, 1
    %v3381 = vadd.f32 %v3373, %v3377
    %v3382 = vadd.f32 %v3374, %v3378
    %v3383 = vmax.f32 %v3381, 0.0
    %v3384 = vmax.f32 %v3382, 0.0
    %v3385 = vpack.c.bf16 %v3383, %v3383
    %v3386 = vpack.c.bf16 %v3384, %v3384
    %v3387 = vld [vmem:[#allocation10] sm:$0xff]
    %v3388 = vld [vmem:[#allocation10 + $0x8] sm:$0xff]
    %v3389 = vld [vmem:[#allocation10 + $0x10] sm:$0xff]
    %v3390 = vld [vmem:[#allocation10 + $0x18] sm:$0xff]
    %v3391 = vld [vmem:[#allocation10 + $0x20] sm:$0xff]
    %v3392 = vld [vmem:[#allocation10 + $0x28] sm:$0xff]
    %v3393 = vld [vmem:[#allocation10 + $0x30] sm:$0xff]
    %v3394 = vld [vmem:[#allocation10 + $0x38] sm:$0xff]
    %v3395 = vld [vmem:[#allocation10 + $0x40] sm:$0xff]
    %v3396 = vld [vmem:[#allocation10 + $0x48] sm:$0xff]
    %v3397 = vld [vmem:[#allocation10 + $0x50] sm:$0xff]
    %v3398 = vld [vmem:[#allocation10 + $0x58] sm:$0xff]
    %v3399 = vld [vmem:[#allocation10 + $0x60] sm:$0xff]
    %v3400 = vld [vmem:[#allocation10 + $0x68] sm:$0xff]
    %v3401 = vld [vmem:[#allocation10 + $0x70] sm:$0xff]
    %v3402 = vld [vmem:[#allocation10 + $0x78] sm:$0xff]
    %v3403 = vld [vmem:[#allocation10 + $0x80] sm:$0xff]
    %v3404 = vld [vmem:[#allocation10 + $0x88] sm:$0xff]
    %v3405 = vld [vmem:[#allocation10 + $0x90] sm:$0xff]
    %v3406 = vld [vmem:[#allocation10 + $0x98] sm:$0xff]
    %v3407 = vld [vmem:[#allocation10 + $0xa0] sm:$0xff]
    %v3408 = vld [vmem:[#allocation10 + $0xa8] sm:$0xff]
    %v3409 = vld [vmem:[#allocation10 + $0xb0] sm:$0xff]
    %v3410 = vld [vmem:[#allocation10 + $0xb8] sm:$0xff]
    %v3411 = vld [vmem:[#allocation10 + $0xc0] sm:$0xff]
    %v3412 = vld [vmem:[#allocation10 + $0xc8] sm:$0xff]
    %v3413 = vld [vmem:[#allocation10 + $0xd0] sm:$0xff]
    %v3414 = vld [vmem:[#allocation10 + $0xd8] sm:$0xff]
    %v3415 = vld [vmem:[#allocation10 + $0xe0] sm:$0xff]
    %v3416 = vld [vmem:[#allocation10 + $0xe8] sm:$0xff]
    %v3417 = vld [vmem:[#allocation10 + $0xf0] sm:$0xff]
    %v3418 = vld [vmem:[#allocation10 + $0xf8] sm:$0xff]
    %v3419 = vld [vmem:[%s8] sm:$0x3]
    %v3421 = vperm.slane %v3419, 0
    %v3422 = vperm.slane %v3419, 1
    %v3457 = vunpack.c.l.b16 %v3387
    %v3458 = vunpack.c.h.b16 %v3387
    %v3459 = vunpack.c.l.b16 %v3388
    %v3460 = vunpack.c.h.b16 %v3388
    %v3461 = vunpack.c.l.b16 %v3389
    %v3462 = vunpack.c.h.b16 %v3389
    %v3463 = vunpack.c.l.b16 %v3390
    %v3464 = vunpack.c.h.b16 %v3390
    %v3465 = vunpack.c.l.b16 %v3391
    %v3466 = vunpack.c.h.b16 %v3391
    %v3467 = vunpack.c.l.b16 %v3392
    %v3468 = vunpack.c.h.b16 %v3392
    %v3469 = vunpack.c.l.b16 %v3393
    %v3470 = vunpack.c.h.b16 %v3393
    %v3471 = vunpack.c.l.b16 %v3394
    %v3472 = vunpack.c.h.b16 %v3394
    %v3473 = vunpack.c.l.b16 %v3395
    %v3474 = vunpack.c.h.b16 %v3395
    %v3475 = vunpack.c.l.b16 %v3396
    %v3476 = vunpack.c.h.b16 %v3396
    %v3477 = vunpack.c.l.b16 %v3397
    %v3478 = vunpack.c.h.b16 %v3397
    %v3479 = vunpack.c.l.b16 %v3398
    %v3480 = vunpack.c.h.b16 %v3398
    %v3481 = vunpack.c.l.b16 %v3399
    %v3482 = vunpack.c.h.b16 %v3399
    %v3483 = vunpack.c.l.b16 %v3400
    %v3484 = vunpack.c.h.b16 %v3400
    %v3485 = vunpack.c.l.b16 %v3401
    %v3486 = vunpack.c.h.b16 %v3401
    %v3487 = vunpack.c.l.b16 %v3402
    %v3488 = vunpack.c.h.b16 %v3402
    %v3489 = vunpack.c.l.b16 %v3403
    %v3490 = vunpack.c.h.b16 %v3403
    %v3491 = vunpack.c.l.b16 %v3404
    %v3492 = vunpack.c.h.b16 %v3404
    %v3493 = vunpack.c.l.b16 %v3405
    %v3494 = vunpack.c.h.b16 %v3405
    %v3495 = vunpack.c.l.b16 %v3406
    %v3496 = vunpack.c.h.b16 %v3406
    %v3497 = vunpack.c.l.b16 %v3407
    %v3498 = vunpack.c.h.b16 %v3407
    %v3499 = vunpack.c.l.b16 %v3408
    %v3500 = vunpack.c.h.b16 %v3408
    %v3501 = vunpack.c.l.b16 %v3409
    %v3502 = vunpack.c.h.b16 %v3409
    %v3503 = vunpack.c.l.b16 %v3410
    %v3504 = vunpack.c.h.b16 %v3410
    %v3505 = vunpack.c.l.b16 %v3411
    %v3506 = vunpack.c.h.b16 %v3411
    %v3507 = vunpack.c.l.b16 %v3412
    %v3508 = vunpack.c.h.b16 %v3412
    %v3509 = vunpack.c.l.b16 %v3413
    %v3510 = vunpack.c.h.b16 %v3413
    %v3511 = vunpack.c.l.b16 %v3414
    %v3512 = vunpack.c.h.b16 %v3414
    %v3513 = vunpack.c.l.b16 %v3415
    %v3514 = vunpack.c.h.b16 %v3415
    %v3515 = vunpack.c.l.b16 %v3416
    %v3516 = vunpack.c.h.b16 %v3416
    %v3517 = vunpack.c.l.b16 %v3417
    %v3518 = vunpack.c.h.b16 %v3417
    %v3519 = vunpack.c.l.b16 %v3418
    %v3520 = vunpack.c.h.b16 %v3418
    %v3521 = vpack.c.b16 %v3459, %v3457
    %v3522 = vpack.c.b16 %v3460, %v3458
    %v3523 = vpack.c.b16 %v3463, %v3461
    %v3524 = vpack.c.b16 %v3464, %v3462
    %v3525 = vpack.c.b16 %v3467, %v3465
    %v3526 = vpack.c.b16 %v3468, %v3466
    %v3527 = vpack.c.b16 %v3471, %v3469
    %v3528 = vpack.c.b16 %v3472, %v3470
    %v3529 = vpack.c.b16 %v3475, %v3473
    %v3530 = vpack.c.b16 %v3476, %v3474
    %v3531 = vpack.c.b16 %v3479, %v3477
    %v3532 = vpack.c.b16 %v3480, %v3478
    %v3533 = vpack.c.b16 %v3483, %v3481
    %v3534 = vpack.c.b16 %v3484, %v3482
    %v3535 = vpack.c.b16 %v3487, %v3485
    %v3536 = vpack.c.b16 %v3488, %v3486
    %v3537 = vpack.c.b16 %v3491, %v3489
    %v3538 = vpack.c.b16 %v3492, %v3490
    %v3539 = vpack.c.b16 %v3495, %v3493
    %v3540 = vpack.c.b16 %v3496, %v3494
    %v3541 = vpack.c.b16 %v3499, %v3497
    %v3542 = vpack.c.b16 %v3500, %v3498
    %v3543 = vpack.c.b16 %v3503, %v3501
    %v3544 = vpack.c.b16 %v3504, %v3502
    %v3545 = vpack.c.b16 %v3507, %v3505
    %v3546 = vpack.c.b16 %v3508, %v3506
    %v3547 = vpack.c.b16 %v3511, %v3509
    %v3548 = vpack.c.b16 %v3512, %v3510
    %v3549 = vpack.c.b16 %v3515, %v3513
    %v3550 = vpack.c.b16 %v3516, %v3514
    %v3551 = vpack.c.b16 %v3519, %v3517
    %v3552 = vpack.c.b16 %v3520, %v3518
    %3585 = vmatpush.bf16.msra.mxu0 %v3535
    %3586 = vmatpush.bf16.msra.mxu0 %v3533
    %3587 = vmatpush.bf16.msra.mxu0 %v3531
    %3588 = vmatpush.bf16.msra.mxu0 %v3529
    %3589 = vmatpush.bf16.msra.mxu0 %v3527
    %3590 = vmatpush.bf16.msra.mxu0 %v3525
    %3591 = vmatpush.bf16.msra.mxu0 %v3523
    %3592 = vmatpush.bf16.msra.mxu0 %v3521
    %3593 = vmatmul.bf16.gmra.mxu0 %v3385
    %v3594 = vpop.f32.mrf.mxu0
    %v3595 = vadd.f32 %v3421, %v3594
    %v3596 = vpop.f32.mrf.mxu0
    %3597 = vdwg.mxu0
    %3598 = vmatpush.bf16.msra.mxu0 %v3551
    %3599 = vmatpush.bf16.msra.mxu0 %v3549
    %3600 = vmatpush.bf16.msra.mxu0 %v3547
    %3601 = vmatpush.bf16.msra.mxu0 %v3545
    %3602 = vmatpush.bf16.msra.mxu0 %v3543
    %3603 = vmatpush.bf16.msra.mxu0 %v3541
    %3604 = vmatpush.bf16.msra.mxu0 %v3539
    %3605 = vmatpush.bf16.msra.mxu0 %v3537
    %3606 = vmatmul.bf16.gmra.mxu0 %v3386
    %v3607 = vpop.f32.mrf.mxu0
    %v3608 = vadd.f32 %v3595, %v3607
    %v3609 = vpop.f32.mrf.mxu0
    %3610 = vdwg.mxu0
    %3611 = vmatpush.bf16.msra.mxu0 %v3536
    %3612 = vmatpush.bf16.msra.mxu0 %v3534
    %3613 = vmatpush.bf16.msra.mxu0 %v3532
    %3614 = vmatpush.bf16.msra.mxu0 %v3530
    %3615 = vmatpush.bf16.msra.mxu0 %v3528
    %3616 = vmatpush.bf16.msra.mxu0 %v3526
    %3617 = vmatpush.bf16.msra.mxu0 %v3524
    %3618 = vmatpush.bf16.msra.mxu0 %v3522
    %3619 = vmatmul.bf16.gmra.mxu0 %v3385
    %v3620 = vpop.f32.mrf.mxu0
    %v3621 = vadd.f32 %v3422, %v3620
    %v3622 = vpop.f32.mrf.mxu0
    %3623 = vdwg.mxu0
    %3624 = vmatpush.bf16.msra.mxu0 %v3552
    %3625 = vmatpush.bf16.msra.mxu0 %v3550
    %3626 = vmatpush.bf16.msra.mxu0 %v3548
    %3627 = vmatpush.bf16.msra.mxu0 %v3546
    %3628 = vmatpush.bf16.msra.mxu0 %v3544
    %3629 = vmatpush.bf16.msra.mxu0 %v3542
    %3630 = vmatpush.bf16.msra.mxu0 %v3540
    %3631 = vmatpush.bf16.msra.mxu0 %v3538
    %3632 = vmatmul.bf16.gmra.mxu0 %v3386
    %v3633 = vpop.f32.mrf.mxu0
    %v3634 = vadd.f32 %v3621, %v3633
    %v3635 = vpop.f32.mrf.mxu0
    %3636 = vdwg.mxu0
    %v3637 = vmax.f32 %v3608, 0.0
    %v3638 = vmax.f32 %v3634, 0.0
    %v3639 = vpack.c.bf16 %v3637, %v3637
    %v3640 = vpack.c.bf16 %v3638, %v3638
    %v3641 = vld [vmem:[%s9] sm:$0xf]
    %v3642 = vld [vmem:[%s9 + $0x4] sm:$0xf]
    %v3643 = vld [vmem:[%s9 + $0x8] sm:$0xf]
    %v3644 = vld [vmem:[%s9 + $0xc] sm:$0xf]
    %v3645 = vld [vmem:[%s9 + $0x10] sm:$0xf]
    %v3646 = vld [vmem:[%s9 + $0x14] sm:$0xf]
    %v3647 = vld [vmem:[%s9 + $0x18] sm:$0xf]
    %v3648 = vld [vmem:[%s9 + $0x1c] sm:$0xf]
    %v3649 = vld [vmem:[%s9 + $0x20] sm:$0xf]
    %v3650 = vld [vmem:[%s9 + $0x24] sm:$0xf]
    %v3651 = vld [vmem:[%s9 + $0x28] sm:$0xf]
    %v3652 = vld [vmem:[%s9 + $0x2c] sm:$0xf]
    %v3653 = vld [vmem:[%s9 + $0x30] sm:$0xf]
    %v3654 = vld [vmem:[%s9 + $0x34] sm:$0xf]
    %v3655 = vld [vmem:[%s9 + $0x38] sm:$0xf]
    %v3656 = vld [vmem:[%s9 + $0x3c] sm:$0xf]
    %v3657 = vld [vmem:[%s9 + $0x40] sm:$0xf]
    %v3658 = vld [vmem:[%s9 + $0x44] sm:$0xf]
    %v3659 = vld [vmem:[%s9 + $0x48] sm:$0xf]
    %v3660 = vld [vmem:[%s9 + $0x4c] sm:$0xf]
    %v3661 = vld [vmem:[%s9 + $0x50] sm:$0xf]
    %v3662 = vld [vmem:[%s9 + $0x54] sm:$0xf]
    %v3663 = vld [vmem:[%s9 + $0x58] sm:$0xf]
    %v3664 = vld [vmem:[%s9 + $0x5c] sm:$0xf]
    %v3665 = vld [vmem:[%s9 + $0x60] sm:$0xf]
    %v3666 = vld [vmem:[%s9 + $0x64] sm:$0xf]
    %v3667 = vld [vmem:[%s9 + $0x68] sm:$0xf]
    %v3668 = vld [vmem:[%s9 + $0x6c] sm:$0xf]
    %v3669 = vld [vmem:[%s9 + $0x70] sm:$0xf]
    %v3670 = vld [vmem:[%s9 + $0x74] sm:$0xf]
    %v3671 = vld [vmem:[%s9 + $0x78] sm:$0xf]
    %v3672 = vld [vmem:[%s9 + $0x7c] sm:$0xf]
    %v3673 = vld [vmem:[%s10] sm:$0x1]
    %v3675 = vperm.slane %v3673, 0
    %v3709 = vunpack.c.l.b16 %v3641
    %v3710 = vunpack.c.l.b16 %v3642
    %v3711 = vunpack.c.l.b16 %v3643
    %v3712 = vunpack.c.l.b16 %v3644
    %v3713 = vunpack.c.l.b16 %v3645
    %v3714 = vunpack.c.l.b16 %v3646
    %v3715 = vunpack.c.l.b16 %v3647
    %v3716 = vunpack.c.l.b16 %v3648
    %v3717 = vunpack.c.l.b16 %v3649
    %v3718 = vunpack.c.l.b16 %v3650
    %v3719 = vunpack.c.l.b16 %v3651
    %v3720 = vunpack.c.l.b16 %v3652
    %v3721 = vunpack.c.l.b16 %v3653
    %v3722 = vunpack.c.l.b16 %v3654
    %v3723 = vunpack.c.l.b16 %v3655
    %v3724 = vunpack.c.l.b16 %v3656
    %v3725 = vunpack.c.l.b16 %v3657
    %v3726 = vunpack.c.l.b16 %v3658
    %v3727 = vunpack.c.l.b16 %v3659
    %v3728 = vunpack.c.l.b16 %v3660
    %v3729 = vunpack.c.l.b16 %v3661
    %v3730 = vunpack.c.l.b16 %v3662
    %v3731 = vunpack.c.l.b16 %v3663
    %v3732 = vunpack.c.l.b16 %v3664
    %v3733 = vunpack.c.l.b16 %v3665
    %v3734 = vunpack.c.l.b16 %v3666
    %v3735 = vunpack.c.l.b16 %v3667
    %v3736 = vunpack.c.l.b16 %v3668
    %v3737 = vunpack.c.l.b16 %v3669
    %v3738 = vunpack.c.l.b16 %v3670
    %v3739 = vunpack.c.l.b16 %v3671
    %v3740 = vunpack.c.l.b16 %v3672
    %v3741 = vpack.c.b16 %v3710, %v3709
    %v3742 = vpack.c.b16 %v3712, %v3711
    %v3743 = vpack.c.b16 %v3714, %v3713
    %v3744 = vpack.c.b16 %v3716, %v3715
    %v3745 = vpack.c.b16 %v3718, %v3717
    %v3746 = vpack.c.b16 %v3720, %v3719
    %v3747 = vpack.c.b16 %v3722, %v3721
    %v3748 = vpack.c.b16 %v3724, %v3723
    %v3749 = vpack.c.b16 %v3726, %v3725
    %v3750 = vpack.c.b16 %v3728, %v3727
    %v3751 = vpack.c.b16 %v3730, %v3729
    %v3752 = vpack.c.b16 %v3732, %v3731
    %v3753 = vpack.c.b16 %v3734, %v3733
    %v3754 = vpack.c.b16 %v3736, %v3735
    %v3755 = vpack.c.b16 %v3738, %v3737
    %v3756 = vpack.c.b16 %v3740, %v3739
    %3773 = vmatpush.bf16.msra.mxu0 %v3748
    %3774 = vmatpush.bf16.msra.mxu0 %v3747
    %3775 = vmatpush.bf16.msra.mxu0 %v3746
    %3776 = vmatpush.bf16.msra.mxu0 %v3745
    %3777 = vmatpush.bf16.msra.mxu0 %v3744
    %3778 = vmatpush.bf16.msra.mxu0 %v3743
    %3779 = vmatpush.bf16.msra.mxu0 %v3742
    %3780 = vmatpush.bf16.msra.mxu0 %v3741
    %3781 = vmatmul.bf16.gmra.mxu0 %v3639
    %v3782 = vpop.f32.mrf.mxu0
    %v3783 = vadd.f32 %v3675, %v3782
    %v3784 = vpop.f32.mrf.mxu0
    %3785 = vdwg.mxu0
    %3786 = vmatpush.bf16.msra.mxu0 %v3756
    %3787 = vmatpush.bf16.msra.mxu0 %v3755
    %3788 = vmatpush.bf16.msra.mxu0 %v3754
    %3789 = vmatpush.bf16.msra.mxu0 %v3753
    %3790 = vmatpush.bf16.msra.mxu0 %v3752
    %3791 = vmatpush.bf16.msra.mxu0 %v3751
    %3792 = vmatpush.bf16.msra.mxu0 %v3750
    %3793 = vmatpush.bf16.msra.mxu0 %v3749
    %3794 = vmatmul.bf16.gmra.mxu0 %v3640
    %v3795 = vpop.f32.mrf.mxu0
    %v3796 = vadd.f32 %v3783, %v3795
    %v3797 = vpop.f32.mrf.mxu0
    %3798 = vdwg.mxu0
    %3799 = vst [vmem:[%s11] sm:$0xf] %v3796
    // Predicated region
    $region70: #{_lambda_.1} parent=1 // pred_check
      _
    $region71: #{_lambda_.1} parent=1 // pred_check_branch
      %3801 = sbr.rel (0) target = $region73
    $region72: #{_lambda_.1} parent=1 // pred_region
      _
    $region73: #{_lambda_.1} parent=1 // pred_fallthru
      _
    // Predicated region
    $region74: #{_lambda_.1} parent=1 // pred_check
      _
    $region75: #{_lambda_.1} parent=1 // pred_check_branch
      %3803 = sbr.rel (0) target = $region77
    $region76: #{_lambda_.1} parent=1 // pred_region
      _
    $region77: #{_lambda_.1} parent=1 // pred_fallthru
      _
    %3804 = vsyncpa [#allocation3], 1
    %3805 = vsyncpa [#allocation5], 1
    %3806 = vsyncpa [#allocation8], 1
    %3807 = vsyncpa [#allocation11], 1

</llo_original>
